<compile_context>
chip_gen: v7x
topology: tpu7x:2x2x1
jax: 0.10.0
libtpu: 0.0.40
codegen_flags: <defaults>
</compile_context>

<pallas_src>
import functools

import jax
import jax.numpy as jnp
from jax.experimental import pallas as pl
from jax.experimental.pallas import tpu as pltpu


_VMEM = pl.BlockSpec(memory_space=pltpu.MemorySpace.VMEM)
_SMEM = pl.BlockSpec(memory_space=pltpu.MemorySpace.SMEM)


# ---------------------------------------------------------------------------
# Fused SpatialTemporalBlock kernel
#   conv(5x5, stride 2) as ONE batched matmul + bias + BN(batch stats)
#   + LeakyReLU(0.1) + temporal Linear over t + LeakyReLU/Tanh,
#   all resident in VMEM / vregs (no scratch write-back passes).
# ---------------------------------------------------------------------------
def _st_block_kernel(p_ref, w_ref, cb_ref, g_ref, b_ref, lw_ref, lb_ref,
                     o_ref, *, T, t_out, S, last, inv_n, eps):
    """
    p_ref : (K, T*S)  bf16   im2col patches, lane index = t*S + s, s=(b,ho,wo)
    w_ref : (n_out, K) bf16  conv weight (reshaped)
    cb_ref: (n_out, 1) f32   conv bias
    g_ref : (n_out, 1) f32   BN gamma
    b_ref : (n_out, 1) f32   BN beta
    lw_ref: (t_out, T) f32   temporal Linear weight   (SMEM, scalar reads)
    lb_ref: (t_out,)   f32   temporal Linear bias     (SMEM, scalar reads)
    o_ref : (n_out, t_out*S) out dtype, lane index = i*S + s
    """
    n_out = w_ref.shape[0]

    # ---- conv: ONE batched MXU matmul over all T frames, f32 accumulate -----
    y = jnp.dot(w_ref[...], p_ref[...],
                preferred_element_type=jnp.float32)            # (n_out, T*S)
    y = y + cb_ref[...]                                        # conv bias

    # ---- BatchNorm2d, training-mode batch statistics.  The PyTorch block
    # folds time into the batch dim (view(B*t_in, n_out, H, W)) before BN, so
    # stats pool over T*B*H*W per channel: inv_n = 1/(T*S). --------------------
    mean = jnp.sum(y, axis=1, keepdims=True) * inv_n           # (n_out, 1)
    var = jnp.sum(jnp.square(y - mean), axis=1, keepdims=True) * inv_n
    scale = g_ref[...] * jax.lax.rsqrt(var + eps)              # (n_out, 1)
    shift = b_ref[...] - mean * scale
    # Hoist the lane-broadcasts out of the unrolled loops (JAX does not CSE
    # broadcast_in_dim; static unrolling would otherwise re-broadcast T times).
    scale_b = jnp.broadcast_to(scale, (n_out, S))
    shift_b = jnp.broadcast_to(shift, (n_out, S))

    # ---- normalize + LeakyReLU + temporal Linear, loop-interchanged:
    # each per-t slice is normalized once (in registers) and immediately
    # folded into the t_out accumulators -> no scratch write-back passes. -----
    accs = [None] * t_out
    for t in range(T):                                         # static, T <= 8
        yt = y[:, t * S:(t + 1) * S] * scale_b + shift_b       # (n_out, S)
        yt = jnp.where(yt >= 0.0, yt, 0.1 * yt)                # LeakyReLU(0.1)
        for i in range(t_out):                                 # static, <= 4
            a = yt * lw_ref[i, t]
            accs[i] = a if accs[i] is None else accs[i] + a

    for i in range(t_out):
        r = accs[i] + lb_ref[i]
        r = jnp.tanh(r) if last else jnp.where(r >= 0.0, r, 0.1 * r)
        o_ref[:, i * S:(i + 1) * S] = r.astype(o_ref.dtype)    # aligned lanes


def spatial_temporal_block(a, p, last):
    """a: block input activations in (C, T, B, H, W) layout, bfloat16."""
    C, T, B, H, W = a.shape
    n_out = p["conv_w"].shape[0]
    t_out = p["lin_w"].shape[0]
    Hout, Wout = (H - 1) // 2 + 1, (W - 1) // 2 + 1
    S = B * Hout * Wout

    # im2col directly in the final (K, T*S) bf16 lane-dense layout.  With the
    # (C, T, B, H, W) activation layout this is a transpose-free
    # pad/slice/stack/contiguous-reshape chain that XLA fuses into one pass.
    # TODO(synk): at large B/H/W the 25x-expanded patch array through HBM
    # becomes the bottleneck; move the tap gather into the kernel then.
    ap = jnp.pad(a, ((0, 0), (0, 0), (0, 0), (2, 2), (2, 2)))
    taps = []
    for ky in range(5):
        for kx in range(5):
            taps.append(jax.lax.slice(
                ap, (0, 0, 0, ky, kx),
                (C, T, B, ky + 2 * (Hout - 1) + 1, kx + 2 * (Wout - 1) + 1),
                (1, 1, 1, 2, 2)))                          # (C, T, B, Hout, Wout)
    patches = jnp.stack(taps, axis=1)                      # (C, 25, T, B, Ho, Wo)
    patches = patches.reshape(C * 25, T * S)               # contiguous, no copy

    out_dtype = jnp.float32 if last else jnp.bfloat16
    out = pl.pallas_call(
        functools.partial(_st_block_kernel, T=T, t_out=t_out, S=S, last=last,
                          inv_n=1.0 / float(T * S), eps=1e-5),
        out_shape=jax.ShapeDtypeStruct((n_out, t_out * S), out_dtype),
        in_specs=[_VMEM] * 5 + [_SMEM, _SMEM],
        out_specs=_VMEM,
    )(patches,
      p["conv_w"].reshape(n_out, C * 25).astype(jnp.bfloat16),
      p["conv_b"].reshape(n_out, 1),
      p["gamma"].reshape(n_out, 1),
      p["beta"].reshape(n_out, 1),
      p["lin_w"],
      p["lin_b"])
    # (n_out, t_out*S) reshapes straight into the next block's (C',T',B,H',W').
    return out.reshape(n_out, t_out, B, Hout, Wout)


# ---------------------------------------------------------------------------
# Fused Gaussian head: concatenated first layers + block-diagonal second layer
#   => 2 matmuls total; clamp/tanh/reparameterization inlined.
# ---------------------------------------------------------------------------
def _gaussian_kernel(x_ref, w1_ref, b1_ref, w2_ref, b2_ref, noise_ref,
                     mu_o, lv_o, z_o, *, z_dim):
    h = jnp.dot(x_ref[...], w1_ref[...],
                preferred_element_type=jnp.float32) + b1_ref[...]   # (B, 2*hid)
    h = jnp.where(h >= 0.0, h, 0.1 * h)                             # LeakyReLU(0.1)
    # block-diagonal (2*hid, 2*z_dim) weight: one MXU push, no slicing of h.
    o2 = jnp.dot(h, w2_ref[...],
                 preferred_element_type=jnp.float32) + b2_ref[...]  # (B, 2*z)
    mu = o2[:, :z_dim]
    lv = o2[:, z_dim:]
    # PyTorch clamps BOTH mu and logvar whenever any element is out of range;
    # the unconditional clamp below is exactly equivalent.
    mu = jnp.clip(mu, -100.0, 85.0)
    lv = jnp.tanh(jnp.clip(lv, -100.0, 85.0))
    mu_o[...] = mu
    lv_o[...] = lv
    z_o[...] = mu + noise_ref[...] * jnp.exp(0.5 * lv)


def gaussian_output(g, x, noise):
    B = x.shape[0]
    z_dim = g["b2"].shape[1] // 2
    shp = jax.ShapeDtypeStruct((B, z_dim), jnp.float32)
    return pl.pallas_call(
        functools.partial(_gaussian_kernel, z_dim=z_dim),
        out_shape=(shp, shp, shp),
        in_specs=[_VMEM] * 6,
        out_specs=(_VMEM, _VMEM, _VMEM),
    )(x, g["w1"], g["b1"], g["w2"], g["b2"], noise)


# ---------------------------------------------------------------------------
# Model forward
# ---------------------------------------------------------------------------
def forward(params, x, noise, time_steps, num_channels):
    # x: [B, time_steps * num_channels, H, W]  (NCHW, like PyTorch)
    B, _, H, W = x.shape
    # canonical activation layout for the fused block kernels: (C, T, B, H, W);
    # bf16 so all inter-block HBM traffic (incl. im2col patches) is half-width.
    h = x.reshape(B, time_steps, num_channels, H, W)
    h = h.transpose(2, 1, 0, 3, 4).astype(jnp.bfloat16)
    for p, last in zip(params["blocks"], (False, False, True)):
        h = spatial_temporal_block(h, p, last)
    # h: (n_out, 1, B, 4, 4) f32  ->  torch Flatten order (B, n_out * H * W)
    C, _, Bo, Ho, Wo = h.shape
    flat = h.reshape(C, Bo, Ho * Wo).transpose(1, 0, 2).reshape(Bo, C * Ho * Wo)
    return gaussian_output(params["gaussian"], flat, noise)


# ---------------------------------------------------------------------------
# Deterministic parameter initialization (shapes follow the PyTorch __init__)
# ---------------------------------------------------------------------------
def _uniform(key, shape, bound):
    return jax.random.uniform(key, shape, jnp.float32, -bound, bound)


def init_params(key, time_steps, num_filters, num_channels, latent_dim):
    del num_channels  # first block uses n_in = 1 (as in the PyTorch module)
    cfgs = [
        (time_steps, time_steps // 2, 1, num_filters),
        (time_steps // 2, time_steps // 4, num_filters, num_filters * 2),
        (time_steps // 4, 1, num_filters * 2, num_filters),
    ]
    blocks = []
    keys = jax.random.split(key, 4 * len(cfgs) + 1)
    ki = 0
    for (t_in, t_out, n_in, n_out) in cfgs:
        kc = 1.0 / float(n_in * 25) ** 0.5
        kl = 1.0 / float(t_in) ** 0.5
        blocks.append(dict(
            conv_w=_uniform(keys[ki + 0], (n_out, n_in, 5, 5), kc),
            conv_b=_uniform(keys[ki + 1], (n_out,), kc),
            gamma=jnp.ones((n_out,), jnp.float32),
            beta=jnp.zeros((n_out,), jnp.float32),
            lin_w=_uniform(keys[ki + 2], (t_out, t_in), kl),
            lin_b=_uniform(keys[ki + 3], (t_out,), kl),
        ))
        ki += 4
    in_dim = num_filters * 4 ** 2
    hid = in_dim // 2
    k1 = 1.0 / float(in_dim) ** 0.5
    k2 = 1.0 / float(hid) ** 0.5
    gk = jax.random.split(keys[ki], 8)
    mu_w1 = _uniform(gk[0], (hid, in_dim), k1)
    mu_b1 = _uniform(gk[1], (hid,), k1)
    mu_w2 = _uniform(gk[2], (latent_dim, hid), k2)
    mu_b2 = _uniform(gk[3], (latent_dim,), k2)
    var_w1 = _uniform(gk[4], (hid, in_dim), k1)
    var_b1 = _uniform(gk[5], (hid,), k1)
    var_w2 = _uniform(gk[6], (latent_dim, hid), k2)
    var_b2 = _uniform(gk[7], (latent_dim,), k2)
    # second layer as a block-diagonal weight => one matmul for mu|logvar
    w2 = jnp.zeros((2 * hid, 2 * latent_dim), jnp.float32)
    w2 = w2.at[:hid, :latent_dim].set(mu_w2.T)
    w2 = w2.at[hid:, latent_dim:].set(var_w2.T)
    gaussian = dict(
        w1=jnp.concatenate([mu_w1.T, var_w1.T], axis=1),        # (in_dim, 2*hid)
        b1=jnp.concatenate([mu_b1, var_b1]).reshape(1, 2 * hid),
        w2=w2,                                                  # (2*hid, 2*z)
        b2=jnp.concatenate([mu_b2, var_b2]).reshape(1, 2 * latent_dim),
    )
    return dict(blocks=blocks, gaussian=gaussian)


# ---------------------------------------------------------------------------
if __name__ == "__main__":
    time_steps, num_filters, num_channels, latent_dim = 8, 4, 1, 16
    B, H, W = 2, 32, 32   # 3 stride-2 convs: 32 -> 16 -> 8 -> 4 => flatten = num_filters*4*4

    key = jax.random.PRNGKey(0)
    pkey, xkey, nkey = jax.random.split(key, 3)
    params = init_params(pkey, time_steps, num_filters, num_channels, latent_dim)
    x = jax.random.normal(xkey, (B, time_steps * num_channels, H, W), jnp.float32)
    # TODO(synk): torch.randn_like inside reparameterization is replaced by an
    # explicit deterministic noise input drawn host-side with jax.random.
    noise = jax.random.normal(nkey, (B, latent_dim), jnp.float32)

    fwd = jax.jit(forward, static_argnums=(3, 4))
    mu, logvar, z = fwd(params, x, noise, time_steps, num_channels)
    jax.block_until_ready((mu, logvar, z))

    assert mu.shape == (B, latent_dim)
    assert logvar.shape == (B, latent_dim)
    assert z.shape == (B, latent_dim)
    assert bool(jnp.all(jnp.isfinite(mu))) and bool(jnp.all(jnp.isfinite(z)))
    print("KERNEL_OK")
</pallas_src>

<mosaic_0001>
module attributes {stable_mosaic.version = 11 : i64} {
  func.func @_st_block_kernel(%arg0: memref<25x4096xbf16, #tpu.memory_space<vmem>>, %arg1: memref<4x25xbf16, #tpu.memory_space<vmem>>, %arg2: memref<4x1xf32, #tpu.memory_space<vmem>>, %arg3: memref<4x1xf32, #tpu.memory_space<vmem>>, %arg4: memref<4x1xf32, #tpu.memory_space<vmem>>, %arg5: memref<4x8xf32, #tpu.memory_space<smem>>, %arg6: memref<4xf32, #tpu.memory_space<smem>>, %arg7: memref<4x2048xbf16, #tpu.memory_space<vmem>>) attributes {dimension_semantics = [], scalar_prefetch = 0 : i64, scratch_operands = 0 : i64, tpu.core_type = #tpu.core_type<tc>} {
    %c0 = arith.constant 0 : index
    %c0_0 = arith.constant 0 : index
    %0 = vector.load %arg1[%c0, %c0_0] : memref<4x25xbf16, #tpu.memory_space<vmem>>, vector<4x25xbf16>
    %c0_1 = arith.constant 0 : index
    %c0_2 = arith.constant 0 : index
    %1 = vector.load %arg0[%c0_1, %c0_2] : memref<25x4096xbf16, #tpu.memory_space<vmem>>, vector<25x4096xbf16>
    %cst = arith.constant dense<0.000000e+00> : vector<4x4096xf32>
    %2 = tpu.matmul %0, %1, %cst {dimension_numbers = #tpu.dot_dimension_numbers<[1], [0], [0], [1], [0, 0, 1, 1], [], []>} : vector<4x25xbf16>, vector<25x4096xbf16>, vector<4x4096xf32> -> vector<4x4096xf32>
    %c0_3 = arith.constant 0 : index
    %c0_4 = arith.constant 0 : index
    %3 = vector.load %arg2[%c0_3, %c0_4] : memref<4x1xf32, #tpu.memory_space<vmem>>, vector<4x1xf32>
    %4 = vector.broadcast %3 : vector<4x1xf32> to vector<4x4096xf32>
    %5 = arith.addf %2, %4 : vector<4x4096xf32>
    %cst_5 = arith.constant dense<0.000000e+00> : vector<4xf32>
    %6 = vector.multi_reduction <add>, %5, %cst_5 [1] : vector<4x4096xf32> to vector<4xf32>
    %7 = vector.shape_cast %6 : vector<4xf32> to vector<4x1xf32>
    %cst_6 = arith.constant 2.44140625E-4 : f32
    %8 = vector.broadcast %cst_6 : f32 to vector<4x1xf32>
    %9 = arith.mulf %7, %8 : vector<4x1xf32>
    %10 = vector.broadcast %9 : vector<4x1xf32> to vector<4x4096xf32>
    %11 = arith.subf %5, %10 : vector<4x4096xf32>
    %12 = arith.mulf %11, %11 : vector<4x4096xf32>
    %cst_7 = arith.constant dense<0.000000e+00> : vector<4xf32>
    %13 = vector.multi_reduction <add>, %12, %cst_7 [1] : vector<4x4096xf32> to vector<4xf32>
    %14 = vector.shape_cast %13 : vector<4xf32> to vector<4x1xf32>
    %cst_8 = arith.constant 2.44140625E-4 : f32
    %15 = vector.broadcast %cst_8 : f32 to vector<4x1xf32>
    %16 = arith.mulf %14, %15 : vector<4x1xf32>
    %c0_9 = arith.constant 0 : index
    %c0_10 = arith.constant 0 : index
    %17 = vector.load %arg3[%c0_9, %c0_10] : memref<4x1xf32, #tpu.memory_space<vmem>>, vector<4x1xf32>
    %cst_11 = arith.constant 9.99999974E-6 : f32
    %18 = vector.broadcast %cst_11 : f32 to vector<4x1xf32>
    %19 = arith.addf %16, %18 : vector<4x1xf32>
    %20 = math.rsqrt %19 : vector<4x1xf32>
    %21 = arith.mulf %17, %20 : vector<4x1xf32>
    %c0_12 = arith.constant 0 : index
    %c0_13 = arith.constant 0 : index
    %22 = vector.load %arg4[%c0_12, %c0_13] : memref<4x1xf32, #tpu.memory_space<vmem>>, vector<4x1xf32>
    %23 = arith.mulf %9, %21 : vector<4x1xf32>
    %24 = arith.subf %22, %23 : vector<4x1xf32>
    %25 = vector.shape_cast %21 : vector<4x1xf32> to vector<4x1xf32>
    %26 = vector.broadcast %25 : vector<4x1xf32> to vector<4x512xf32>
    %27 = vector.shape_cast %24 : vector<4x1xf32> to vector<4x1xf32>
    %28 = vector.broadcast %27 : vector<4x1xf32> to vector<4x512xf32>
    %29 = vector.extract_strided_slice %5 {offsets = [0, 0], sizes = [4, 512], strides = [1, 1]} : vector<4x4096xf32> to vector<4x512xf32>
    %30 = arith.mulf %29, %26 : vector<4x512xf32>
    %31 = arith.addf %30, %28 : vector<4x512xf32>
    %cst_14 = arith.constant 0.000000e+00 : f32
    %32 = vector.broadcast %cst_14 : f32 to vector<4x512xf32>
    %33 = arith.cmpf oge, %31, %32 : vector<4x512xf32>
    %cst_15 = arith.constant 1.000000e-01 : f32
    %34 = vector.broadcast %cst_15 : f32 to vector<4x512xf32>
    %35 = arith.mulf %34, %31 : vector<4x512xf32>
    %36 = arith.select %33, %31, %35 : vector<4x512xi1>, vector<4x512xf32>
    %c0_16 = arith.constant 0 : index
    %c0_17 = arith.constant 0 : index
    %37 = memref.load %arg5[%c0_16, %c0_17] : memref<4x8xf32, #tpu.memory_space<smem>>
    %38 = vector.broadcast %37 : f32 to vector<4x512xf32>
    %39 = arith.mulf %36, %38 : vector<4x512xf32>
    %c1 = arith.constant 1 : index
    %c0_18 = arith.constant 0 : index
    %40 = memref.load %arg5[%c1, %c0_18] : memref<4x8xf32, #tpu.memory_space<smem>>
    %41 = vector.broadcast %40 : f32 to vector<4x512xf32>
    %42 = arith.mulf %36, %41 : vector<4x512xf32>
    %c2 = arith.constant 2 : index
    %c0_19 = arith.constant 0 : index
    %43 = memref.load %arg5[%c2, %c0_19] : memref<4x8xf32, #tpu.memory_space<smem>>
    %44 = vector.broadcast %43 : f32 to vector<4x512xf32>
    %45 = arith.mulf %36, %44 : vector<4x512xf32>
    %c3 = arith.constant 3 : index
    %c0_20 = arith.constant 0 : index
    %46 = memref.load %arg5[%c3, %c0_20] : memref<4x8xf32, #tpu.memory_space<smem>>
    %47 = vector.broadcast %46 : f32 to vector<4x512xf32>
    %48 = arith.mulf %36, %47 : vector<4x512xf32>
    %49 = vector.extract_strided_slice %5 {offsets = [0, 512], sizes = [4, 512], strides = [1, 1]} : vector<4x4096xf32> to vector<4x512xf32>
    %50 = arith.mulf %49, %26 : vector<4x512xf32>
    %51 = arith.addf %50, %28 : vector<4x512xf32>
    %cst_21 = arith.constant 0.000000e+00 : f32
    %52 = vector.broadcast %cst_21 : f32 to vector<4x512xf32>
    %53 = arith.cmpf oge, %51, %52 : vector<4x512xf32>
    %cst_22 = arith.constant 1.000000e-01 : f32
    %54 = vector.broadcast %cst_22 : f32 to vector<4x512xf32>
    %55 = arith.mulf %54, %51 : vector<4x512xf32>
    %56 = arith.select %53, %51, %55 : vector<4x512xi1>, vector<4x512xf32>
    %c0_23 = arith.constant 0 : index
    %c1_24 = arith.constant 1 : index
    %57 = memref.load %arg5[%c0_23, %c1_24] : memref<4x8xf32, #tpu.memory_space<smem>>
    %58 = vector.broadcast %57 : f32 to vector<4x512xf32>
    %59 = arith.mulf %56, %58 : vector<4x512xf32>
    %60 = arith.addf %39, %59 : vector<4x512xf32>
    %c1_25 = arith.constant 1 : index
    %c1_26 = arith.constant 1 : index
    %61 = memref.load %arg5[%c1_25, %c1_26] : memref<4x8xf32, #tpu.memory_space<smem>>
    %62 = vector.broadcast %61 : f32 to vector<4x512xf32>
    %63 = arith.mulf %56, %62 : vector<4x512xf32>
    %64 = arith.addf %42, %63 : vector<4x512xf32>
    %c2_27 = arith.constant 2 : index
    %c1_28 = arith.constant 1 : index
    %65 = memref.load %arg5[%c2_27, %c1_28] : memref<4x8xf32, #tpu.memory_space<smem>>
    %66 = vector.broadcast %65 : f32 to vector<4x512xf32>
    %67 = arith.mulf %56, %66 : vector<4x512xf32>
    %68 = arith.addf %45, %67 : vector<4x512xf32>
    %c3_29 = arith.constant 3 : index
    %c1_30 = arith.constant 1 : index
    %69 = memref.load %arg5[%c3_29, %c1_30] : memref<4x8xf32, #tpu.memory_space<smem>>
    %70 = vector.broadcast %69 : f32 to vector<4x512xf32>
    %71 = arith.mulf %56, %70 : vector<4x512xf32>
    %72 = arith.addf %48, %71 : vector<4x512xf32>
    %73 = vector.extract_strided_slice %5 {offsets = [0, 1024], sizes = [4, 512], strides = [1, 1]} : vector<4x4096xf32> to vector<4x512xf32>
    %74 = arith.mulf %73, %26 : vector<4x512xf32>
    %75 = arith.addf %74, %28 : vector<4x512xf32>
    %cst_31 = arith.constant 0.000000e+00 : f32
    %76 = vector.broadcast %cst_31 : f32 to vector<4x512xf32>
    %77 = arith.cmpf oge, %75, %76 : vector<4x512xf32>
    %cst_32 = arith.constant 1.000000e-01 : f32
    %78 = vector.broadcast %cst_32 : f32 to vector<4x512xf32>
    %79 = arith.mulf %78, %75 : vector<4x512xf32>
    %80 = arith.select %77, %75, %79 : vector<4x512xi1>, vector<4x512xf32>
    %c0_33 = arith.constant 0 : index
    %c2_34 = arith.constant 2 : index
    %81 = memref.load %arg5[%c0_33, %c2_34] : memref<4x8xf32, #tpu.memory_space<smem>>
    %82 = vector.broadcast %81 : f32 to vector<4x512xf32>
    %83 = arith.mulf %80, %82 : vector<4x512xf32>
    %84 = arith.addf %60, %83 : vector<4x512xf32>
    %c1_35 = arith.constant 1 : index
    %c2_36 = arith.constant 2 : index
    %85 = memref.load %arg5[%c1_35, %c2_36] : memref<4x8xf32, #tpu.memory_space<smem>>
    %86 = vector.broadcast %85 : f32 to vector<4x512xf32>
    %87 = arith.mulf %80, %86 : vector<4x512xf32>
    %88 = arith.addf %64, %87 : vector<4x512xf32>
    %c2_37 = arith.constant 2 : index
    %c2_38 = arith.constant 2 : index
    %89 = memref.load %arg5[%c2_37, %c2_38] : memref<4x8xf32, #tpu.memory_space<smem>>
    %90 = vector.broadcast %89 : f32 to vector<4x512xf32>
    %91 = arith.mulf %80, %90 : vector<4x512xf32>
    %92 = arith.addf %68, %91 : vector<4x512xf32>
    %c3_39 = arith.constant 3 : index
    %c2_40 = arith.constant 2 : index
    %93 = memref.load %arg5[%c3_39, %c2_40] : memref<4x8xf32, #tpu.memory_space<smem>>
    %94 = vector.broadcast %93 : f32 to vector<4x512xf32>
    %95 = arith.mulf %80, %94 : vector<4x512xf32>
    %96 = arith.addf %72, %95 : vector<4x512xf32>
    %97 = vector.extract_strided_slice %5 {offsets = [0, 1536], sizes = [4, 512], strides = [1, 1]} : vector<4x4096xf32> to vector<4x512xf32>
    %98 = arith.mulf %97, %26 : vector<4x512xf32>
    %99 = arith.addf %98, %28 : vector<4x512xf32>
    %cst_41 = arith.constant 0.000000e+00 : f32
    %100 = vector.broadcast %cst_41 : f32 to vector<4x512xf32>
    %101 = arith.cmpf oge, %99, %100 : vector<4x512xf32>
    %cst_42 = arith.constant 1.000000e-01 : f32
    %102 = vector.broadcast %cst_42 : f32 to vector<4x512xf32>
    %103 = arith.mulf %102, %99 : vector<4x512xf32>
    %104 = arith.select %101, %99, %103 : vector<4x512xi1>, vector<4x512xf32>
    %c0_43 = arith.constant 0 : index
    %c3_44 = arith.constant 3 : index
    %105 = memref.load %arg5[%c0_43, %c3_44] : memref<4x8xf32, #tpu.memory_space<smem>>
    %106 = vector.broadcast %105 : f32 to vector<4x512xf32>
    %107 = arith.mulf %104, %106 : vector<4x512xf32>
    %108 = arith.addf %84, %107 : vector<4x512xf32>
    %c1_45 = arith.constant 1 : index
    %c3_46 = arith.constant 3 : index
    %109 = memref.load %arg5[%c1_45, %c3_46] : memref<4x8xf32, #tpu.memory_space<smem>>
    %110 = vector.broadcast %109 : f32 to vector<4x512xf32>
    %111 = arith.mulf %104, %110 : vector<4x512xf32>
    %112 = arith.addf %88, %111 : vector<4x512xf32>
    %c2_47 = arith.constant 2 : index
    %c3_48 = arith.constant 3 : index
    %113 = memref.load %arg5[%c2_47, %c3_48] : memref<4x8xf32, #tpu.memory_space<smem>>
    %114 = vector.broadcast %113 : f32 to vector<4x512xf32>
    %115 = arith.mulf %104, %114 : vector<4x512xf32>
    %116 = arith.addf %92, %115 : vector<4x512xf32>
    %c3_49 = arith.constant 3 : index
    %c3_50 = arith.constant 3 : index
    %117 = memref.load %arg5[%c3_49, %c3_50] : memref<4x8xf32, #tpu.memory_space<smem>>
    %118 = vector.broadcast %117 : f32 to vector<4x512xf32>
    %119 = arith.mulf %104, %118 : vector<4x512xf32>
    %120 = arith.addf %96, %119 : vector<4x512xf32>
    %121 = vector.extract_strided_slice %5 {offsets = [0, 2048], sizes = [4, 512], strides = [1, 1]} : vector<4x4096xf32> to vector<4x512xf32>
    %122 = arith.mulf %121, %26 : vector<4x512xf32>
    %123 = arith.addf %122, %28 : vector<4x512xf32>
    %cst_51 = arith.constant 0.000000e+00 : f32
    %124 = vector.broadcast %cst_51 : f32 to vector<4x512xf32>
    %125 = arith.cmpf oge, %123, %124 : vector<4x512xf32>
    %cst_52 = arith.constant 1.000000e-01 : f32
    %126 = vector.broadcast %cst_52 : f32 to vector<4x512xf32>
    %127 = arith.mulf %126, %123 : vector<4x512xf32>
    %128 = arith.select %125, %123, %127 : vector<4x512xi1>, vector<4x512xf32>
    %c0_53 = arith.constant 0 : index
    %c4 = arith.constant 4 : index
    %129 = memref.load %arg5[%c0_53, %c4] : memref<4x8xf32, #tpu.memory_space<smem>>
    %130 = vector.broadcast %129 : f32 to vector<4x512xf32>
    %131 = arith.mulf %128, %130 : vector<4x512xf32>
    %132 = arith.addf %108, %131 : vector<4x512xf32>
    %c1_54 = arith.constant 1 : index
    %c4_55 = arith.constant 4 : index
    %133 = memref.load %arg5[%c1_54, %c4_55] : memref<4x8xf32, #tpu.memory_space<smem>>
    %134 = vector.broadcast %133 : f32 to vector<4x512xf32>
    %135 = arith.mulf %128, %134 : vector<4x512xf32>
    %136 = arith.addf %112, %135 : vector<4x512xf32>
    %c2_56 = arith.constant 2 : index
    %c4_57 = arith.constant 4 : index
    %137 = memref.load %arg5[%c2_56, %c4_57] : memref<4x8xf32, #tpu.memory_space<smem>>
    %138 = vector.broadcast %137 : f32 to vector<4x512xf32>
    %139 = arith.mulf %128, %138 : vector<4x512xf32>
    %140 = arith.addf %116, %139 : vector<4x512xf32>
    %c3_58 = arith.constant 3 : index
    %c4_59 = arith.constant 4 : index
    %141 = memref.load %arg5[%c3_58, %c4_59] : memref<4x8xf32, #tpu.memory_space<smem>>
    %142 = vector.broadcast %141 : f32 to vector<4x512xf32>
    %143 = arith.mulf %128, %142 : vector<4x512xf32>
    %144 = arith.addf %120, %143 : vector<4x512xf32>
    %145 = vector.extract_strided_slice %5 {offsets = [0, 2560], sizes = [4, 512], strides = [1, 1]} : vector<4x4096xf32> to vector<4x512xf32>
    %146 = arith.mulf %145, %26 : vector<4x512xf32>
    %147 = arith.addf %146, %28 : vector<4x512xf32>
    %cst_60 = arith.constant 0.000000e+00 : f32
    %148 = vector.broadcast %cst_60 : f32 to vector<4x512xf32>
    %149 = arith.cmpf oge, %147, %148 : vector<4x512xf32>
    %cst_61 = arith.constant 1.000000e-01 : f32
    %150 = vector.broadcast %cst_61 : f32 to vector<4x512xf32>
    %151 = arith.mulf %150, %147 : vector<4x512xf32>
    %152 = arith.select %149, %147, %151 : vector<4x512xi1>, vector<4x512xf32>
    %c0_62 = arith.constant 0 : index
    %c5 = arith.constant 5 : index
    %153 = memref.load %arg5[%c0_62, %c5] : memref<4x8xf32, #tpu.memory_space<smem>>
    %154 = vector.broadcast %153 : f32 to vector<4x512xf32>
    %155 = arith.mulf %152, %154 : vector<4x512xf32>
    %156 = arith.addf %132, %155 : vector<4x512xf32>
    %c1_63 = arith.constant 1 : index
    %c5_64 = arith.constant 5 : index
    %157 = memref.load %arg5[%c1_63, %c5_64] : memref<4x8xf32, #tpu.memory_space<smem>>
    %158 = vector.broadcast %157 : f32 to vector<4x512xf32>
    %159 = arith.mulf %152, %158 : vector<4x512xf32>
    %160 = arith.addf %136, %159 : vector<4x512xf32>
    %c2_65 = arith.constant 2 : index
    %c5_66 = arith.constant 5 : index
    %161 = memref.load %arg5[%c2_65, %c5_66] : memref<4x8xf32, #tpu.memory_space<smem>>
    %162 = vector.broadcast %161 : f32 to vector<4x512xf32>
    %163 = arith.mulf %152, %162 : vector<4x512xf32>
    %164 = arith.addf %140, %163 : vector<4x512xf32>
    %c3_67 = arith.constant 3 : index
    %c5_68 = arith.constant 5 : index
    %165 = memref.load %arg5[%c3_67, %c5_68] : memref<4x8xf32, #tpu.memory_space<smem>>
    %166 = vector.broadcast %165 : f32 to vector<4x512xf32>
    %167 = arith.mulf %152, %166 : vector<4x512xf32>
    %168 = arith.addf %144, %167 : vector<4x512xf32>
    %169 = vector.extract_strided_slice %5 {offsets = [0, 3072], sizes = [4, 512], strides = [1, 1]} : vector<4x4096xf32> to vector<4x512xf32>
    %170 = arith.mulf %169, %26 : vector<4x512xf32>
    %171 = arith.addf %170, %28 : vector<4x512xf32>
    %cst_69 = arith.constant 0.000000e+00 : f32
    %172 = vector.broadcast %cst_69 : f32 to vector<4x512xf32>
    %173 = arith.cmpf oge, %171, %172 : vector<4x512xf32>
    %cst_70 = arith.constant 1.000000e-01 : f32
    %174 = vector.broadcast %cst_70 : f32 to vector<4x512xf32>
    %175 = arith.mulf %174, %171 : vector<4x512xf32>
    %176 = arith.select %173, %171, %175 : vector<4x512xi1>, vector<4x512xf32>
    %c0_71 = arith.constant 0 : index
    %c6 = arith.constant 6 : index
    %177 = memref.load %arg5[%c0_71, %c6] : memref<4x8xf32, #tpu.memory_space<smem>>
    %178 = vector.broadcast %177 : f32 to vector<4x512xf32>
    %179 = arith.mulf %176, %178 : vector<4x512xf32>
    %180 = arith.addf %156, %179 : vector<4x512xf32>
    %c1_72 = arith.constant 1 : index
    %c6_73 = arith.constant 6 : index
    %181 = memref.load %arg5[%c1_72, %c6_73] : memref<4x8xf32, #tpu.memory_space<smem>>
    %182 = vector.broadcast %181 : f32 to vector<4x512xf32>
    %183 = arith.mulf %176, %182 : vector<4x512xf32>
    %184 = arith.addf %160, %183 : vector<4x512xf32>
    %c2_74 = arith.constant 2 : index
    %c6_75 = arith.constant 6 : index
    %185 = memref.load %arg5[%c2_74, %c6_75] : memref<4x8xf32, #tpu.memory_space<smem>>
    %186 = vector.broadcast %185 : f32 to vector<4x512xf32>
    %187 = arith.mulf %176, %186 : vector<4x512xf32>
    %188 = arith.addf %164, %187 : vector<4x512xf32>
    %c3_76 = arith.constant 3 : index
    %c6_77 = arith.constant 6 : index
    %189 = memref.load %arg5[%c3_76, %c6_77] : memref<4x8xf32, #tpu.memory_space<smem>>
    %190 = vector.broadcast %189 : f32 to vector<4x512xf32>
    %191 = arith.mulf %176, %190 : vector<4x512xf32>
    %192 = arith.addf %168, %191 : vector<4x512xf32>
    %193 = vector.extract_strided_slice %5 {offsets = [0, 3584], sizes = [4, 512], strides = [1, 1]} : vector<4x4096xf32> to vector<4x512xf32>
    %194 = arith.mulf %193, %26 : vector<4x512xf32>
    %195 = arith.addf %194, %28 : vector<4x512xf32>
    %cst_78 = arith.constant 0.000000e+00 : f32
    %196 = vector.broadcast %cst_78 : f32 to vector<4x512xf32>
    %197 = arith.cmpf oge, %195, %196 : vector<4x512xf32>
    %cst_79 = arith.constant 1.000000e-01 : f32
    %198 = vector.broadcast %cst_79 : f32 to vector<4x512xf32>
    %199 = arith.mulf %198, %195 : vector<4x512xf32>
    %200 = arith.select %197, %195, %199 : vector<4x512xi1>, vector<4x512xf32>
    %c0_80 = arith.constant 0 : index
    %c7 = arith.constant 7 : index
    %201 = memref.load %arg5[%c0_80, %c7] : memref<4x8xf32, #tpu.memory_space<smem>>
    %202 = vector.broadcast %201 : f32 to vector<4x512xf32>
    %203 = arith.mulf %200, %202 : vector<4x512xf32>
    %204 = arith.addf %180, %203 : vector<4x512xf32>
    %c1_81 = arith.constant 1 : index
    %c7_82 = arith.constant 7 : index
    %205 = memref.load %arg5[%c1_81, %c7_82] : memref<4x8xf32, #tpu.memory_space<smem>>
    %206 = vector.broadcast %205 : f32 to vector<4x512xf32>
    %207 = arith.mulf %200, %206 : vector<4x512xf32>
    %208 = arith.addf %184, %207 : vector<4x512xf32>
    %c2_83 = arith.constant 2 : index
    %c7_84 = arith.constant 7 : index
    %209 = memref.load %arg5[%c2_83, %c7_84] : memref<4x8xf32, #tpu.memory_space<smem>>
    %210 = vector.broadcast %209 : f32 to vector<4x512xf32>
    %211 = arith.mulf %200, %210 : vector<4x512xf32>
    %212 = arith.addf %188, %211 : vector<4x512xf32>
    %c3_85 = arith.constant 3 : index
    %c7_86 = arith.constant 7 : index
    %213 = memref.load %arg5[%c3_85, %c7_86] : memref<4x8xf32, #tpu.memory_space<smem>>
    %214 = vector.broadcast %213 : f32 to vector<4x512xf32>
    %215 = arith.mulf %200, %214 : vector<4x512xf32>
    %216 = arith.addf %192, %215 : vector<4x512xf32>
    %c0_87 = arith.constant 0 : index
    %217 = memref.load %arg6[%c0_87] : memref<4xf32, #tpu.memory_space<smem>>
    %218 = vector.broadcast %217 : f32 to vector<4x512xf32>
    %219 = arith.addf %204, %218 : vector<4x512xf32>
    %cst_88 = arith.constant 0.000000e+00 : f32
    %220 = vector.broadcast %cst_88 : f32 to vector<4x512xf32>
    %221 = arith.cmpf oge, %219, %220 : vector<4x512xf32>
    %cst_89 = arith.constant 1.000000e-01 : f32
    %222 = vector.broadcast %cst_89 : f32 to vector<4x512xf32>
    %223 = arith.mulf %222, %219 : vector<4x512xf32>
    %224 = arith.select %221, %219, %223 : vector<4x512xi1>, vector<4x512xf32>
    %225 = arith.truncf %224 : vector<4x512xf32> to vector<4x512xbf16>
    %c0_90 = arith.constant 0 : index
    %c0_91 = arith.constant 0 : index
    %226 = vector.load %arg7[%c0_90, %c0_91] : memref<4x2048xbf16, #tpu.memory_space<vmem>>, vector<4x512xbf16>
    tpu.vector_store %arg7[%c0_90, %c0_91], %225 {strides = array<i32>} : memref<4x2048xbf16, #tpu.memory_space<vmem>>, vector<4x512xbf16>,
    %c1_92 = arith.constant 1 : index
    %227 = memref.load %arg6[%c1_92] : memref<4xf32, #tpu.memory_space<smem>>
    %228 = vector.broadcast %227 : f32 to vector<4x512xf32>
    %229 = arith.addf %208, %228 : vector<4x512xf32>
    %cst_93 = arith.constant 0.000000e+00 : f32
    %230 = vector.broadcast %cst_93 : f32 to vector<4x512xf32>
    %231 = arith.cmpf oge, %229, %230 : vector<4x512xf32>
    %cst_94 = arith.constant 1.000000e-01 : f32
    %232 = vector.broadcast %cst_94 : f32 to vector<4x512xf32>
    %233 = arith.mulf %232, %229 : vector<4x512xf32>
    %234 = arith.select %231, %229, %233 : vector<4x512xi1>, vector<4x512xf32>
    %235 = arith.truncf %234 : vector<4x512xf32> to vector<4x512xbf16>
    %c0_95 = arith.constant 0 : index
    %c512 = arith.constant 512 : index
    %236 = vector.load %arg7[%c0_95, %c512] : memref<4x2048xbf16, #tpu.memory_space<vmem>>, vector<4x512xbf16>
    tpu.vector_store %arg7[%c0_95, %c512], %235 {strides = array<i32>} : memref<4x2048xbf16, #tpu.memory_space<vmem>>, vector<4x512xbf16>,
    %c2_96 = arith.constant 2 : index
    %237 = memref.load %arg6[%c2_96] : memref<4xf32, #tpu.memory_space<smem>>
    %238 = vector.broadcast %237 : f32 to vector<4x512xf32>
    %239 = arith.addf %212, %238 : vector<4x512xf32>
    %cst_97 = arith.constant 0.000000e+00 : f32
    %240 = vector.broadcast %cst_97 : f32 to vector<4x512xf32>
    %241 = arith.cmpf oge, %239, %240 : vector<4x512xf32>
    %cst_98 = arith.constant 1.000000e-01 : f32
    %242 = vector.broadcast %cst_98 : f32 to vector<4x512xf32>
    %243 = arith.mulf %242, %239 : vector<4x512xf32>
    %244 = arith.select %241, %239, %243 : vector<4x512xi1>, vector<4x512xf32>
    %245 = arith.truncf %244 : vector<4x512xf32> to vector<4x512xbf16>
    %c0_99 = arith.constant 0 : index
    %c1024 = arith.constant 1024 : index
    %246 = vector.load %arg7[%c0_99, %c1024] : memref<4x2048xbf16, #tpu.memory_space<vmem>>, vector<4x512xbf16>
    tpu.vector_store %arg7[%c0_99, %c1024], %245 {strides = array<i32>} : memref<4x2048xbf16, #tpu.memory_space<vmem>>, vector<4x512xbf16>,
    %c3_100 = arith.constant 3 : index
    %247 = memref.load %arg6[%c3_100] : memref<4xf32, #tpu.memory_space<smem>>
    %248 = vector.broadcast %247 : f32 to vector<4x512xf32>
    %249 = arith.addf %216, %248 : vector<4x512xf32>
    %cst_101 = arith.constant 0.000000e+00 : f32
    %250 = vector.broadcast %cst_101 : f32 to vector<4x512xf32>
    %251 = arith.cmpf oge, %249, %250 : vector<4x512xf32>
    %cst_102 = arith.constant 1.000000e-01 : f32
    %252 = vector.broadcast %cst_102 : f32 to vector<4x512xf32>
    %253 = arith.mulf %252, %249 : vector<4x512xf32>
    %254 = arith.select %251, %249, %253 : vector<4x512xi1>, vector<4x512xf32>
    %255 = arith.truncf %254 : vector<4x512xf32> to vector<4x512xbf16>
    %c0_103 = arith.constant 0 : index
    %c1536 = arith.constant 1536 : index
    %256 = vector.load %arg7[%c0_103, %c1536] : memref<4x2048xbf16, #tpu.memory_space<vmem>>, vector<4x512xbf16>
    tpu.vector_store %arg7[%c0_103, %c1536], %255 {strides = array<i32>} : memref<4x2048xbf16, #tpu.memory_space<vmem>>, vector<4x512xbf16>,
    return
  }
}

module attributes {stable_mosaic.version = 11 : i64} {
  func.func @_st_block_kernel(%arg0: memref<100x512xbf16, #tpu.memory_space<vmem>>, %arg1: memref<8x100xbf16, #tpu.memory_space<vmem>>, %arg2: memref<8x1xf32, #tpu.memory_space<vmem>>, %arg3: memref<8x1xf32, #tpu.memory_space<vmem>>, %arg4: memref<8x1xf32, #tpu.memory_space<vmem>>, %arg5: memref<2x4xf32, #tpu.memory_space<smem>>, %arg6: memref<2xf32, #tpu.memory_space<smem>>, %arg7: memref<8x256xbf16, #tpu.memory_space<vmem>>) attributes {dimension_semantics = [], scalar_prefetch = 0 : i64, scratch_operands = 0 : i64, tpu.core_type = #tpu.core_type<tc>} {
    %c0 = arith.constant 0 : index
    %c0_0 = arith.constant 0 : index
    %0 = vector.load %arg1[%c0, %c0_0] : memref<8x100xbf16, #tpu.memory_space<vmem>>, vector<8x100xbf16>
    %c0_1 = arith.constant 0 : index
    %c0_2 = arith.constant 0 : index
    %1 = vector.load %arg0[%c0_1, %c0_2] : memref<100x512xbf16, #tpu.memory_space<vmem>>, vector<100x512xbf16>
    %cst = arith.constant dense<0.000000e+00> : vector<8x512xf32>
    %2 = tpu.matmul %0, %1, %cst {dimension_numbers = #tpu.dot_dimension_numbers<[1], [0], [0], [1], [0, 0, 1, 1], [], []>} : vector<8x100xbf16>, vector<100x512xbf16>, vector<8x512xf32> -> vector<8x512xf32>
    %c0_3 = arith.constant 0 : index
    %c0_4 = arith.constant 0 : index
    %3 = vector.load %arg2[%c0_3, %c0_4] : memref<8x1xf32, #tpu.memory_space<vmem>>, vector<8x1xf32>
    %4 = vector.broadcast %3 : vector<8x1xf32> to vector<8x512xf32>
    %5 = arith.addf %2, %4 : vector<8x512xf32>
    %cst_5 = arith.constant dense<0.000000e+00> : vector<8xf32>
    %6 = vector.multi_reduction <add>, %5, %cst_5 [1] : vector<8x512xf32> to vector<8xf32>
    %7 = vector.shape_cast %6 : vector<8xf32> to vector<8x1xf32>
    %cst_6 = arith.constant 0.001953125 : f32
    %8 = vector.broadcast %cst_6 : f32 to vector<8x1xf32>
    %9 = arith.mulf %7, %8 : vector<8x1xf32>
    %10 = vector.broadcast %9 : vector<8x1xf32> to vector<8x512xf32>
    %11 = arith.subf %5, %10 : vector<8x512xf32>
    %12 = arith.mulf %11, %11 : vector<8x512xf32>
    %cst_7 = arith.constant dense<0.000000e+00> : vector<8xf32>
    %13 = vector.multi_reduction <add>, %12, %cst_7 [1] : vector<8x512xf32> to vector<8xf32>
    %14 = vector.shape_cast %13 : vector<8xf32> to vector<8x1xf32>
    %cst_8 = arith.constant 0.001953125 : f32
    %15 = vector.broadcast %cst_8 : f32 to vector<8x1xf32>
    %16 = arith.mulf %14, %15 : vector<8x1xf32>
    %c0_9 = arith.constant 0 : index
    %c0_10 = arith.constant 0 : index
    %17 = vector.load %arg3[%c0_9, %c0_10] : memref<8x1xf32, #tpu.memory_space<vmem>>, vector<8x1xf32>
    %cst_11 = arith.constant 9.99999974E-6 : f32
    %18 = vector.broadcast %cst_11 : f32 to vector<8x1xf32>
    %19 = arith.addf %16, %18 : vector<8x1xf32>
    %20 = math.rsqrt %19 : vector<8x1xf32>
    %21 = arith.mulf %17, %20 : vector<8x1xf32>
    %c0_12 = arith.constant 0 : index
    %c0_13 = arith.constant 0 : index
    %22 = vector.load %arg4[%c0_12, %c0_13] : memref<8x1xf32, #tpu.memory_space<vmem>>, vector<8x1xf32>
    %23 = arith.mulf %9, %21 : vector<8x1xf32>
    %24 = arith.subf %22, %23 : vector<8x1xf32>
    %25 = vector.shape_cast %21 : vector<8x1xf32> to vector<8x1xf32>
    %26 = vector.broadcast %25 : vector<8x1xf32> to vector<8x128xf32>
    %27 = vector.shape_cast %24 : vector<8x1xf32> to vector<8x1xf32>
    %28 = vector.broadcast %27 : vector<8x1xf32> to vector<8x128xf32>
    %29 = vector.extract_strided_slice %5 {offsets = [0, 0], sizes = [8, 128], strides = [1, 1]} : vector<8x512xf32> to vector<8x128xf32>
    %30 = arith.mulf %29, %26 : vector<8x128xf32>
    %31 = arith.addf %30, %28 : vector<8x128xf32>
    %cst_14 = arith.constant 0.000000e+00 : f32
    %32 = vector.broadcast %cst_14 : f32 to vector<8x128xf32>
    %33 = arith.cmpf oge, %31, %32 : vector<8x128xf32>
    %cst_15 = arith.constant 1.000000e-01 : f32
    %34 = vector.broadcast %cst_15 : f32 to vector<8x128xf32>
    %35 = arith.mulf %34, %31 : vector<8x128xf32>
    %36 = arith.select %33, %31, %35 : vector<8x128xi1>, vector<8x128xf32>
    %c0_16 = arith.constant 0 : index
    %c0_17 = arith.constant 0 : index
    %37 = memref.load %arg5[%c0_16, %c0_17] : memref<2x4xf32, #tpu.memory_space<smem>>
    %38 = vector.broadcast %37 : f32 to vector<8x128xf32>
    %39 = arith.mulf %36, %38 : vector<8x128xf32>
    %c1 = arith.constant 1 : index
    %c0_18 = arith.constant 0 : index
    %40 = memref.load %arg5[%c1, %c0_18] : memref<2x4xf32, #tpu.memory_space<smem>>
    %41 = vector.broadcast %40 : f32 to vector<8x128xf32>
    %42 = arith.mulf %36, %41 : vector<8x128xf32>
    %43 = vector.extract_strided_slice %5 {offsets = [0, 128], sizes = [8, 128], strides = [1, 1]} : vector<8x512xf32> to vector<8x128xf32>
    %44 = arith.mulf %43, %26 : vector<8x128xf32>
    %45 = arith.addf %44, %28 : vector<8x128xf32>
    %cst_19 = arith.constant 0.000000e+00 : f32
    %46 = vector.broadcast %cst_19 : f32 to vector<8x128xf32>
    %47 = arith.cmpf oge, %45, %46 : vector<8x128xf32>
    %cst_20 = arith.constant 1.000000e-01 : f32
    %48 = vector.broadcast %cst_20 : f32 to vector<8x128xf32>
    %49 = arith.mulf %48, %45 : vector<8x128xf32>
    %50 = arith.select %47, %45, %49 : vector<8x128xi1>, vector<8x128xf32>
    %c0_21 = arith.constant 0 : index
    %c1_22 = arith.constant 1 : index
    %51 = memref.load %arg5[%c0_21, %c1_22] : memref<2x4xf32, #tpu.memory_space<smem>>
    %52 = vector.broadcast %51 : f32 to vector<8x128xf32>
    %53 = arith.mulf %50, %52 : vector<8x128xf32>
    %54 = arith.addf %39, %53 : vector<8x128xf32>
    %c1_23 = arith.constant 1 : index
    %c1_24 = arith.constant 1 : index
    %55 = memref.load %arg5[%c1_23, %c1_24] : memref<2x4xf32, #tpu.memory_space<smem>>
    %56 = vector.broadcast %55 : f32 to vector<8x128xf32>
    %57 = arith.mulf %50, %56 : vector<8x128xf32>
    %58 = arith.addf %42, %57 : vector<8x128xf32>
    %59 = vector.extract_strided_slice %5 {offsets = [0, 256], sizes = [8, 128], strides = [1, 1]} : vector<8x512xf32> to vector<8x128xf32>
    %60 = arith.mulf %59, %26 : vector<8x128xf32>
    %61 = arith.addf %60, %28 : vector<8x128xf32>
    %cst_25 = arith.constant 0.000000e+00 : f32
    %62 = vector.broadcast %cst_25 : f32 to vector<8x128xf32>
    %63 = arith.cmpf oge, %61, %62 : vector<8x128xf32>
    %cst_26 = arith.constant 1.000000e-01 : f32
    %64 = vector.broadcast %cst_26 : f32 to vector<8x128xf32>
    %65 = arith.mulf %64, %61 : vector<8x128xf32>
    %66 = arith.select %63, %61, %65 : vector<8x128xi1>, vector<8x128xf32>
    %c0_27 = arith.constant 0 : index
    %c2 = arith.constant 2 : index
    %67 = memref.load %arg5[%c0_27, %c2] : memref<2x4xf32, #tpu.memory_space<smem>>
    %68 = vector.broadcast %67 : f32 to vector<8x128xf32>
    %69 = arith.mulf %66, %68 : vector<8x128xf32>
    %70 = arith.addf %54, %69 : vector<8x128xf32>
    %c1_28 = arith.constant 1 : index
    %c2_29 = arith.constant 2 : index
    %71 = memref.load %arg5[%c1_28, %c2_29] : memref<2x4xf32, #tpu.memory_space<smem>>
    %72 = vector.broadcast %71 : f32 to vector<8x128xf32>
    %73 = arith.mulf %66, %72 : vector<8x128xf32>
    %74 = arith.addf %58, %73 : vector<8x128xf32>
    %75 = vector.extract_strided_slice %5 {offsets = [0, 384], sizes = [8, 128], strides = [1, 1]} : vector<8x512xf32> to vector<8x128xf32>
    %76 = arith.mulf %75, %26 : vector<8x128xf32>
    %77 = arith.addf %76, %28 : vector<8x128xf32>
    %cst_30 = arith.constant 0.000000e+00 : f32
    %78 = vector.broadcast %cst_30 : f32 to vector<8x128xf32>
    %79 = arith.cmpf oge, %77, %78 : vector<8x128xf32>
    %cst_31 = arith.constant 1.000000e-01 : f32
    %80 = vector.broadcast %cst_31 : f32 to vector<8x128xf32>
    %81 = arith.mulf %80, %77 : vector<8x128xf32>
    %82 = arith.select %79, %77, %81 : vector<8x128xi1>, vector<8x128xf32>
    %c0_32 = arith.constant 0 : index
    %c3 = arith.constant 3 : index
    %83 = memref.load %arg5[%c0_32, %c3] : memref<2x4xf32, #tpu.memory_space<smem>>
    %84 = vector.broadcast %83 : f32 to vector<8x128xf32>
    %85 = arith.mulf %82, %84 : vector<8x128xf32>
    %86 = arith.addf %70, %85 : vector<8x128xf32>
    %c1_33 = arith.constant 1 : index
    %c3_34 = arith.constant 3 : index
    %87 = memref.load %arg5[%c1_33, %c3_34] : memref<2x4xf32, #tpu.memory_space<smem>>
    %88 = vector.broadcast %87 : f32 to vector<8x128xf32>
    %89 = arith.mulf %82, %88 : vector<8x128xf32>
    %90 = arith.addf %74, %89 : vector<8x128xf32>
    %c0_35 = arith.constant 0 : index
    %91 = memref.load %arg6[%c0_35] : memref<2xf32, #tpu.memory_space<smem>>
    %92 = vector.broadcast %91 : f32 to vector<8x128xf32>
    %93 = arith.addf %86, %92 : vector<8x128xf32>
    %cst_36 = arith.constant 0.000000e+00 : f32
    %94 = vector.broadcast %cst_36 : f32 to vector<8x128xf32>
    %95 = arith.cmpf oge, %93, %94 : vector<8x128xf32>
    %cst_37 = arith.constant 1.000000e-01 : f32
    %96 = vector.broadcast %cst_37 : f32 to vector<8x128xf32>
    %97 = arith.mulf %96, %93 : vector<8x128xf32>
    %98 = arith.select %95, %93, %97 : vector<8x128xi1>, vector<8x128xf32>
    %99 = arith.truncf %98 : vector<8x128xf32> to vector<8x128xbf16>
    %c0_38 = arith.constant 0 : index
    %c0_39 = arith.constant 0 : index
    %100 = vector.load %arg7[%c0_38, %c0_39] : memref<8x256xbf16, #tpu.memory_space<vmem>>, vector<8x128xbf16>
    tpu.vector_store %arg7[%c0_38, %c0_39], %99 {strides = array<i32>} : memref<8x256xbf16, #tpu.memory_space<vmem>>, vector<8x128xbf16>,
    %c1_40 = arith.constant 1 : index
    %101 = memref.load %arg6[%c1_40] : memref<2xf32, #tpu.memory_space<smem>>
    %102 = vector.broadcast %101 : f32 to vector<8x128xf32>
    %103 = arith.addf %90, %102 : vector<8x128xf32>
    %cst_41 = arith.constant 0.000000e+00 : f32
    %104 = vector.broadcast %cst_41 : f32 to vector<8x128xf32>
    %105 = arith.cmpf oge, %103, %104 : vector<8x128xf32>
    %cst_42 = arith.constant 1.000000e-01 : f32
    %106 = vector.broadcast %cst_42 : f32 to vector<8x128xf32>
    %107 = arith.mulf %106, %103 : vector<8x128xf32>
    %108 = arith.select %105, %103, %107 : vector<8x128xi1>, vector<8x128xf32>
    %109 = arith.truncf %108 : vector<8x128xf32> to vector<8x128xbf16>
    %c0_43 = arith.constant 0 : index
    %c128 = arith.constant 128 : index
    %110 = vector.load %arg7[%c0_43, %c128] : memref<8x256xbf16, #tpu.memory_space<vmem>>, vector<8x128xbf16>
    tpu.vector_store %arg7[%c0_43, %c128], %109 {strides = array<i32>} : memref<8x256xbf16, #tpu.memory_space<vmem>>, vector<8x128xbf16>,
    return
  }
}

module attributes {stable_mosaic.version = 11 : i64} {
  func.func @_st_block_kernel(%arg0: memref<200x64xbf16, #tpu.memory_space<vmem>>, %arg1: memref<4x200xbf16, #tpu.memory_space<vmem>>, %arg2: memref<4x1xf32, #tpu.memory_space<vmem>>, %arg3: memref<4x1xf32, #tpu.memory_space<vmem>>, %arg4: memref<4x1xf32, #tpu.memory_space<vmem>>, %arg5: memref<1x2xf32, #tpu.memory_space<smem>>, %arg6: memref<1xf32, #tpu.memory_space<smem>>, %arg7: memref<4x32xf32, #tpu.memory_space<vmem>>) attributes {dimension_semantics = [], scalar_prefetch = 0 : i64, scratch_operands = 0 : i64, tpu.core_type = #tpu.core_type<tc>} {
    %c0 = arith.constant 0 : index
    %c0_0 = arith.constant 0 : index
    %0 = vector.load %arg1[%c0, %c0_0] : memref<4x200xbf16, #tpu.memory_space<vmem>>, vector<4x200xbf16>
    %c0_1 = arith.constant 0 : index
    %c0_2 = arith.constant 0 : index
    %1 = vector.load %arg0[%c0_1, %c0_2] : memref<200x64xbf16, #tpu.memory_space<vmem>>, vector<200x64xbf16>
    %cst = arith.constant dense<0.000000e+00> : vector<4x64xf32>
    %2 = tpu.matmul %0, %1, %cst {dimension_numbers = #tpu.dot_dimension_numbers<[1], [0], [0], [1], [0, 0, 1, 1], [], []>} : vector<4x200xbf16>, vector<200x64xbf16>, vector<4x64xf32> -> vector<4x64xf32>
    %c0_3 = arith.constant 0 : index
    %c0_4 = arith.constant 0 : index
    %3 = vector.load %arg2[%c0_3, %c0_4] : memref<4x1xf32, #tpu.memory_space<vmem>>, vector<4x1xf32>
    %4 = vector.broadcast %3 : vector<4x1xf32> to vector<4x64xf32>
    %5 = arith.addf %2, %4 : vector<4x64xf32>
    %cst_5 = arith.constant dense<0.000000e+00> : vector<4xf32>
    %6 = vector.multi_reduction <add>, %5, %cst_5 [1] : vector<4x64xf32> to vector<4xf32>
    %7 = vector.shape_cast %6 : vector<4xf32> to vector<4x1xf32>
    %cst_6 = arith.constant 1.562500e-02 : f32
    %8 = vector.broadcast %cst_6 : f32 to vector<4x1xf32>
    %9 = arith.mulf %7, %8 : vector<4x1xf32>
    %10 = vector.broadcast %9 : vector<4x1xf32> to vector<4x64xf32>
    %11 = arith.subf %5, %10 : vector<4x64xf32>
    %12 = arith.mulf %11, %11 : vector<4x64xf32>
    %cst_7 = arith.constant dense<0.000000e+00> : vector<4xf32>
    %13 = vector.multi_reduction <add>, %12, %cst_7 [1] : vector<4x64xf32> to vector<4xf32>
    %14 = vector.shape_cast %13 : vector<4xf32> to vector<4x1xf32>
    %cst_8 = arith.constant 1.562500e-02 : f32
    %15 = vector.broadcast %cst_8 : f32 to vector<4x1xf32>
    %16 = arith.mulf %14, %15 : vector<4x1xf32>
    %c0_9 = arith.constant 0 : index
    %c0_10 = arith.constant 0 : index
    %17 = vector.load %arg3[%c0_9, %c0_10] : memref<4x1xf32, #tpu.memory_space<vmem>>, vector<4x1xf32>
    %cst_11 = arith.constant 9.99999974E-6 : f32
    %18 = vector.broadcast %cst_11 : f32 to vector<4x1xf32>
    %19 = arith.addf %16, %18 : vector<4x1xf32>
    %20 = math.rsqrt %19 : vector<4x1xf32>
    %21 = arith.mulf %17, %20 : vector<4x1xf32>
    %c0_12 = arith.constant 0 : index
    %c0_13 = arith.constant 0 : index
    %22 = vector.load %arg4[%c0_12, %c0_13] : memref<4x1xf32, #tpu.memory_space<vmem>>, vector<4x1xf32>
    %23 = arith.mulf %9, %21 : vector<4x1xf32>
    %24 = arith.subf %22, %23 : vector<4x1xf32>
    %25 = vector.shape_cast %21 : vector<4x1xf32> to vector<4x1xf32>
    %26 = vector.broadcast %25 : vector<4x1xf32> to vector<4x32xf32>
    %27 = vector.shape_cast %24 : vector<4x1xf32> to vector<4x1xf32>
    %28 = vector.broadcast %27 : vector<4x1xf32> to vector<4x32xf32>
    %29 = vector.extract_strided_slice %5 {offsets = [0, 0], sizes = [4, 32], strides = [1, 1]} : vector<4x64xf32> to vector<4x32xf32>
    %30 = arith.mulf %29, %26 : vector<4x32xf32>
    %31 = arith.addf %30, %28 : vector<4x32xf32>
    %cst_14 = arith.constant 0.000000e+00 : f32
    %32 = vector.broadcast %cst_14 : f32 to vector<4x32xf32>
    %33 = arith.cmpf oge, %31, %32 : vector<4x32xf32>
    %cst_15 = arith.constant 1.000000e-01 : f32
    %34 = vector.broadcast %cst_15 : f32 to vector<4x32xf32>
    %35 = arith.mulf %34, %31 : vector<4x32xf32>
    %36 = arith.select %33, %31, %35 : vector<4x32xi1>, vector<4x32xf32>
    %c0_16 = arith.constant 0 : index
    %c0_17 = arith.constant 0 : index
    %37 = memref.load %arg5[%c0_16, %c0_17] : memref<1x2xf32, #tpu.memory_space<smem>>
    %38 = vector.broadcast %37 : f32 to vector<4x32xf32>
    %39 = arith.mulf %36, %38 : vector<4x32xf32>
    %40 = vector.extract_strided_slice %5 {offsets = [0, 32], sizes = [4, 32], strides = [1, 1]} : vector<4x64xf32> to vector<4x32xf32>
    %41 = arith.mulf %40, %26 : vector<4x32xf32>
    %42 = arith.addf %41, %28 : vector<4x32xf32>
    %cst_18 = arith.constant 0.000000e+00 : f32
    %43 = vector.broadcast %cst_18 : f32 to vector<4x32xf32>
    %44 = arith.cmpf oge, %42, %43 : vector<4x32xf32>
    %cst_19 = arith.constant 1.000000e-01 : f32
    %45 = vector.broadcast %cst_19 : f32 to vector<4x32xf32>
    %46 = arith.mulf %45, %42 : vector<4x32xf32>
    %47 = arith.select %44, %42, %46 : vector<4x32xi1>, vector<4x32xf32>
    %c0_20 = arith.constant 0 : index
    %c1 = arith.constant 1 : index
    %48 = memref.load %arg5[%c0_20, %c1] : memref<1x2xf32, #tpu.memory_space<smem>>
    %49 = vector.broadcast %48 : f32 to vector<4x32xf32>
    %50 = arith.mulf %47, %49 : vector<4x32xf32>
    %51 = arith.addf %39, %50 : vector<4x32xf32>
    %c0_21 = arith.constant 0 : index
    %52 = memref.load %arg6[%c0_21] : memref<1xf32, #tpu.memory_space<smem>>
    %53 = vector.broadcast %52 : f32 to vector<4x32xf32>
    %54 = arith.addf %51, %53 : vector<4x32xf32>
    %55 = math.tanh %54 : vector<4x32xf32>
    %c0_22 = arith.constant 0 : index
    %c0_23 = arith.constant 0 : index
    %56 = vector.load %arg7[%c0_22, %c0_23] : memref<4x32xf32, #tpu.memory_space<vmem>>, vector<4x32xf32>
    tpu.vector_store %arg7[%c0_22, %c0_23], %55 {strides = array<i32>} : memref<4x32xf32, #tpu.memory_space<vmem>>, vector<4x32xf32>,
    return
  }
}

module attributes {stable_mosaic.version = 11 : i64} {
  func.func @_gaussian_kernel(%arg0: memref<2x64xf32, #tpu.memory_space<vmem>>, %arg1: memref<64x64xf32, #tpu.memory_space<vmem>>, %arg2: memref<1x64xf32, #tpu.memory_space<vmem>>, %arg3: memref<64x32xf32, #tpu.memory_space<vmem>>, %arg4: memref<1x32xf32, #tpu.memory_space<vmem>>, %arg5: memref<2x16xf32, #tpu.memory_space<vmem>>, %arg6: memref<2x16xf32, #tpu.memory_space<vmem>>, %arg7: memref<2x16xf32, #tpu.memory_space<vmem>>, %arg8: memref<2x16xf32, #tpu.memory_space<vmem>>) attributes {dimension_semantics = [], scalar_prefetch = 0 : i64, scratch_operands = 0 : i64, tpu.core_type = #tpu.core_type<tc>} {
    %c0 = arith.constant 0 : index
    %c0_0 = arith.constant 0 : index
    %0 = vector.load %arg0[%c0, %c0_0] : memref<2x64xf32, #tpu.memory_space<vmem>>, vector<2x64xf32>
    %c0_1 = arith.constant 0 : index
    %c0_2 = arith.constant 0 : index
    %1 = vector.load %arg1[%c0_1, %c0_2] : memref<64x64xf32, #tpu.memory_space<vmem>>, vector<64x64xf32>
    %cst = arith.constant dense<0.000000e+00> : vector<2x64xf32>
    %2 = tpu.matmul %0, %1, %cst {dimension_numbers = #tpu.dot_dimension_numbers<[1], [0], [0], [1], [0, 0, 1, 1], [], []>} : vector<2x64xf32>, vector<64x64xf32>, vector<2x64xf32> -> vector<2x64xf32>
    %c0_3 = arith.constant 0 : index
    %c0_4 = arith.constant 0 : index
    %3 = vector.load %arg2[%c0_3, %c0_4] : memref<1x64xf32, #tpu.memory_space<vmem>>, vector<1x64xf32>
    %4 = vector.broadcast %3 : vector<1x64xf32> to vector<2x64xf32>
    %5 = arith.addf %2, %4 : vector<2x64xf32>
    %cst_5 = arith.constant 0.000000e+00 : f32
    %6 = vector.broadcast %cst_5 : f32 to vector<2x64xf32>
    %7 = arith.cmpf oge, %5, %6 : vector<2x64xf32>
    %cst_6 = arith.constant 1.000000e-01 : f32
    %8 = vector.broadcast %cst_6 : f32 to vector<2x64xf32>
    %9 = arith.mulf %8, %5 : vector<2x64xf32>
    %10 = arith.select %7, %5, %9 : vector<2x64xi1>, vector<2x64xf32>
    %c0_7 = arith.constant 0 : index
    %c0_8 = arith.constant 0 : index
    %11 = vector.load %arg3[%c0_7, %c0_8] : memref<64x32xf32, #tpu.memory_space<vmem>>, vector<64x32xf32>
    %cst_9 = arith.constant dense<0.000000e+00> : vector<2x32xf32>
    %12 = tpu.matmul %10, %11, %cst_9 {dimension_numbers = #tpu.dot_dimension_numbers<[1], [0], [0], [1], [0, 0, 1, 1], [], []>} : vector<2x64xf32>, vector<64x32xf32>, vector<2x32xf32> -> vector<2x32xf32>
    %c0_10 = arith.constant 0 : index
    %c0_11 = arith.constant 0 : index
    %13 = vector.load %arg4[%c0_10, %c0_11] : memref<1x32xf32, #tpu.memory_space<vmem>>, vector<1x32xf32>
    %14 = vector.broadcast %13 : vector<1x32xf32> to vector<2x32xf32>
    %15 = arith.addf %12, %14 : vector<2x32xf32>
    %16 = vector.extract_strided_slice %15 {offsets = [0, 0], sizes = [2, 16], strides = [1, 1]} : vector<2x32xf32> to vector<2x16xf32>
    %17 = vector.extract_strided_slice %15 {offsets = [0, 16], sizes = [2, 16], strides = [1, 1]} : vector<2x32xf32> to vector<2x16xf32>
    %cst_12 = arith.constant -1.000000e+02 : f32
    %cst_13 = arith.constant 8.500000e+01 : f32
    %18 = vector.broadcast %cst_12 : f32 to vector<2x16xf32>
    %19 = arith.maximumf %18, %16 : vector<2x16xf32>
    %20 = vector.broadcast %cst_13 : f32 to vector<2x16xf32>
    %21 = arith.minimumf %20, %19 : vector<2x16xf32>
    %cst_14 = arith.constant -1.000000e+02 : f32
    %cst_15 = arith.constant 8.500000e+01 : f32
    %22 = vector.broadcast %cst_14 : f32 to vector<2x16xf32>
    %23 = arith.maximumf %22, %17 : vector<2x16xf32>
    %24 = vector.broadcast %cst_15 : f32 to vector<2x16xf32>
    %25 = arith.minimumf %24, %23 : vector<2x16xf32>
    %26 = math.tanh %25 : vector<2x16xf32>
    %c0_16 = arith.constant 0 : index
    %c0_17 = arith.constant 0 : index
    %27 = vector.load %arg6[%c0_16, %c0_17] : memref<2x16xf32, #tpu.memory_space<vmem>>, vector<2x16xf32>
    tpu.vector_store %arg6[%c0_16, %c0_17], %21 {strides = array<i32>} : memref<2x16xf32, #tpu.memory_space<vmem>>, vector<2x16xf32>,
    %c0_18 = arith.constant 0 : index
    %c0_19 = arith.constant 0 : index
    %28 = vector.load %arg7[%c0_18, %c0_19] : memref<2x16xf32, #tpu.memory_space<vmem>>, vector<2x16xf32>
    tpu.vector_store %arg7[%c0_18, %c0_19], %26 {strides = array<i32>} : memref<2x16xf32, #tpu.memory_space<vmem>>, vector<2x16xf32>,
    %c0_20 = arith.constant 0 : index
    %c0_21 = arith.constant 0 : index
    %29 = vector.load %arg5[%c0_20, %c0_21] : memref<2x16xf32, #tpu.memory_space<vmem>>, vector<2x16xf32>
    %cst_22 = arith.constant 5.000000e-01 : f32
    %30 = vector.broadcast %cst_22 : f32 to vector<2x16xf32>
    %31 = arith.mulf %30, %26 : vector<2x16xf32>
    %32 = math.exp %31 : vector<2x16xf32>
    %33 = arith.mulf %29, %32 : vector<2x16xf32>
    %34 = arith.addf %21, %33 : vector<2x16xf32>
    %c0_23 = arith.constant 0 : index
    %c0_24 = arith.constant 0 : index
    %35 = vector.load %arg8[%c0_23, %c0_24] : memref<2x16xf32, #tpu.memory_space<vmem>>, vector<2x16xf32>
    tpu.vector_store %arg8[%c0_23, %c0_24], %34 {strides = array<i32>} : memref<2x16xf32, #tpu.memory_space<vmem>>, vector<2x16xf32>,
    return
  }
}

</mosaic_0001>

<llo_original>
// kernel: forward.4
$region0: #{forward.4}
  #allocation0 [shape = 'u32[]', space=smem, size = 0x4, offset = 0x4, fixed_abs, tag = 'smem constant byte address 0x4 - core index']
  #allocation1 [shape = 'u32[144,128]{1,0:T(1,128)}', space=vmem, size = 0x12000, scoped, tag = 'internal scratch']
  %s0 = inlined_call_operand.vmem [shape: bf16[25,4096], index: 0, kind: input, shape index: {}]
  %s1 = inlined_call_operand.vmem [shape: bf16[4,25], index: 1, kind: input, shape index: {}]
  %s2 = inlined_call_operand.vmem [shape: f32[4,1], index: 2, kind: input, shape index: {}]
  %s3 = inlined_call_operand.vmem [shape: f32[4,1], index: 3, kind: input, shape index: {}]
  %s4 = inlined_call_operand.vmem [shape: f32[4,1], index: 4, kind: input, shape index: {}]
  %s5 = inlined_call_operand.vmem [shape: f32[4,8], index: 5, kind: input, shape index: {}]
  %s6 = inlined_call_operand.vmem [shape: f32[4], index: 6, kind: input, shape index: {}]
  %s7 = inlined_call_operand.vmem [shape: bf16[4,2048], index: 7, kind: output, shape index: {}]
  %s8 = sld [smem:[#allocation0]]
  $region46: #{forward.4} parent=0
    _
  %s10 = ssub.s32 1, %s8
  %s11 = scalar_select 0, %s10, %s8
  $region1: #{forward.4} parent=0
    #allocation2 [shape = 'u8[2048]{0}', space=smem, size = 0x800, scoped, tag = 'input window, operand 5, single buffered']
    #allocation3 [shape = 's32[1]{0}', space=sflag, size = 0x4, scoped, tag = 'scoped memory for forward.4']
    #allocation4 [shape = 'u8[512]{0}', space=smem, size = 0x200, scoped, tag = 'input window, operand 6, single buffered']
    #allocation5 [shape = 's32[1]{0}', space=sflag, size = 0x4, scoped, tag = 'scoped memory for forward.4']
    %12 = vsyncpa [#allocation3], 0
    %13 = vsyncpa [#allocation5], 0
    // Predicated region
    $region2: #{forward.4} parent=1 // pred_check
      _
    $region3: #{forward.4} parent=1 // pred_check_branch
      %15 = sbr.rel (0) target = $region5
    $region4: #{forward.4} parent=1 // pred_region
      _
    $region5: #{forward.4} parent=1 // pred_fallthru
      _
    // Predicated region
    $region6: #{forward.4} parent=1 // pred_check
      _
    $region7: #{forward.4} parent=1 // pred_check_branch
      %17 = sbr.rel (0) target = $region9
    $region8: #{forward.4} parent=1 // pred_region
      _
    $region9: #{forward.4} parent=1 // pred_fallthru
      _
    // Predicated region
    $region10: #{forward.4} parent=1 // pred_check
      _
    $region11: #{forward.4} parent=1 // pred_check_branch
      %19 = sbr.rel (0) target = $region13
    $region12: #{forward.4} parent=1 // pred_region
      _
    $region13: #{forward.4} parent=1 // pred_fallthru
      _
    // Predicated region
    $region14: #{forward.4} parent=1 // pred_check
      _
    $region15: #{forward.4} parent=1 // pred_check_branch
      %21 = sbr.rel (0) target = $region17
    $region16: #{forward.4} parent=1 // pred_region
      _
    $region17: #{forward.4} parent=1 // pred_fallthru
      _
    // Predicated region
    $region18: #{forward.4} parent=1 // pred_check
      _
    $region19: #{forward.4} parent=1 // pred_check_branch
      %23 = sbr.rel (0) target = $region21
    $region20: #{forward.4} parent=1 // pred_region
      _
    $region21: #{forward.4} parent=1 // pred_fallthru
      _
    // Predicated region
    $region22: #{forward.4} parent=1 // pred_check
      _
    $region23: #{forward.4} parent=1 // pred_check_branch
      %25 = sbr.rel (0) target = $region25
    $region24: #{forward.4} parent=1 // pred_region
      %s27 = ssub.s32 64, 64
      %28 = vsyncadd [#allocation3], %s27
      %s30 = sshll.u32 %s5, 4
      %s31 = int_to_ptr.vmem [resolvable:$true] %s30
      %33 = dma.vmem_to_smem %s31, 64, [#allocation2], [#allocation3]
    $region25: #{forward.4} parent=1 // pred_fallthru
      _
    // Predicated region
    $region26: #{forward.4} parent=1 // pred_check
      _
    $region27: #{forward.4} parent=1 // pred_check_branch
      %35 = sbr.rel (0) target = $region29
    $region28: #{forward.4} parent=1 // pred_region
      %s37 = ssub.s32 16, 16
      %38 = vsyncadd [#allocation5], %s37
      %s40 = sshll.u32 %s6, 4
      %s41 = int_to_ptr.vmem [resolvable:$true] %s40
      %43 = dma.vmem_to_smem %s41, 16, [#allocation4], [#allocation5]
    $region29: #{forward.4} parent=1 // pred_fallthru
      _
    // Predicated region
    $region30: #{forward.4} parent=1 // pred_check
      _
    $region31: #{forward.4} parent=1 // pred_check_branch
      %45 = sbr.rel (0) target = $region33
    $region32: #{forward.4} parent=1 // pred_region
      %46 = dma.done [#allocation3], 64
    $region33: #{forward.4} parent=1 // pred_fallthru
      _
    // Predicated region
    $region34: #{forward.4} parent=1 // pred_check
      _
    $region35: #{forward.4} parent=1 // pred_check_branch
      %48 = sbr.rel (0) target = $region37
    $region36: #{forward.4} parent=1 // pred_region
      %49 = dma.done [#allocation5], 16
    $region37: #{forward.4} parent=1 // pred_fallthru
      _
    %50 = sfence
    %v52 = vld [vmem:[%s1] sm:$0x3]
    %v53 = vld [vmem:[%s0] sm:$0xff]
    %v54 = vld [vmem:[%s0 + $0x8] sm:$0xff]
    %v55 = vld [vmem:[%s0 + $0x10] sm:$0xff]
    %v56 = vld [vmem:[%s0 + $0x18] sm:$0xff]
    %v57 = vld [vmem:[%s0 + $0x20] sm:$0xff]
    %v58 = vld [vmem:[%s0 + $0x28] sm:$0xff]
    %v59 = vld [vmem:[%s0 + $0x30] sm:$0xff]
    %v60 = vld [vmem:[%s0 + $0x38] sm:$0xff]
    %v61 = vld [vmem:[%s0 + $0x40] sm:$0xff]
    %v62 = vld [vmem:[%s0 + $0x48] sm:$0xff]
    %v63 = vld [vmem:[%s0 + $0x50] sm:$0xff]
    %v64 = vld [vmem:[%s0 + $0x58] sm:$0xff]
    %v65 = vld [vmem:[%s0 + $0x60] sm:$0xff]
    %v66 = vld [vmem:[%s0 + $0x68] sm:$0xff]
    %v67 = vld [vmem:[%s0 + $0x70] sm:$0xff]
    %v68 = vld [vmem:[%s0 + $0x78] sm:$0xff]
    %v69 = vld [vmem:[%s0 + $0x80] sm:$0xff]
    %v70 = vld [vmem:[%s0 + $0x88] sm:$0xff]
    %v71 = vld [vmem:[%s0 + $0x90] sm:$0xff]
    %v72 = vld [vmem:[%s0 + $0x98] sm:$0xff]
    %v73 = vld [vmem:[%s0 + $0xa0] sm:$0xff]
    %v74 = vld [vmem:[%s0 + $0xa8] sm:$0xff]
    %v75 = vld [vmem:[%s0 + $0xb0] sm:$0xff]
    %v76 = vld [vmem:[%s0 + $0xb8] sm:$0xff]
    %v77 = vld [vmem:[%s0 + $0xc0] sm:$0xff]
    %v78 = vld [vmem:[%s0 + $0xc8] sm:$0xff]
    %v79 = vld [vmem:[%s0 + $0xd0] sm:$0xff]
    %v80 = vld [vmem:[%s0 + $0xd8] sm:$0xff]
    %v81 = vld [vmem:[%s0 + $0xe0] sm:$0xff]
    %v82 = vld [vmem:[%s0 + $0xe8] sm:$0xff]
    %v83 = vld [vmem:[%s0 + $0xf0] sm:$0xff]
    %v84 = vld [vmem:[%s0 + $0xf8] sm:$0xff]
    %v85 = vld [vmem:[%s0 + $0x100] sm:$0xff]
    %v86 = vld [vmem:[%s0 + $0x108] sm:$0xff]
    %v87 = vld [vmem:[%s0 + $0x110] sm:$0xff]
    %v88 = vld [vmem:[%s0 + $0x118] sm:$0xff]
    %v89 = vld [vmem:[%s0 + $0x120] sm:$0xff]
    %v90 = vld [vmem:[%s0 + $0x128] sm:$0xff]
    %v91 = vld [vmem:[%s0 + $0x130] sm:$0xff]
    %v92 = vld [vmem:[%s0 + $0x138] sm:$0xff]
    %v93 = vld [vmem:[%s0 + $0x140] sm:$0xff]
    %v94 = vld [vmem:[%s0 + $0x148] sm:$0xff]
    %v95 = vld [vmem:[%s0 + $0x150] sm:$0xff]
    %v96 = vld [vmem:[%s0 + $0x158] sm:$0xff]
    %v97 = vld [vmem:[%s0 + $0x160] sm:$0xff]
    %v98 = vld [vmem:[%s0 + $0x168] sm:$0xff]
    %v99 = vld [vmem:[%s0 + $0x170] sm:$0xff]
    %v100 = vld [vmem:[%s0 + $0x178] sm:$0xff]
    %v101 = vld [vmem:[%s0 + $0x180] sm:$0x11]
    %v102 = vld [vmem:[%s0 + $0x188] sm:$0x11]
    %v103 = vld [vmem:[%s0 + $0x190] sm:$0x11]
    %v104 = vld [vmem:[%s0 + $0x198] sm:$0x11]
    %v105 = vld [vmem:[%s0 + $0x1a0] sm:$0x11]
    %v106 = vld [vmem:[%s0 + $0x1a8] sm:$0x11]
    %v107 = vld [vmem:[%s0 + $0x1b0] sm:$0x11]
    %v108 = vld [vmem:[%s0 + $0x1b8] sm:$0x11]
    %v109 = vld [vmem:[%s0 + $0x1c0] sm:$0x11]
    %v110 = vld [vmem:[%s0 + $0x1c8] sm:$0x11]
    %v111 = vld [vmem:[%s0 + $0x1d0] sm:$0x11]
    %v112 = vld [vmem:[%s0 + $0x1d8] sm:$0x11]
    %v113 = vld [vmem:[%s0 + $0x1e0] sm:$0x11]
    %v114 = vld [vmem:[%s0 + $0x1e8] sm:$0x11]
    %v115 = vld [vmem:[%s0 + $0x1f0] sm:$0x11]
    %v116 = vld [vmem:[%s0 + $0x1f8] sm:$0x11]
    %v117 = vld [vmem:[%s2] sm:$0xf]
    %119 = vset.pattern.permute.xlu0 0
    %120 = vperm.xlu0 %119, %v117
    %v121 = vpop.permute.xlu0 %120
    %v187 = vunpack.c.l.b16 %v53
    %v188 = vunpack.c.h.b16 %v53
    %v189 = vunpack.c.l.b16 %v54
    %v190 = vunpack.c.h.b16 %v54
    %v191 = vunpack.c.l.b16 %v55
    %v192 = vunpack.c.h.b16 %v55
    %v193 = vunpack.c.l.b16 %v56
    %v194 = vunpack.c.h.b16 %v56
    %v195 = vunpack.c.l.b16 %v57
    %v196 = vunpack.c.h.b16 %v57
    %v197 = vunpack.c.l.b16 %v58
    %v198 = vunpack.c.h.b16 %v58
    %v199 = vunpack.c.l.b16 %v59
    %v200 = vunpack.c.h.b16 %v59
    %v201 = vunpack.c.l.b16 %v60
    %v202 = vunpack.c.h.b16 %v60
    %v203 = vunpack.c.l.b16 %v61
    %v204 = vunpack.c.h.b16 %v61
    %v205 = vunpack.c.l.b16 %v62
    %v206 = vunpack.c.h.b16 %v62
    %v207 = vunpack.c.l.b16 %v63
    %v208 = vunpack.c.h.b16 %v63
    %v209 = vunpack.c.l.b16 %v64
    %v210 = vunpack.c.h.b16 %v64
    %v211 = vunpack.c.l.b16 %v65
    %v212 = vunpack.c.h.b16 %v65
    %v213 = vunpack.c.l.b16 %v66
    %v214 = vunpack.c.h.b16 %v66
    %v215 = vunpack.c.l.b16 %v67
    %v216 = vunpack.c.h.b16 %v67
    %v217 = vunpack.c.l.b16 %v68
    %v218 = vunpack.c.h.b16 %v68
    %v219 = vunpack.c.l.b16 %v69
    %v220 = vunpack.c.h.b16 %v69
    %v221 = vunpack.c.l.b16 %v70
    %v222 = vunpack.c.h.b16 %v70
    %v223 = vunpack.c.l.b16 %v71
    %v224 = vunpack.c.h.b16 %v71
    %v225 = vunpack.c.l.b16 %v72
    %v226 = vunpack.c.h.b16 %v72
    %v227 = vunpack.c.l.b16 %v73
    %v228 = vunpack.c.h.b16 %v73
    %v229 = vunpack.c.l.b16 %v74
    %v230 = vunpack.c.h.b16 %v74
    %v231 = vunpack.c.l.b16 %v75
    %v232 = vunpack.c.h.b16 %v75
    %v233 = vunpack.c.l.b16 %v76
    %v234 = vunpack.c.h.b16 %v76
    %v235 = vunpack.c.l.b16 %v77
    %v236 = vunpack.c.h.b16 %v77
    %v237 = vunpack.c.l.b16 %v78
    %v238 = vunpack.c.h.b16 %v78
    %v239 = vunpack.c.l.b16 %v79
    %v240 = vunpack.c.h.b16 %v79
    %v241 = vunpack.c.l.b16 %v80
    %v242 = vunpack.c.h.b16 %v80
    %v243 = vunpack.c.l.b16 %v81
    %v244 = vunpack.c.h.b16 %v81
    %v245 = vunpack.c.l.b16 %v82
    %v246 = vunpack.c.h.b16 %v82
    %v247 = vunpack.c.l.b16 %v83
    %v248 = vunpack.c.h.b16 %v83
    %v249 = vunpack.c.l.b16 %v84
    %v250 = vunpack.c.h.b16 %v84
    %v251 = vunpack.c.l.b16 %v85
    %v252 = vunpack.c.h.b16 %v85
    %v253 = vunpack.c.l.b16 %v86
    %v254 = vunpack.c.h.b16 %v86
    %v255 = vunpack.c.l.b16 %v87
    %v256 = vunpack.c.h.b16 %v87
    %v257 = vunpack.c.l.b16 %v88
    %v258 = vunpack.c.h.b16 %v88
    %v259 = vunpack.c.l.b16 %v89
    %v260 = vunpack.c.h.b16 %v89
    %v261 = vunpack.c.l.b16 %v90
    %v262 = vunpack.c.h.b16 %v90
    %v263 = vunpack.c.l.b16 %v91
    %v264 = vunpack.c.h.b16 %v91
    %v265 = vunpack.c.l.b16 %v92
    %v266 = vunpack.c.h.b16 %v92
    %v267 = vunpack.c.l.b16 %v93
    %v268 = vunpack.c.h.b16 %v93
    %v269 = vunpack.c.l.b16 %v94
    %v270 = vunpack.c.h.b16 %v94
    %v271 = vunpack.c.l.b16 %v95
    %v272 = vunpack.c.h.b16 %v95
    %v273 = vunpack.c.l.b16 %v96
    %v274 = vunpack.c.h.b16 %v96
    %v275 = vunpack.c.l.b16 %v97
    %v276 = vunpack.c.h.b16 %v97
    %v277 = vunpack.c.l.b16 %v98
    %v278 = vunpack.c.h.b16 %v98
    %v279 = vunpack.c.l.b16 %v99
    %v280 = vunpack.c.h.b16 %v99
    %v281 = vunpack.c.l.b16 %v100
    %v282 = vunpack.c.h.b16 %v100
    %v283 = vunpack.c.l.b16 %v101
    %v284 = vunpack.c.h.b16 %v101
    %v285 = vunpack.c.l.b16 %v102
    %v286 = vunpack.c.h.b16 %v102
    %v287 = vunpack.c.l.b16 %v103
    %v288 = vunpack.c.h.b16 %v103
    %v289 = vunpack.c.l.b16 %v104
    %v290 = vunpack.c.h.b16 %v104
    %v291 = vunpack.c.l.b16 %v105
    %v292 = vunpack.c.h.b16 %v105
    %v293 = vunpack.c.l.b16 %v106
    %v294 = vunpack.c.h.b16 %v106
    %v295 = vunpack.c.l.b16 %v107
    %v296 = vunpack.c.h.b16 %v107
    %v297 = vunpack.c.l.b16 %v108
    %v298 = vunpack.c.h.b16 %v108
    %v299 = vunpack.c.l.b16 %v109
    %v300 = vunpack.c.h.b16 %v109
    %v301 = vunpack.c.l.b16 %v110
    %v302 = vunpack.c.h.b16 %v110
    %v303 = vunpack.c.l.b16 %v111
    %v304 = vunpack.c.h.b16 %v111
    %v305 = vunpack.c.l.b16 %v112
    %v306 = vunpack.c.h.b16 %v112
    %v307 = vunpack.c.l.b16 %v113
    %v308 = vunpack.c.h.b16 %v113
    %v309 = vunpack.c.l.b16 %v114
    %v310 = vunpack.c.h.b16 %v114
    %v311 = vunpack.c.l.b16 %v115
    %v312 = vunpack.c.h.b16 %v115
    %v313 = vunpack.c.l.b16 %v116
    %v314 = vunpack.c.h.b16 %v116
    %v315 = vpack.c.b16 %v219, %v187
    %v316 = vpack.c.b16 %v220, %v188
    %v317 = vpack.c.b16 %v221, %v189
    %v318 = vpack.c.b16 %v222, %v190
    %v319 = vpack.c.b16 %v223, %v191
    %v320 = vpack.c.b16 %v224, %v192
    %v321 = vpack.c.b16 %v225, %v193
    %v322 = vpack.c.b16 %v226, %v194
    %v323 = vpack.c.b16 %v227, %v195
    %v324 = vpack.c.b16 %v228, %v196
    %v325 = vpack.c.b16 %v229, %v197
    %v326 = vpack.c.b16 %v230, %v198
    %v327 = vpack.c.b16 %v231, %v199
    %v328 = vpack.c.b16 %v232, %v200
    %v329 = vpack.c.b16 %v233, %v201
    %v330 = vpack.c.b16 %v234, %v202
    %v331 = vpack.c.b16 %v235, %v203
    %v332 = vpack.c.b16 %v236, %v204
    %v333 = vpack.c.b16 %v237, %v205
    %v334 = vpack.c.b16 %v238, %v206
    %v335 = vpack.c.b16 %v239, %v207
    %v336 = vpack.c.b16 %v240, %v208
    %v337 = vpack.c.b16 %v241, %v209
    %v338 = vpack.c.b16 %v242, %v210
    %v339 = vpack.c.b16 %v243, %v211
    %v340 = vpack.c.b16 %v244, %v212
    %v341 = vpack.c.b16 %v245, %v213
    %v342 = vpack.c.b16 %v246, %v214
    %v343 = vpack.c.b16 %v247, %v215
    %v344 = vpack.c.b16 %v248, %v216
    %v345 = vpack.c.b16 %v249, %v217
    %v346 = vpack.c.b16 %v250, %v218
    %v347 = vpack.c.b16 %v283, %v251
    %v348 = vpack.c.b16 %v284, %v252
    %v349 = vpack.c.b16 %v285, %v253
    %v350 = vpack.c.b16 %v286, %v254
    %v351 = vpack.c.b16 %v287, %v255
    %v352 = vpack.c.b16 %v288, %v256
    %v353 = vpack.c.b16 %v289, %v257
    %v354 = vpack.c.b16 %v290, %v258
    %v355 = vpack.c.b16 %v291, %v259
    %v356 = vpack.c.b16 %v292, %v260
    %v357 = vpack.c.b16 %v293, %v261
    %v358 = vpack.c.b16 %v294, %v262
    %v359 = vpack.c.b16 %v295, %v263
    %v360 = vpack.c.b16 %v296, %v264
    %v361 = vpack.c.b16 %v297, %v265
    %v362 = vpack.c.b16 %v298, %v266
    %v363 = vpack.c.b16 %v299, %v267
    %v364 = vpack.c.b16 %v300, %v268
    %v365 = vpack.c.b16 %v301, %v269
    %v366 = vpack.c.b16 %v302, %v270
    %v367 = vpack.c.b16 %v303, %v271
    %v368 = vpack.c.b16 %v304, %v272
    %v369 = vpack.c.b16 %v305, %v273
    %v370 = vpack.c.b16 %v306, %v274
    %v371 = vpack.c.b16 %v307, %v275
    %v372 = vpack.c.b16 %v308, %v276
    %v373 = vpack.c.b16 %v309, %v277
    %v374 = vpack.c.b16 %v310, %v278
    %v375 = vpack.c.b16 %v311, %v279
    %v376 = vpack.c.b16 %v312, %v280
    %v377 = vpack.c.b16 %v313, %v281
    %v378 = vpack.c.b16 %v314, %v282
    %vm411 = vcmask 203776
    %v413 = vsel %vm411, %v52, 0
    %vm415 = vcmask 1043456
    %vm416 = vcmask 1044480
    %v417 = vsel %vm415, 4294967295, 65535
    %v418 = vsel %vm416, %v417, 0
    %v420 = vand.u32 %v347, %v418
    %v423 = vand.u32 %v348, %v418
    %v426 = vand.u32 %v349, %v418
    %v429 = vand.u32 %v350, %v418
    %v432 = vand.u32 %v351, %v418
    %v435 = vand.u32 %v352, %v418
    %v438 = vand.u32 %v353, %v418
    %v441 = vand.u32 %v354, %v418
    %v444 = vand.u32 %v355, %v418
    %v447 = vand.u32 %v356, %v418
    %v450 = vand.u32 %v357, %v418
    %v453 = vand.u32 %v358, %v418
    %v456 = vand.u32 %v359, %v418
    %v459 = vand.u32 %v360, %v418
    %v462 = vand.u32 %v361, %v418
    %v465 = vand.u32 %v362, %v418
    %v468 = vand.u32 %v363, %v418
    %v471 = vand.u32 %v364, %v418
    %v474 = vand.u32 %v365, %v418
    %v477 = vand.u32 %v366, %v418
    %v480 = vand.u32 %v367, %v418
    %v483 = vand.u32 %v368, %v418
    %v486 = vand.u32 %v369, %v418
    %v489 = vand.u32 %v370, %v418
    %v492 = vand.u32 %v371, %v418
    %v495 = vand.u32 %v372, %v418
    %v498 = vand.u32 %v373, %v418
    %v501 = vand.u32 %v374, %v418
    %v504 = vand.u32 %v375, %v418
    %v507 = vand.u32 %v376, %v418
    %v510 = vand.u32 %v377, %v418
    %v513 = vand.u32 %v378, %v418
    %515 = vmatprep.subr.bf16.mxu0 %v316
    %516 = vmatpush1.bf16.msra.mxu0 %v315
    %517 = vmatprep.subr.bf16.mxu0 %v423
    %518 = vmatpush1.bf16.msra.mxu0 %v420
    %519 = vmatprep.subr.bf16.mxu0 0
    %520 = vmatpush1.bf16.msra.mxu0 0
    %521 = vmatprep.subr.bf16.mxu0 0
    %522 = vmatpush1.bf16.msra.mxu0 0
    %523 = vmatprep.subr.bf16.mxu0 0
    %524 = vmatpush1.bf16.msra.mxu0 0
    %525 = vmatprep.subr.bf16.mxu0 0
    %526 = vmatpush1.bf16.msra.mxu0 0
    %527 = vmatprep.subr.bf16.mxu0 0
    %528 = vmatpush1.bf16.msra.mxu0 0
    %529 = vmatprep.subr.bf16.mxu0 0
    %530 = vmatpush1.bf16.msra.mxu0 0
    %531 = vmatprep.subr.bf16.mxu0 0
    %532 = vmatpush1.bf16.msra.mxu0 0
    %533 = vmatprep.subr.bf16.mxu0 0
    %534 = vmatpush1.bf16.msra.mxu0 0
    %535 = vmatprep.subr.bf16.mxu0 0
    %536 = vmatpush1.bf16.msra.mxu0 0
    %537 = vmatprep.subr.bf16.mxu0 0
    %538 = vmatpush1.bf16.msra.mxu0 0
    %539 = vmatprep.subr.bf16.mxu0 0
    %540 = vmatpush1.bf16.msra.mxu0 0
    %541 = vmatprep.subr.bf16.mxu0 0
    %542 = vmatpush1.bf16.msra.mxu0 0
    %543 = vmatprep.subr.bf16.mxu0 0
    %544 = vmatpush1.bf16.msra.mxu0 0
    %545 = vmatprep.subr.bf16.mxu0 0
    %546 = vmatpush1.bf16.msra.mxu0 0
    %547 = vmatprep.mubr.bf16.mxu0 0
    %548 = vmatmul.mubr.bf16.gmra.mrb[0].mxu0 %v413
    %v549 = vpop.f32.mrb[0].mxu0
    %v550 = vadd.f32 %v121, %v549
    %v551 = vpop.f32.mrb[0].mxu0
    %v552 = vadd.f32 %v121, %v551
    %v553 = vpop.f32.mrb[0].mxu0
    %v554 = vpop.f32.mrb[0].mxu0
    %555 = vdwg.mxu0
    %556 = vmatprep.subr.bf16.mxu0 %v318
    %557 = vmatpush1.bf16.msra.mxu0 %v317
    %558 = vmatprep.subr.bf16.mxu0 %v429
    %559 = vmatpush1.bf16.msra.mxu0 %v426
    %560 = vmatprep.subr.bf16.mxu0 0
    %561 = vmatpush1.bf16.msra.mxu0 0
    %562 = vmatprep.subr.bf16.mxu0 0
    %563 = vmatpush1.bf16.msra.mxu0 0
    %564 = vmatprep.subr.bf16.mxu0 0
    %565 = vmatpush1.bf16.msra.mxu0 0
    %566 = vmatprep.subr.bf16.mxu0 0
    %567 = vmatpush1.bf16.msra.mxu0 0
    %568 = vmatprep.subr.bf16.mxu0 0
    %569 = vmatpush1.bf16.msra.mxu0 0
    %570 = vmatprep.subr.bf16.mxu0 0
    %571 = vmatpush1.bf16.msra.mxu0 0
    %572 = vmatprep.subr.bf16.mxu0 0
    %573 = vmatpush1.bf16.msra.mxu0 0
    %574 = vmatprep.subr.bf16.mxu0 0
    %575 = vmatpush1.bf16.msra.mxu0 0
    %576 = vmatprep.subr.bf16.mxu0 0
    %577 = vmatpush1.bf16.msra.mxu0 0
    %578 = vmatprep.subr.bf16.mxu0 0
    %579 = vmatpush1.bf16.msra.mxu0 0
    %580 = vmatprep.subr.bf16.mxu0 0
    %581 = vmatpush1.bf16.msra.mxu0 0
    %582 = vmatprep.subr.bf16.mxu0 0
    %583 = vmatpush1.bf16.msra.mxu0 0
    %584 = vmatprep.subr.bf16.mxu0 0
    %585 = vmatpush1.bf16.msra.mxu0 0
    %586 = vmatprep.subr.bf16.mxu0 0
    %587 = vmatpush1.bf16.msra.mxu0 0
    %588 = vmatprep.mubr.bf16.mxu0 0
    %589 = vmatmul.mubr.bf16.gmra.mrb[0].mxu0 %v413
    %v590 = vpop.f32.mrb[0].mxu0
    %v591 = vadd.f32 %v121, %v590
    %v592 = vpop.f32.mrb[0].mxu0
    %v593 = vadd.f32 %v121, %v592
    %v594 = vpop.f32.mrb[0].mxu0
    %v595 = vpop.f32.mrb[0].mxu0
    %596 = vdwg.mxu0
    %597 = vmatprep.subr.bf16.mxu0 %v320
    %598 = vmatpush1.bf16.msra.mxu0 %v319
    %599 = vmatprep.subr.bf16.mxu0 %v435
    %600 = vmatpush1.bf16.msra.mxu0 %v432
    %601 = vmatprep.subr.bf16.mxu0 0
    %602 = vmatpush1.bf16.msra.mxu0 0
    %603 = vmatprep.subr.bf16.mxu0 0
    %604 = vmatpush1.bf16.msra.mxu0 0
    %605 = vmatprep.subr.bf16.mxu0 0
    %606 = vmatpush1.bf16.msra.mxu0 0
    %607 = vmatprep.subr.bf16.mxu0 0
    %608 = vmatpush1.bf16.msra.mxu0 0
    %609 = vmatprep.subr.bf16.mxu0 0
    %610 = vmatpush1.bf16.msra.mxu0 0
    %611 = vmatprep.subr.bf16.mxu0 0
    %612 = vmatpush1.bf16.msra.mxu0 0
    %613 = vmatprep.subr.bf16.mxu0 0
    %614 = vmatpush1.bf16.msra.mxu0 0
    %615 = vmatprep.subr.bf16.mxu0 0
    %616 = vmatpush1.bf16.msra.mxu0 0
    %617 = vmatprep.subr.bf16.mxu0 0
    %618 = vmatpush1.bf16.msra.mxu0 0
    %619 = vmatprep.subr.bf16.mxu0 0
    %620 = vmatpush1.bf16.msra.mxu0 0
    %621 = vmatprep.subr.bf16.mxu0 0
    %622 = vmatpush1.bf16.msra.mxu0 0
    %623 = vmatprep.subr.bf16.mxu0 0
    %624 = vmatpush1.bf16.msra.mxu0 0
    %625 = vmatprep.subr.bf16.mxu0 0
    %626 = vmatpush1.bf16.msra.mxu0 0
    %627 = vmatprep.subr.bf16.mxu0 0
    %628 = vmatpush1.bf16.msra.mxu0 0
    %629 = vmatprep.mubr.bf16.mxu0 0
    %630 = vmatmul.mubr.bf16.gmra.mrb[0].mxu0 %v413
    %v631 = vpop.f32.mrb[0].mxu0
    %v632 = vadd.f32 %v121, %v631
    %v633 = vpop.f32.mrb[0].mxu0
    %v634 = vadd.f32 %v121, %v633
    %v635 = vpop.f32.mrb[0].mxu0
    %v636 = vpop.f32.mrb[0].mxu0
    %637 = vdwg.mxu0
    %638 = vmatprep.subr.bf16.mxu0 %v322
    %639 = vmatpush1.bf16.msra.mxu0 %v321
    %640 = vmatprep.subr.bf16.mxu0 %v441
    %641 = vmatpush1.bf16.msra.mxu0 %v438
    %642 = vmatprep.subr.bf16.mxu0 0
    %643 = vmatpush1.bf16.msra.mxu0 0
    %644 = vmatprep.subr.bf16.mxu0 0
    %645 = vmatpush1.bf16.msra.mxu0 0
    %646 = vmatprep.subr.bf16.mxu0 0
    %647 = vmatpush1.bf16.msra.mxu0 0
    %648 = vmatprep.subr.bf16.mxu0 0
    %649 = vmatpush1.bf16.msra.mxu0 0
    %650 = vmatprep.subr.bf16.mxu0 0
    %651 = vmatpush1.bf16.msra.mxu0 0
    %652 = vmatprep.subr.bf16.mxu0 0
    %653 = vmatpush1.bf16.msra.mxu0 0
    %654 = vmatprep.subr.bf16.mxu0 0
    %655 = vmatpush1.bf16.msra.mxu0 0
    %656 = vmatprep.subr.bf16.mxu0 0
    %657 = vmatpush1.bf16.msra.mxu0 0
    %658 = vmatprep.subr.bf16.mxu0 0
    %659 = vmatpush1.bf16.msra.mxu0 0
    %660 = vmatprep.subr.bf16.mxu0 0
    %661 = vmatpush1.bf16.msra.mxu0 0
    %662 = vmatprep.subr.bf16.mxu0 0
    %663 = vmatpush1.bf16.msra.mxu0 0
    %664 = vmatprep.subr.bf16.mxu0 0
    %665 = vmatpush1.bf16.msra.mxu0 0
    %666 = vmatprep.subr.bf16.mxu0 0
    %667 = vmatpush1.bf16.msra.mxu0 0
    %668 = vmatprep.subr.bf16.mxu0 0
    %669 = vmatpush1.bf16.msra.mxu0 0
    %670 = vmatprep.mubr.bf16.mxu0 0
    %671 = vmatmul.mubr.bf16.gmra.mrb[0].mxu0 %v413
    %v672 = vpop.f32.mrb[0].mxu0
    %v673 = vadd.f32 %v121, %v672
    %v674 = vpop.f32.mrb[0].mxu0
    %v675 = vadd.f32 %v121, %v674
    %v676 = vpop.f32.mrb[0].mxu0
    %v677 = vpop.f32.mrb[0].mxu0
    %678 = vdwg.mxu0
    %679 = vmatprep.subr.bf16.mxu0 %v324
    %680 = vmatpush1.bf16.msra.mxu0 %v323
    %681 = vmatprep.subr.bf16.mxu0 %v447
    %682 = vmatpush1.bf16.msra.mxu0 %v444
    %683 = vmatprep.subr.bf16.mxu0 0
    %684 = vmatpush1.bf16.msra.mxu0 0
    %685 = vmatprep.subr.bf16.mxu0 0
    %686 = vmatpush1.bf16.msra.mxu0 0
    %687 = vmatprep.subr.bf16.mxu0 0
    %688 = vmatpush1.bf16.msra.mxu0 0
    %689 = vmatprep.subr.bf16.mxu0 0
    %690 = vmatpush1.bf16.msra.mxu0 0
    %691 = vmatprep.subr.bf16.mxu0 0
    %692 = vmatpush1.bf16.msra.mxu0 0
    %693 = vmatprep.subr.bf16.mxu0 0
    %694 = vmatpush1.bf16.msra.mxu0 0
    %695 = vmatprep.subr.bf16.mxu0 0
    %696 = vmatpush1.bf16.msra.mxu0 0
    %697 = vmatprep.subr.bf16.mxu0 0
    %698 = vmatpush1.bf16.msra.mxu0 0
    %699 = vmatprep.subr.bf16.mxu0 0
    %700 = vmatpush1.bf16.msra.mxu0 0
    %701 = vmatprep.subr.bf16.mxu0 0
    %702 = vmatpush1.bf16.msra.mxu0 0
    %703 = vmatprep.subr.bf16.mxu0 0
    %704 = vmatpush1.bf16.msra.mxu0 0
    %705 = vmatprep.subr.bf16.mxu0 0
    %706 = vmatpush1.bf16.msra.mxu0 0
    %707 = vmatprep.subr.bf16.mxu0 0
    %708 = vmatpush1.bf16.msra.mxu0 0
    %709 = vmatprep.subr.bf16.mxu0 0
    %710 = vmatpush1.bf16.msra.mxu0 0
    %711 = vmatprep.mubr.bf16.mxu0 0
    %712 = vmatmul.mubr.bf16.gmra.mrb[0].mxu0 %v413
    %v713 = vpop.f32.mrb[0].mxu0
    %v714 = vadd.f32 %v121, %v713
    %v715 = vpop.f32.mrb[0].mxu0
    %v716 = vadd.f32 %v121, %v715
    %v717 = vpop.f32.mrb[0].mxu0
    %v718 = vpop.f32.mrb[0].mxu0
    %719 = vdwg.mxu0
    %720 = vmatprep.subr.bf16.mxu0 %v326
    %721 = vmatpush1.bf16.msra.mxu0 %v325
    %722 = vmatprep.subr.bf16.mxu0 %v453
    %723 = vmatpush1.bf16.msra.mxu0 %v450
    %724 = vmatprep.subr.bf16.mxu0 0
    %725 = vmatpush1.bf16.msra.mxu0 0
    %726 = vmatprep.subr.bf16.mxu0 0
    %727 = vmatpush1.bf16.msra.mxu0 0
    %728 = vmatprep.subr.bf16.mxu0 0
    %729 = vmatpush1.bf16.msra.mxu0 0
    %730 = vmatprep.subr.bf16.mxu0 0
    %731 = vmatpush1.bf16.msra.mxu0 0
    %732 = vmatprep.subr.bf16.mxu0 0
    %733 = vmatpush1.bf16.msra.mxu0 0
    %734 = vmatprep.subr.bf16.mxu0 0
    %735 = vmatpush1.bf16.msra.mxu0 0
    %736 = vmatprep.subr.bf16.mxu0 0
    %737 = vmatpush1.bf16.msra.mxu0 0
    %738 = vmatprep.subr.bf16.mxu0 0
    %739 = vmatpush1.bf16.msra.mxu0 0
    %740 = vmatprep.subr.bf16.mxu0 0
    %741 = vmatpush1.bf16.msra.mxu0 0
    %742 = vmatprep.subr.bf16.mxu0 0
    %743 = vmatpush1.bf16.msra.mxu0 0
    %744 = vmatprep.subr.bf16.mxu0 0
    %745 = vmatpush1.bf16.msra.mxu0 0
    %746 = vmatprep.subr.bf16.mxu0 0
    %747 = vmatpush1.bf16.msra.mxu0 0
    %748 = vmatprep.subr.bf16.mxu0 0
    %749 = vmatpush1.bf16.msra.mxu0 0
    %750 = vmatprep.subr.bf16.mxu0 0
    %751 = vmatpush1.bf16.msra.mxu0 0
    %752 = vmatprep.mubr.bf16.mxu0 0
    %753 = vmatmul.mubr.bf16.gmra.mrb[0].mxu0 %v413
    %v754 = vpop.f32.mrb[0].mxu0
    %v755 = vadd.f32 %v121, %v754
    %v756 = vpop.f32.mrb[0].mxu0
    %v757 = vadd.f32 %v121, %v756
    %v758 = vpop.f32.mrb[0].mxu0
    %v759 = vpop.f32.mrb[0].mxu0
    %760 = vdwg.mxu0
    %761 = vmatprep.subr.bf16.mxu0 %v328
    %762 = vmatpush1.bf16.msra.mxu0 %v327
    %763 = vmatprep.subr.bf16.mxu0 %v459
    %764 = vmatpush1.bf16.msra.mxu0 %v456
    %765 = vmatprep.subr.bf16.mxu0 0
    %766 = vmatpush1.bf16.msra.mxu0 0
    %767 = vmatprep.subr.bf16.mxu0 0
    %768 = vmatpush1.bf16.msra.mxu0 0
    %769 = vmatprep.subr.bf16.mxu0 0
    %770 = vmatpush1.bf16.msra.mxu0 0
    %771 = vmatprep.subr.bf16.mxu0 0
    %772 = vmatpush1.bf16.msra.mxu0 0
    %773 = vmatprep.subr.bf16.mxu0 0
    %774 = vmatpush1.bf16.msra.mxu0 0
    %775 = vmatprep.subr.bf16.mxu0 0
    %776 = vmatpush1.bf16.msra.mxu0 0
    %777 = vmatprep.subr.bf16.mxu0 0
    %778 = vmatpush1.bf16.msra.mxu0 0
    %779 = vmatprep.subr.bf16.mxu0 0
    %780 = vmatpush1.bf16.msra.mxu0 0
    %781 = vmatprep.subr.bf16.mxu0 0
    %782 = vmatpush1.bf16.msra.mxu0 0
    %783 = vmatprep.subr.bf16.mxu0 0
    %784 = vmatpush1.bf16.msra.mxu0 0
    %785 = vmatprep.subr.bf16.mxu0 0
    %786 = vmatpush1.bf16.msra.mxu0 0
    %787 = vmatprep.subr.bf16.mxu0 0
    %788 = vmatpush1.bf16.msra.mxu0 0
    %789 = vmatprep.subr.bf16.mxu0 0
    %790 = vmatpush1.bf16.msra.mxu0 0
    %791 = vmatprep.subr.bf16.mxu0 0
    %792 = vmatpush1.bf16.msra.mxu0 0
    %793 = vmatprep.mubr.bf16.mxu0 0
    %794 = vmatmul.mubr.bf16.gmra.mrb[0].mxu0 %v413
    %v795 = vpop.f32.mrb[0].mxu0
    %v796 = vadd.f32 %v121, %v795
    %v797 = vpop.f32.mrb[0].mxu0
    %v798 = vadd.f32 %v121, %v797
    %v799 = vpop.f32.mrb[0].mxu0
    %v800 = vpop.f32.mrb[0].mxu0
    %801 = vdwg.mxu0
    %802 = vmatprep.subr.bf16.mxu0 %v330
    %803 = vmatpush1.bf16.msra.mxu0 %v329
    %804 = vmatprep.subr.bf16.mxu0 %v465
    %805 = vmatpush1.bf16.msra.mxu0 %v462
    %806 = vmatprep.subr.bf16.mxu0 0
    %807 = vmatpush1.bf16.msra.mxu0 0
    %808 = vmatprep.subr.bf16.mxu0 0
    %809 = vmatpush1.bf16.msra.mxu0 0
    %810 = vmatprep.subr.bf16.mxu0 0
    %811 = vmatpush1.bf16.msra.mxu0 0
    %812 = vmatprep.subr.bf16.mxu0 0
    %813 = vmatpush1.bf16.msra.mxu0 0
    %814 = vmatprep.subr.bf16.mxu0 0
    %815 = vmatpush1.bf16.msra.mxu0 0
    %816 = vmatprep.subr.bf16.mxu0 0
    %817 = vmatpush1.bf16.msra.mxu0 0
    %818 = vmatprep.subr.bf16.mxu0 0
    %819 = vmatpush1.bf16.msra.mxu0 0
    %820 = vmatprep.subr.bf16.mxu0 0
    %821 = vmatpush1.bf16.msra.mxu0 0
    %822 = vmatprep.subr.bf16.mxu0 0
    %823 = vmatpush1.bf16.msra.mxu0 0
    %824 = vmatprep.subr.bf16.mxu0 0
    %825 = vmatpush1.bf16.msra.mxu0 0
    %826 = vmatprep.subr.bf16.mxu0 0
    %827 = vmatpush1.bf16.msra.mxu0 0
    %828 = vmatprep.subr.bf16.mxu0 0
    %829 = vmatpush1.bf16.msra.mxu0 0
    %830 = vmatprep.subr.bf16.mxu0 0
    %831 = vmatpush1.bf16.msra.mxu0 0
    %832 = vmatprep.subr.bf16.mxu0 0
    %833 = vmatpush1.bf16.msra.mxu0 0
    %834 = vmatprep.mubr.bf16.mxu0 0
    %835 = vmatmul.mubr.bf16.gmra.mrb[0].mxu0 %v413
    %v836 = vpop.f32.mrb[0].mxu0
    %v837 = vadd.f32 %v121, %v836
    %v838 = vpop.f32.mrb[0].mxu0
    %v839 = vadd.f32 %v121, %v838
    %v840 = vpop.f32.mrb[0].mxu0
    %v841 = vpop.f32.mrb[0].mxu0
    %842 = vdwg.mxu0
    %843 = vmatprep.subr.bf16.mxu0 %v332
    %844 = vmatpush1.bf16.msra.mxu0 %v331
    %845 = vmatprep.subr.bf16.mxu0 %v471
    %846 = vmatpush1.bf16.msra.mxu0 %v468
    %847 = vmatprep.subr.bf16.mxu0 0
    %848 = vmatpush1.bf16.msra.mxu0 0
    %849 = vmatprep.subr.bf16.mxu0 0
    %850 = vmatpush1.bf16.msra.mxu0 0
    %851 = vmatprep.subr.bf16.mxu0 0
    %852 = vmatpush1.bf16.msra.mxu0 0
    %853 = vmatprep.subr.bf16.mxu0 0
    %854 = vmatpush1.bf16.msra.mxu0 0
    %855 = vmatprep.subr.bf16.mxu0 0
    %856 = vmatpush1.bf16.msra.mxu0 0
    %857 = vmatprep.subr.bf16.mxu0 0
    %858 = vmatpush1.bf16.msra.mxu0 0
    %859 = vmatprep.subr.bf16.mxu0 0
    %860 = vmatpush1.bf16.msra.mxu0 0
    %861 = vmatprep.subr.bf16.mxu0 0
    %862 = vmatpush1.bf16.msra.mxu0 0
    %863 = vmatprep.subr.bf16.mxu0 0
    %864 = vmatpush1.bf16.msra.mxu0 0
    %865 = vmatprep.subr.bf16.mxu0 0
    %866 = vmatpush1.bf16.msra.mxu0 0
    %867 = vmatprep.subr.bf16.mxu0 0
    %868 = vmatpush1.bf16.msra.mxu0 0
    %869 = vmatprep.subr.bf16.mxu0 0
    %870 = vmatpush1.bf16.msra.mxu0 0
    %871 = vmatprep.subr.bf16.mxu0 0
    %872 = vmatpush1.bf16.msra.mxu0 0
    %873 = vmatprep.subr.bf16.mxu0 0
    %874 = vmatpush1.bf16.msra.mxu0 0
    %875 = vmatprep.mubr.bf16.mxu0 0
    %876 = vmatmul.mubr.bf16.gmra.mrb[0].mxu0 %v413
    %v877 = vpop.f32.mrb[0].mxu0
    %v878 = vadd.f32 %v121, %v877
    %v879 = vpop.f32.mrb[0].mxu0
    %v880 = vadd.f32 %v121, %v879
    %v881 = vpop.f32.mrb[0].mxu0
    %v882 = vpop.f32.mrb[0].mxu0
    %883 = vdwg.mxu0
    %884 = vmatprep.subr.bf16.mxu0 %v334
    %885 = vmatpush1.bf16.msra.mxu0 %v333
    %886 = vmatprep.subr.bf16.mxu0 %v477
    %887 = vmatpush1.bf16.msra.mxu0 %v474
    %888 = vmatprep.subr.bf16.mxu0 0
    %889 = vmatpush1.bf16.msra.mxu0 0
    %890 = vmatprep.subr.bf16.mxu0 0
    %891 = vmatpush1.bf16.msra.mxu0 0
    %892 = vmatprep.subr.bf16.mxu0 0
    %893 = vmatpush1.bf16.msra.mxu0 0
    %894 = vmatprep.subr.bf16.mxu0 0
    %895 = vmatpush1.bf16.msra.mxu0 0
    %896 = vmatprep.subr.bf16.mxu0 0
    %897 = vmatpush1.bf16.msra.mxu0 0
    %898 = vmatprep.subr.bf16.mxu0 0
    %899 = vmatpush1.bf16.msra.mxu0 0
    %900 = vmatprep.subr.bf16.mxu0 0
    %901 = vmatpush1.bf16.msra.mxu0 0
    %902 = vmatprep.subr.bf16.mxu0 0
    %903 = vmatpush1.bf16.msra.mxu0 0
    %904 = vmatprep.subr.bf16.mxu0 0
    %905 = vmatpush1.bf16.msra.mxu0 0
    %906 = vmatprep.subr.bf16.mxu0 0
    %907 = vmatpush1.bf16.msra.mxu0 0
    %908 = vmatprep.subr.bf16.mxu0 0
    %909 = vmatpush1.bf16.msra.mxu0 0
    %910 = vmatprep.subr.bf16.mxu0 0
    %911 = vmatpush1.bf16.msra.mxu0 0
    %912 = vmatprep.subr.bf16.mxu0 0
    %913 = vmatpush1.bf16.msra.mxu0 0
    %914 = vmatprep.subr.bf16.mxu0 0
    %915 = vmatpush1.bf16.msra.mxu0 0
    %916 = vmatprep.mubr.bf16.mxu0 0
    %917 = vmatmul.mubr.bf16.gmra.mrb[0].mxu0 %v413
    %v918 = vpop.f32.mrb[0].mxu0
    %v919 = vadd.f32 %v121, %v918
    %v920 = vpop.f32.mrb[0].mxu0
    %v921 = vadd.f32 %v121, %v920
    %v922 = vpop.f32.mrb[0].mxu0
    %v923 = vpop.f32.mrb[0].mxu0
    %924 = vdwg.mxu0
    %925 = vmatprep.subr.bf16.mxu0 %v336
    %926 = vmatpush1.bf16.msra.mxu0 %v335
    %927 = vmatprep.subr.bf16.mxu0 %v483
    %928 = vmatpush1.bf16.msra.mxu0 %v480
    %929 = vmatprep.subr.bf16.mxu0 0
    %930 = vmatpush1.bf16.msra.mxu0 0
    %931 = vmatprep.subr.bf16.mxu0 0
    %932 = vmatpush1.bf16.msra.mxu0 0
    %933 = vmatprep.subr.bf16.mxu0 0
    %934 = vmatpush1.bf16.msra.mxu0 0
    %935 = vmatprep.subr.bf16.mxu0 0
    %936 = vmatpush1.bf16.msra.mxu0 0
    %937 = vmatprep.subr.bf16.mxu0 0
    %938 = vmatpush1.bf16.msra.mxu0 0
    %939 = vmatprep.subr.bf16.mxu0 0
    %940 = vmatpush1.bf16.msra.mxu0 0
    %941 = vmatprep.subr.bf16.mxu0 0
    %942 = vmatpush1.bf16.msra.mxu0 0
    %943 = vmatprep.subr.bf16.mxu0 0
    %944 = vmatpush1.bf16.msra.mxu0 0
    %945 = vmatprep.subr.bf16.mxu0 0
    %946 = vmatpush1.bf16.msra.mxu0 0
    %947 = vmatprep.subr.bf16.mxu0 0
    %948 = vmatpush1.bf16.msra.mxu0 0
    %949 = vmatprep.subr.bf16.mxu0 0
    %950 = vmatpush1.bf16.msra.mxu0 0
    %951 = vmatprep.subr.bf16.mxu0 0
    %952 = vmatpush1.bf16.msra.mxu0 0
    %953 = vmatprep.subr.bf16.mxu0 0
    %954 = vmatpush1.bf16.msra.mxu0 0
    %955 = vmatprep.subr.bf16.mxu0 0
    %956 = vmatpush1.bf16.msra.mxu0 0
    %957 = vmatprep.mubr.bf16.mxu0 0
    %958 = vmatmul.mubr.bf16.gmra.mrb[0].mxu0 %v413
    %v959 = vpop.f32.mrb[0].mxu0
    %v960 = vadd.f32 %v121, %v959
    %v961 = vpop.f32.mrb[0].mxu0
    %v962 = vadd.f32 %v121, %v961
    %v963 = vpop.f32.mrb[0].mxu0
    %v964 = vpop.f32.mrb[0].mxu0
    %965 = vdwg.mxu0
    %966 = vmatprep.subr.bf16.mxu0 %v338
    %967 = vmatpush1.bf16.msra.mxu0 %v337
    %968 = vmatprep.subr.bf16.mxu0 %v489
    %969 = vmatpush1.bf16.msra.mxu0 %v486
    %970 = vmatprep.subr.bf16.mxu0 0
    %971 = vmatpush1.bf16.msra.mxu0 0
    %972 = vmatprep.subr.bf16.mxu0 0
    %973 = vmatpush1.bf16.msra.mxu0 0
    %974 = vmatprep.subr.bf16.mxu0 0
    %975 = vmatpush1.bf16.msra.mxu0 0
    %976 = vmatprep.subr.bf16.mxu0 0
    %977 = vmatpush1.bf16.msra.mxu0 0
    %978 = vmatprep.subr.bf16.mxu0 0
    %979 = vmatpush1.bf16.msra.mxu0 0
    %980 = vmatprep.subr.bf16.mxu0 0
    %981 = vmatpush1.bf16.msra.mxu0 0
    %982 = vmatprep.subr.bf16.mxu0 0
    %983 = vmatpush1.bf16.msra.mxu0 0
    %984 = vmatprep.subr.bf16.mxu0 0
    %985 = vmatpush1.bf16.msra.mxu0 0
    %986 = vmatprep.subr.bf16.mxu0 0
    %987 = vmatpush1.bf16.msra.mxu0 0
    %988 = vmatprep.subr.bf16.mxu0 0
    %989 = vmatpush1.bf16.msra.mxu0 0
    %990 = vmatprep.subr.bf16.mxu0 0
    %991 = vmatpush1.bf16.msra.mxu0 0
    %992 = vmatprep.subr.bf16.mxu0 0
    %993 = vmatpush1.bf16.msra.mxu0 0
    %994 = vmatprep.subr.bf16.mxu0 0
    %995 = vmatpush1.bf16.msra.mxu0 0
    %996 = vmatprep.subr.bf16.mxu0 0
    %997 = vmatpush1.bf16.msra.mxu0 0
    %998 = vmatprep.mubr.bf16.mxu0 0
    %999 = vmatmul.mubr.bf16.gmra.mrb[0].mxu0 %v413
    %v1000 = vpop.f32.mrb[0].mxu0
    %v1001 = vadd.f32 %v121, %v1000
    %v1002 = vpop.f32.mrb[0].mxu0
    %v1003 = vadd.f32 %v121, %v1002
    %v1004 = vpop.f32.mrb[0].mxu0
    %v1005 = vpop.f32.mrb[0].mxu0
    %1006 = vdwg.mxu0
    %1007 = vmatprep.subr.bf16.mxu0 %v340
    %1008 = vmatpush1.bf16.msra.mxu0 %v339
    %1009 = vmatprep.subr.bf16.mxu0 %v495
    %1010 = vmatpush1.bf16.msra.mxu0 %v492
    %1011 = vmatprep.subr.bf16.mxu0 0
    %1012 = vmatpush1.bf16.msra.mxu0 0
    %1013 = vmatprep.subr.bf16.mxu0 0
    %1014 = vmatpush1.bf16.msra.mxu0 0
    %1015 = vmatprep.subr.bf16.mxu0 0
    %1016 = vmatpush1.bf16.msra.mxu0 0
    %1017 = vmatprep.subr.bf16.mxu0 0
    %1018 = vmatpush1.bf16.msra.mxu0 0
    %1019 = vmatprep.subr.bf16.mxu0 0
    %1020 = vmatpush1.bf16.msra.mxu0 0
    %1021 = vmatprep.subr.bf16.mxu0 0
    %1022 = vmatpush1.bf16.msra.mxu0 0
    %1023 = vmatprep.subr.bf16.mxu0 0
    %1024 = vmatpush1.bf16.msra.mxu0 0
    %1025 = vmatprep.subr.bf16.mxu0 0
    %1026 = vmatpush1.bf16.msra.mxu0 0
    %1027 = vmatprep.subr.bf16.mxu0 0
    %1028 = vmatpush1.bf16.msra.mxu0 0
    %1029 = vmatprep.subr.bf16.mxu0 0
    %1030 = vmatpush1.bf16.msra.mxu0 0
    %1031 = vmatprep.subr.bf16.mxu0 0
    %1032 = vmatpush1.bf16.msra.mxu0 0
    %1033 = vmatprep.subr.bf16.mxu0 0
    %1034 = vmatpush1.bf16.msra.mxu0 0
    %1035 = vmatprep.subr.bf16.mxu0 0
    %1036 = vmatpush1.bf16.msra.mxu0 0
    %1037 = vmatprep.subr.bf16.mxu0 0
    %1038 = vmatpush1.bf16.msra.mxu0 0
    %1039 = vmatprep.mubr.bf16.mxu0 0
    %1040 = vmatmul.mubr.bf16.gmra.mrb[0].mxu0 %v413
    %v1041 = vpop.f32.mrb[0].mxu0
    %v1042 = vadd.f32 %v121, %v1041
    %v1043 = vpop.f32.mrb[0].mxu0
    %v1044 = vadd.f32 %v121, %v1043
    %v1045 = vpop.f32.mrb[0].mxu0
    %v1046 = vpop.f32.mrb[0].mxu0
    %1047 = vdwg.mxu0
    %1048 = vmatprep.subr.bf16.mxu0 %v342
    %1049 = vmatpush1.bf16.msra.mxu0 %v341
    %1050 = vmatprep.subr.bf16.mxu0 %v501
    %1051 = vmatpush1.bf16.msra.mxu0 %v498
    %1052 = vmatprep.subr.bf16.mxu0 0
    %1053 = vmatpush1.bf16.msra.mxu0 0
    %1054 = vmatprep.subr.bf16.mxu0 0
    %1055 = vmatpush1.bf16.msra.mxu0 0
    %1056 = vmatprep.subr.bf16.mxu0 0
    %1057 = vmatpush1.bf16.msra.mxu0 0
    %1058 = vmatprep.subr.bf16.mxu0 0
    %1059 = vmatpush1.bf16.msra.mxu0 0
    %1060 = vmatprep.subr.bf16.mxu0 0
    %1061 = vmatpush1.bf16.msra.mxu0 0
    %1062 = vmatprep.subr.bf16.mxu0 0
    %1063 = vmatpush1.bf16.msra.mxu0 0
    %1064 = vmatprep.subr.bf16.mxu0 0
    %1065 = vmatpush1.bf16.msra.mxu0 0
    %1066 = vmatprep.subr.bf16.mxu0 0
    %1067 = vmatpush1.bf16.msra.mxu0 0
    %1068 = vmatprep.subr.bf16.mxu0 0
    %1069 = vmatpush1.bf16.msra.mxu0 0
    %1070 = vmatprep.subr.bf16.mxu0 0
    %1071 = vmatpush1.bf16.msra.mxu0 0
    %1072 = vmatprep.subr.bf16.mxu0 0
    %1073 = vmatpush1.bf16.msra.mxu0 0
    %1074 = vmatprep.subr.bf16.mxu0 0
    %1075 = vmatpush1.bf16.msra.mxu0 0
    %1076 = vmatprep.subr.bf16.mxu0 0
    %1077 = vmatpush1.bf16.msra.mxu0 0
    %1078 = vmatprep.subr.bf16.mxu0 0
    %1079 = vmatpush1.bf16.msra.mxu0 0
    %1080 = vmatprep.mubr.bf16.mxu0 0
    %1081 = vmatmul.mubr.bf16.gmra.mrb[0].mxu0 %v413
    %v1082 = vpop.f32.mrb[0].mxu0
    %v1083 = vadd.f32 %v121, %v1082
    %v1084 = vpop.f32.mrb[0].mxu0
    %v1085 = vadd.f32 %v121, %v1084
    %v1086 = vpop.f32.mrb[0].mxu0
    %v1087 = vpop.f32.mrb[0].mxu0
    %1088 = vdwg.mxu0
    %1089 = vmatprep.subr.bf16.mxu0 %v344
    %1090 = vmatpush1.bf16.msra.mxu0 %v343
    %1091 = vmatprep.subr.bf16.mxu0 %v507
    %1092 = vmatpush1.bf16.msra.mxu0 %v504
    %1093 = vmatprep.subr.bf16.mxu0 0
    %1094 = vmatpush1.bf16.msra.mxu0 0
    %1095 = vmatprep.subr.bf16.mxu0 0
    %1096 = vmatpush1.bf16.msra.mxu0 0
    %1097 = vmatprep.subr.bf16.mxu0 0
    %1098 = vmatpush1.bf16.msra.mxu0 0
    %1099 = vmatprep.subr.bf16.mxu0 0
    %1100 = vmatpush1.bf16.msra.mxu0 0
    %1101 = vmatprep.subr.bf16.mxu0 0
    %1102 = vmatpush1.bf16.msra.mxu0 0
    %1103 = vmatprep.subr.bf16.mxu0 0
    %1104 = vmatpush1.bf16.msra.mxu0 0
    %1105 = vmatprep.subr.bf16.mxu0 0
    %1106 = vmatpush1.bf16.msra.mxu0 0
    %1107 = vmatprep.subr.bf16.mxu0 0
    %1108 = vmatpush1.bf16.msra.mxu0 0
    %1109 = vmatprep.subr.bf16.mxu0 0
    %1110 = vmatpush1.bf16.msra.mxu0 0
    %1111 = vmatprep.subr.bf16.mxu0 0
    %1112 = vmatpush1.bf16.msra.mxu0 0
    %1113 = vmatprep.subr.bf16.mxu0 0
    %1114 = vmatpush1.bf16.msra.mxu0 0
    %1115 = vmatprep.subr.bf16.mxu0 0
    %1116 = vmatpush1.bf16.msra.mxu0 0
    %1117 = vmatprep.subr.bf16.mxu0 0
    %1118 = vmatpush1.bf16.msra.mxu0 0
    %1119 = vmatprep.subr.bf16.mxu0 0
    %1120 = vmatpush1.bf16.msra.mxu0 0
    %1121 = vmatprep.mubr.bf16.mxu0 0
    %1122 = vmatmul.mubr.bf16.gmra.mrb[0].mxu0 %v413
    %v1123 = vpop.f32.mrb[0].mxu0
    %v1124 = vadd.f32 %v121, %v1123
    %v1125 = vpop.f32.mrb[0].mxu0
    %v1126 = vadd.f32 %v121, %v1125
    %v1127 = vpop.f32.mrb[0].mxu0
    %v1128 = vpop.f32.mrb[0].mxu0
    %1129 = vdwg.mxu0
    %1130 = vmatprep.subr.bf16.mxu0 %v346
    %1131 = vmatpush1.bf16.msra.mxu0 %v345
    %1132 = vmatprep.subr.bf16.mxu0 %v513
    %1133 = vmatpush1.bf16.msra.mxu0 %v510
    %1134 = vmatprep.subr.bf16.mxu0 0
    %1135 = vmatpush1.bf16.msra.mxu0 0
    %1136 = vmatprep.subr.bf16.mxu0 0
    %1137 = vmatpush1.bf16.msra.mxu0 0
    %1138 = vmatprep.subr.bf16.mxu0 0
    %1139 = vmatpush1.bf16.msra.mxu0 0
    %1140 = vmatprep.subr.bf16.mxu0 0
    %1141 = vmatpush1.bf16.msra.mxu0 0
    %1142 = vmatprep.subr.bf16.mxu0 0
    %1143 = vmatpush1.bf16.msra.mxu0 0
    %1144 = vmatprep.subr.bf16.mxu0 0
    %1145 = vmatpush1.bf16.msra.mxu0 0
    %1146 = vmatprep.subr.bf16.mxu0 0
    %1147 = vmatpush1.bf16.msra.mxu0 0
    %1148 = vmatprep.subr.bf16.mxu0 0
    %1149 = vmatpush1.bf16.msra.mxu0 0
    %1150 = vmatprep.subr.bf16.mxu0 0
    %1151 = vmatpush1.bf16.msra.mxu0 0
    %1152 = vmatprep.subr.bf16.mxu0 0
    %1153 = vmatpush1.bf16.msra.mxu0 0
    %1154 = vmatprep.subr.bf16.mxu0 0
    %1155 = vmatpush1.bf16.msra.mxu0 0
    %1156 = vmatprep.subr.bf16.mxu0 0
    %1157 = vmatpush1.bf16.msra.mxu0 0
    %1158 = vmatprep.subr.bf16.mxu0 0
    %1159 = vmatpush1.bf16.msra.mxu0 0
    %1160 = vmatprep.subr.bf16.mxu0 0
    %1161 = vmatpush1.bf16.msra.mxu0 0
    %1162 = vmatprep.mubr.bf16.mxu0 0
    %1163 = vmatmul.mubr.bf16.gmra.mrb[0].mxu0 %v413
    %v1164 = vpop.f32.mrb[0].mxu0
    %v1165 = vadd.f32 %v121, %v1164
    %v1166 = vpop.f32.mrb[0].mxu0
    %v1167 = vadd.f32 %v121, %v1166
    %v1168 = vpop.f32.mrb[0].mxu0
    %v1169 = vpop.f32.mrb[0].mxu0
    %1170 = vdwg.mxu0
    %v1171 = vsel %vm415, %v550, 0.0
    %v1172 = vsel %vm415, %v552, 0.0
    %v1173 = vadd.f32 %v1171, %v1172
    %v1174 = vsel %vm415, %v591, 0.0
    %v1175 = vadd.f32 %v1173, %v1174
    %v1176 = vsel %vm415, %v593, 0.0
    %v1177 = vadd.f32 %v1175, %v1176
    %v1178 = vsel %vm415, %v632, 0.0
    %v1179 = vadd.f32 %v1177, %v1178
    %v1180 = vsel %vm415, %v634, 0.0
    %v1181 = vadd.f32 %v1179, %v1180
    %v1182 = vsel %vm415, %v673, 0.0
    %v1183 = vadd.f32 %v1181, %v1182
    %v1184 = vsel %vm415, %v675, 0.0
    %v1185 = vadd.f32 %v1183, %v1184
    %v1186 = vsel %vm415, %v714, 0.0
    %v1187 = vadd.f32 %v1185, %v1186
    %v1188 = vsel %vm415, %v716, 0.0
    %v1189 = vadd.f32 %v1187, %v1188
    %v1190 = vsel %vm415, %v755, 0.0
    %v1191 = vadd.f32 %v1189, %v1190
    %v1192 = vsel %vm415, %v757, 0.0
    %v1193 = vadd.f32 %v1191, %v1192
    %v1194 = vsel %vm415, %v796, 0.0
    %v1195 = vadd.f32 %v1193, %v1194
    %v1196 = vsel %vm415, %v798, 0.0
    %v1197 = vadd.f32 %v1195, %v1196
    %v1198 = vsel %vm415, %v837, 0.0
    %v1199 = vadd.f32 %v1197, %v1198
    %v1200 = vsel %vm415, %v839, 0.0
    %v1201 = vadd.f32 %v1199, %v1200
    %v1202 = vsel %vm415, %v878, 0.0
    %v1203 = vadd.f32 %v1201, %v1202
    %v1204 = vsel %vm415, %v880, 0.0
    %v1205 = vadd.f32 %v1203, %v1204
    %v1206 = vsel %vm415, %v919, 0.0
    %v1207 = vadd.f32 %v1205, %v1206
    %v1208 = vsel %vm415, %v921, 0.0
    %v1209 = vadd.f32 %v1207, %v1208
    %v1210 = vsel %vm415, %v960, 0.0
    %v1211 = vadd.f32 %v1209, %v1210
    %v1212 = vsel %vm415, %v962, 0.0
    %v1213 = vadd.f32 %v1211, %v1212
    %v1214 = vsel %vm415, %v1001, 0.0
    %v1215 = vadd.f32 %v1213, %v1214
    %v1216 = vsel %vm415, %v1003, 0.0
    %v1217 = vadd.f32 %v1215, %v1216
    %v1218 = vsel %vm415, %v1042, 0.0
    %v1219 = vadd.f32 %v1217, %v1218
    %v1220 = vsel %vm415, %v1044, 0.0
    %v1221 = vadd.f32 %v1219, %v1220
    %v1222 = vsel %vm415, %v1083, 0.0
    %v1223 = vadd.f32 %v1221, %v1222
    %v1224 = vsel %vm415, %v1085, 0.0
    %v1225 = vadd.f32 %v1223, %v1224
    %v1226 = vsel %vm415, %v1124, 0.0
    %v1227 = vadd.f32 %v1225, %v1226
    %v1228 = vsel %vm415, %v1126, 0.0
    %v1229 = vadd.f32 %v1227, %v1228
    %v1230 = vsel %vm415, %v1165, 0.0
    %v1231 = vadd.f32 %v1229, %v1230
    %v1232 = vsel %vm415, %v1167, 0.0
    %v1233 = vadd.f32 %v1231, %v1232
    %1234 = vadd.xlane.f32.xlu0 %v1233
    %v1235 = vpop.xlane.xlu0 %1234
    %v1236 = vmul.f32 %v1235, 0.00024414063
    %v1237 = vsub.f32 %v550, %v1236
    %v1238 = vsub.f32 %v552, %v1236
    %v1239 = vsub.f32 %v591, %v1236
    %v1240 = vsub.f32 %v593, %v1236
    %v1241 = vsub.f32 %v632, %v1236
    %v1242 = vsub.f32 %v634, %v1236
    %v1243 = vsub.f32 %v673, %v1236
    %v1244 = vsub.f32 %v675, %v1236
    %v1245 = vsub.f32 %v714, %v1236
    %v1246 = vsub.f32 %v716, %v1236
    %v1247 = vsub.f32 %v755, %v1236
    %v1248 = vsub.f32 %v757, %v1236
    %v1249 = vsub.f32 %v796, %v1236
    %v1250 = vsub.f32 %v798, %v1236
    %v1251 = vsub.f32 %v837, %v1236
    %v1252 = vsub.f32 %v839, %v1236
    %v1253 = vsub.f32 %v878, %v1236
    %v1254 = vsub.f32 %v880, %v1236
    %v1255 = vsub.f32 %v919, %v1236
    %v1256 = vsub.f32 %v921, %v1236
    %v1257 = vsub.f32 %v960, %v1236
    %v1258 = vsub.f32 %v962, %v1236
    %v1259 = vsub.f32 %v1001, %v1236
    %v1260 = vsub.f32 %v1003, %v1236
    %v1261 = vsub.f32 %v1042, %v1236
    %v1262 = vsub.f32 %v1044, %v1236
    %v1263 = vsub.f32 %v1083, %v1236
    %v1264 = vsub.f32 %v1085, %v1236
    %v1265 = vsub.f32 %v1124, %v1236
    %v1266 = vsub.f32 %v1126, %v1236
    %v1267 = vsub.f32 %v1165, %v1236
    %v1268 = vsub.f32 %v1167, %v1236
    %v1269 = vmul.f32 %v1237, %v1237
    %v1270 = vmul.f32 %v1238, %v1238
    %v1271 = vmul.f32 %v1239, %v1239
    %v1272 = vmul.f32 %v1240, %v1240
    %v1273 = vmul.f32 %v1241, %v1241
    %v1274 = vmul.f32 %v1242, %v1242
    %v1275 = vmul.f32 %v1243, %v1243
    %v1276 = vmul.f32 %v1244, %v1244
    %v1277 = vmul.f32 %v1245, %v1245
    %v1278 = vmul.f32 %v1246, %v1246
    %v1279 = vmul.f32 %v1247, %v1247
    %v1280 = vmul.f32 %v1248, %v1248
    %v1281 = vmul.f32 %v1249, %v1249
    %v1282 = vmul.f32 %v1250, %v1250
    %v1283 = vmul.f32 %v1251, %v1251
    %v1284 = vmul.f32 %v1252, %v1252
    %v1285 = vmul.f32 %v1253, %v1253
    %v1286 = vmul.f32 %v1254, %v1254
    %v1287 = vmul.f32 %v1255, %v1255
    %v1288 = vmul.f32 %v1256, %v1256
    %v1289 = vmul.f32 %v1257, %v1257
    %v1290 = vmul.f32 %v1258, %v1258
    %v1291 = vmul.f32 %v1259, %v1259
    %v1292 = vmul.f32 %v1260, %v1260
    %v1293 = vmul.f32 %v1261, %v1261
    %v1294 = vmul.f32 %v1262, %v1262
    %v1295 = vmul.f32 %v1263, %v1263
    %v1296 = vmul.f32 %v1264, %v1264
    %v1297 = vmul.f32 %v1265, %v1265
    %v1298 = vmul.f32 %v1266, %v1266
    %v1299 = vmul.f32 %v1267, %v1267
    %v1300 = vmul.f32 %v1268, %v1268
    %v1301 = vsel %vm415, %v1269, 0.0
    %v1302 = vsel %vm415, %v1270, 0.0
    %v1303 = vadd.f32 %v1301, %v1302
    %v1304 = vsel %vm415, %v1271, 0.0
    %v1305 = vadd.f32 %v1303, %v1304
    %v1306 = vsel %vm415, %v1272, 0.0
    %v1307 = vadd.f32 %v1305, %v1306
    %v1308 = vsel %vm415, %v1273, 0.0
    %v1309 = vadd.f32 %v1307, %v1308
    %v1310 = vsel %vm415, %v1274, 0.0
    %v1311 = vadd.f32 %v1309, %v1310
    %v1312 = vsel %vm415, %v1275, 0.0
    %v1313 = vadd.f32 %v1311, %v1312
    %v1314 = vsel %vm415, %v1276, 0.0
    %v1315 = vadd.f32 %v1313, %v1314
    %v1316 = vsel %vm415, %v1277, 0.0
    %v1317 = vadd.f32 %v1315, %v1316
    %v1318 = vsel %vm415, %v1278, 0.0
    %v1319 = vadd.f32 %v1317, %v1318
    %v1320 = vsel %vm415, %v1279, 0.0
    %v1321 = vadd.f32 %v1319, %v1320
    %v1322 = vsel %vm415, %v1280, 0.0
    %v1323 = vadd.f32 %v1321, %v1322
    %v1324 = vsel %vm415, %v1281, 0.0
    %v1325 = vadd.f32 %v1323, %v1324
    %v1326 = vsel %vm415, %v1282, 0.0
    %v1327 = vadd.f32 %v1325, %v1326
    %v1328 = vsel %vm415, %v1283, 0.0
    %v1329 = vadd.f32 %v1327, %v1328
    %v1330 = vsel %vm415, %v1284, 0.0
    %v1331 = vadd.f32 %v1329, %v1330
    %v1332 = vsel %vm415, %v1285, 0.0
    %v1333 = vadd.f32 %v1331, %v1332
    %v1334 = vsel %vm415, %v1286, 0.0
    %v1335 = vadd.f32 %v1333, %v1334
    %v1336 = vsel %vm415, %v1287, 0.0
    %v1337 = vadd.f32 %v1335, %v1336
    %v1338 = vsel %vm415, %v1288, 0.0
    %v1339 = vadd.f32 %v1337, %v1338
    %v1340 = vsel %vm415, %v1289, 0.0
    %v1341 = vadd.f32 %v1339, %v1340
    %v1342 = vsel %vm415, %v1290, 0.0
    %v1343 = vadd.f32 %v1341, %v1342
    %v1344 = vsel %vm415, %v1291, 0.0
    %v1345 = vadd.f32 %v1343, %v1344
    %v1346 = vsel %vm415, %v1292, 0.0
    %v1347 = vadd.f32 %v1345, %v1346
    %v1348 = vsel %vm415, %v1293, 0.0
    %v1349 = vadd.f32 %v1347, %v1348
    %v1350 = vsel %vm415, %v1294, 0.0
    %v1351 = vadd.f32 %v1349, %v1350
    %v1352 = vsel %vm415, %v1295, 0.0
    %v1353 = vadd.f32 %v1351, %v1352
    %v1354 = vsel %vm415, %v1296, 0.0
    %v1355 = vadd.f32 %v1353, %v1354
    %v1356 = vsel %vm415, %v1297, 0.0
    %v1357 = vadd.f32 %v1355, %v1356
    %v1358 = vsel %vm415, %v1298, 0.0
    %v1359 = vadd.f32 %v1357, %v1358
    %v1360 = vsel %vm415, %v1299, 0.0
    %v1361 = vadd.f32 %v1359, %v1360
    %v1362 = vsel %vm415, %v1300, 0.0
    %v1363 = vadd.f32 %v1361, %v1362
    %1364 = vadd.xlane.f32.xlu0 %v1363
    %v1365 = vpop.xlane.xlu0 %1364
    %v1366 = vmul.f32 %v1365, 0.00024414063
    %v1367 = vld [vmem:[%s3] sm:$0xf]
    %v1368 = vadd.f32 %v1366, 1e-05
    %v1369 = vrsqrt.pop %v1368
    %v1370 = vmul.f32 %v1367, %v1369
    %v1371 = vld [vmem:[%s4] sm:$0xf]
    %v1372 = vmul.f32 %v1236, %v1370
    %v1373 = vsub.f32 %v1371, %v1372
    %1375 = vset.pattern.permute.xlu0 0
    %1376 = vperm.xlu0 %1375, %v1370
    %v1377 = vpop.permute.xlu0 %1376
    %1380 = vset.pattern.permute.xlu0 0
    %1381 = vperm.xlu0 %1380, %v1373
    %v1382 = vpop.permute.xlu0 %1381
    %v1384 = vmul.f32 %v550, %v1377
    %v1385 = vmul.f32 %v552, %v1377
    %v1386 = vmul.f32 %v591, %v1377
    %v1387 = vmul.f32 %v593, %v1377
    %v1388 = vadd.f32 %v1384, %v1382
    %v1389 = vadd.f32 %v1385, %v1382
    %v1390 = vadd.f32 %v1386, %v1382
    %v1391 = vadd.f32 %v1387, %v1382
    %vm1392 = vcmp.ge.f32.partialorder %v1388, 0.0
    %vm1393 = vcmp.ge.f32.partialorder %v1389, 0.0
    %vm1394 = vcmp.ge.f32.partialorder %v1390, 0.0
    %vm1395 = vcmp.ge.f32.partialorder %v1391, 0.0
    %v1396 = vmul.f32 %v1388, 0.1
    %v1397 = vmul.f32 %v1389, 0.1
    %v1398 = vmul.f32 %v1390, 0.1
    %v1399 = vmul.f32 %v1391, 0.1
    %v1400 = vsel %vm1392, %v1388, %v1396
    %v1401 = vsel %vm1393, %v1389, %v1397
    %v1402 = vsel %vm1394, %v1390, %v1398
    %v1403 = vsel %vm1395, %v1391, %v1399
    %s1404 = sld [smem:[#allocation2]]
    %v1405 = vstv %s1404
    %v1406 = vmul.f32 %v1400, %v1405
    %v1407 = vmul.f32 %v1401, %v1405
    %v1408 = vmul.f32 %v1402, %v1405
    %v1409 = vmul.f32 %v1403, %v1405
    %s1410 = sld [smem:[#allocation2 + $0x80]]
    %v1411 = vstv %s1410
    %v1412 = vmul.f32 %v1400, %v1411
    %v1413 = vmul.f32 %v1401, %v1411
    %v1414 = vmul.f32 %v1402, %v1411
    %v1415 = vmul.f32 %v1403, %v1411
    %s1416 = sld [smem:[#allocation2 + $0x100]]
    %v1417 = vstv %s1416
    %v1418 = vmul.f32 %v1400, %v1417
    %v1419 = vmul.f32 %v1401, %v1417
    %v1420 = vmul.f32 %v1402, %v1417
    %v1421 = vmul.f32 %v1403, %v1417
    %s1422 = sld [smem:[#allocation2 + $0x180]]
    %v1423 = vstv %s1422
    %v1424 = vmul.f32 %v1400, %v1423
    %v1425 = vmul.f32 %v1401, %v1423
    %v1426 = vmul.f32 %v1402, %v1423
    %v1427 = vmul.f32 %v1403, %v1423
    %v1428 = vmul.f32 %v632, %v1377
    %v1429 = vmul.f32 %v634, %v1377
    %v1430 = vmul.f32 %v673, %v1377
    %v1431 = vmul.f32 %v675, %v1377
    %v1432 = vadd.f32 %v1428, %v1382
    %v1433 = vadd.f32 %v1429, %v1382
    %v1434 = vadd.f32 %v1430, %v1382
    %v1435 = vadd.f32 %v1431, %v1382
    %vm1436 = vcmp.ge.f32.partialorder %v1432, 0.0
    %vm1437 = vcmp.ge.f32.partialorder %v1433, 0.0
    %vm1438 = vcmp.ge.f32.partialorder %v1434, 0.0
    %vm1439 = vcmp.ge.f32.partialorder %v1435, 0.0
    %v1440 = vmul.f32 %v1432, 0.1
    %v1441 = vmul.f32 %v1433, 0.1
    %v1442 = vmul.f32 %v1434, 0.1
    %v1443 = vmul.f32 %v1435, 0.1
    %v1444 = vsel %vm1436, %v1432, %v1440
    %v1445 = vsel %vm1437, %v1433, %v1441
    %v1446 = vsel %vm1438, %v1434, %v1442
    %v1447 = vsel %vm1439, %v1435, %v1443
    %s1448 = sld [smem:[#allocation2 + $0x1]]
    %v1449 = vstv %s1448
    %v1450 = vmul.f32 %v1444, %v1449
    %v1451 = vmul.f32 %v1445, %v1449
    %v1452 = vmul.f32 %v1446, %v1449
    %v1453 = vmul.f32 %v1447, %v1449
    %v1454 = vadd.f32 %v1406, %v1450
    %v1455 = vadd.f32 %v1407, %v1451
    %v1456 = vadd.f32 %v1408, %v1452
    %v1457 = vadd.f32 %v1409, %v1453
    %s1458 = sld [smem:[#allocation2 + $0x81]]
    %v1459 = vstv %s1458
    %v1460 = vmul.f32 %v1444, %v1459
    %v1461 = vmul.f32 %v1445, %v1459
    %v1462 = vmul.f32 %v1446, %v1459
    %v1463 = vmul.f32 %v1447, %v1459
    %v1464 = vadd.f32 %v1412, %v1460
    %v1465 = vadd.f32 %v1413, %v1461
    %v1466 = vadd.f32 %v1414, %v1462
    %v1467 = vadd.f32 %v1415, %v1463
    %s1468 = sld [smem:[#allocation2 + $0x101]]
    %v1469 = vstv %s1468
    %v1470 = vmul.f32 %v1444, %v1469
    %v1471 = vmul.f32 %v1445, %v1469
    %v1472 = vmul.f32 %v1446, %v1469
    %v1473 = vmul.f32 %v1447, %v1469
    %v1474 = vadd.f32 %v1418, %v1470
    %v1475 = vadd.f32 %v1419, %v1471
    %v1476 = vadd.f32 %v1420, %v1472
    %v1477 = vadd.f32 %v1421, %v1473
    %s1478 = sld [smem:[#allocation2 + $0x181]]
    %v1479 = vstv %s1478
    %v1480 = vmul.f32 %v1444, %v1479
    %v1481 = vmul.f32 %v1445, %v1479
    %v1482 = vmul.f32 %v1446, %v1479
    %v1483 = vmul.f32 %v1447, %v1479
    %v1484 = vadd.f32 %v1424, %v1480
    %v1485 = vadd.f32 %v1425, %v1481
    %v1486 = vadd.f32 %v1426, %v1482
    %v1487 = vadd.f32 %v1427, %v1483
    %v1488 = vmul.f32 %v714, %v1377
    %v1489 = vmul.f32 %v716, %v1377
    %v1490 = vmul.f32 %v755, %v1377
    %v1491 = vmul.f32 %v757, %v1377
    %v1492 = vadd.f32 %v1488, %v1382
    %v1493 = vadd.f32 %v1489, %v1382
    %v1494 = vadd.f32 %v1490, %v1382
    %v1495 = vadd.f32 %v1491, %v1382
    %vm1496 = vcmp.ge.f32.partialorder %v1492, 0.0
    %vm1497 = vcmp.ge.f32.partialorder %v1493, 0.0
    %vm1498 = vcmp.ge.f32.partialorder %v1494, 0.0
    %vm1499 = vcmp.ge.f32.partialorder %v1495, 0.0
    %v1500 = vmul.f32 %v1492, 0.1
    %v1501 = vmul.f32 %v1493, 0.1
    %v1502 = vmul.f32 %v1494, 0.1
    %v1503 = vmul.f32 %v1495, 0.1
    %v1504 = vsel %vm1496, %v1492, %v1500
    %v1505 = vsel %vm1497, %v1493, %v1501
    %v1506 = vsel %vm1498, %v1494, %v1502
    %v1507 = vsel %vm1499, %v1495, %v1503
    %s1508 = sld [smem:[#allocation2 + $0x2]]
    %v1509 = vstv %s1508
    %v1510 = vmul.f32 %v1504, %v1509
    %v1511 = vmul.f32 %v1505, %v1509
    %v1512 = vmul.f32 %v1506, %v1509
    %v1513 = vmul.f32 %v1507, %v1509
    %v1514 = vadd.f32 %v1454, %v1510
    %v1515 = vadd.f32 %v1455, %v1511
    %v1516 = vadd.f32 %v1456, %v1512
    %v1517 = vadd.f32 %v1457, %v1513
    %s1518 = sld [smem:[#allocation2 + $0x82]]
    %v1519 = vstv %s1518
    %v1520 = vmul.f32 %v1504, %v1519
    %v1521 = vmul.f32 %v1505, %v1519
    %v1522 = vmul.f32 %v1506, %v1519
    %v1523 = vmul.f32 %v1507, %v1519
    %v1524 = vadd.f32 %v1464, %v1520
    %v1525 = vadd.f32 %v1465, %v1521
    %v1526 = vadd.f32 %v1466, %v1522
    %v1527 = vadd.f32 %v1467, %v1523
    %s1528 = sld [smem:[#allocation2 + $0x102]]
    %v1529 = vstv %s1528
    %v1530 = vmul.f32 %v1504, %v1529
    %v1531 = vmul.f32 %v1505, %v1529
    %v1532 = vmul.f32 %v1506, %v1529
    %v1533 = vmul.f32 %v1507, %v1529
    %v1534 = vadd.f32 %v1474, %v1530
    %v1535 = vadd.f32 %v1475, %v1531
    %v1536 = vadd.f32 %v1476, %v1532
    %v1537 = vadd.f32 %v1477, %v1533
    %s1538 = sld [smem:[#allocation2 + $0x182]]
    %v1539 = vstv %s1538
    %v1540 = vmul.f32 %v1504, %v1539
    %v1541 = vmul.f32 %v1505, %v1539
    %v1542 = vmul.f32 %v1506, %v1539
    %v1543 = vmul.f32 %v1507, %v1539
    %v1544 = vadd.f32 %v1484, %v1540
    %v1545 = vadd.f32 %v1485, %v1541
    %v1546 = vadd.f32 %v1486, %v1542
    %v1547 = vadd.f32 %v1487, %v1543
    %v1548 = vmul.f32 %v796, %v1377
    %v1549 = vmul.f32 %v798, %v1377
    %v1550 = vmul.f32 %v837, %v1377
    %v1551 = vmul.f32 %v839, %v1377
    %v1552 = vadd.f32 %v1548, %v1382
    %v1553 = vadd.f32 %v1549, %v1382
    %v1554 = vadd.f32 %v1550, %v1382
    %v1555 = vadd.f32 %v1551, %v1382
    %vm1556 = vcmp.ge.f32.partialorder %v1552, 0.0
    %vm1557 = vcmp.ge.f32.partialorder %v1553, 0.0
    %vm1558 = vcmp.ge.f32.partialorder %v1554, 0.0
    %vm1559 = vcmp.ge.f32.partialorder %v1555, 0.0
    %v1560 = vmul.f32 %v1552, 0.1
    %v1561 = vmul.f32 %v1553, 0.1
    %v1562 = vmul.f32 %v1554, 0.1
    %v1563 = vmul.f32 %v1555, 0.1
    %v1564 = vsel %vm1556, %v1552, %v1560
    %v1565 = vsel %vm1557, %v1553, %v1561
    %v1566 = vsel %vm1558, %v1554, %v1562
    %v1567 = vsel %vm1559, %v1555, %v1563
    %s1568 = sld [smem:[#allocation2 + $0x3]]
    %v1569 = vstv %s1568
    %v1570 = vmul.f32 %v1564, %v1569
    %v1571 = vmul.f32 %v1565, %v1569
    %v1572 = vmul.f32 %v1566, %v1569
    %v1573 = vmul.f32 %v1567, %v1569
    %v1574 = vadd.f32 %v1514, %v1570
    %v1575 = vadd.f32 %v1515, %v1571
    %v1576 = vadd.f32 %v1516, %v1572
    %v1577 = vadd.f32 %v1517, %v1573
    %s1578 = sld [smem:[#allocation2 + $0x83]]
    %v1579 = vstv %s1578
    %v1580 = vmul.f32 %v1564, %v1579
    %v1581 = vmul.f32 %v1565, %v1579
    %v1582 = vmul.f32 %v1566, %v1579
    %v1583 = vmul.f32 %v1567, %v1579
    %v1584 = vadd.f32 %v1524, %v1580
    %v1585 = vadd.f32 %v1525, %v1581
    %v1586 = vadd.f32 %v1526, %v1582
    %v1587 = vadd.f32 %v1527, %v1583
    %s1588 = sld [smem:[#allocation2 + $0x103]]
    %v1589 = vstv %s1588
    %v1590 = vmul.f32 %v1564, %v1589
    %v1591 = vmul.f32 %v1565, %v1589
    %v1592 = vmul.f32 %v1566, %v1589
    %v1593 = vmul.f32 %v1567, %v1589
    %v1594 = vadd.f32 %v1534, %v1590
    %v1595 = vadd.f32 %v1535, %v1591
    %v1596 = vadd.f32 %v1536, %v1592
    %v1597 = vadd.f32 %v1537, %v1593
    %s1598 = sld [smem:[#allocation2 + $0x183]]
    %v1599 = vstv %s1598
    %v1600 = vmul.f32 %v1564, %v1599
    %v1601 = vmul.f32 %v1565, %v1599
    %v1602 = vmul.f32 %v1566, %v1599
    %v1603 = vmul.f32 %v1567, %v1599
    %v1604 = vadd.f32 %v1544, %v1600
    %v1605 = vadd.f32 %v1545, %v1601
    %v1606 = vadd.f32 %v1546, %v1602
    %v1607 = vadd.f32 %v1547, %v1603
    %v1608 = vmul.f32 %v878, %v1377
    %v1609 = vmul.f32 %v880, %v1377
    %v1610 = vmul.f32 %v919, %v1377
    %v1611 = vmul.f32 %v921, %v1377
    %v1612 = vadd.f32 %v1608, %v1382
    %v1613 = vadd.f32 %v1609, %v1382
    %v1614 = vadd.f32 %v1610, %v1382
    %v1615 = vadd.f32 %v1611, %v1382
    %vm1616 = vcmp.ge.f32.partialorder %v1612, 0.0
    %vm1617 = vcmp.ge.f32.partialorder %v1613, 0.0
    %vm1618 = vcmp.ge.f32.partialorder %v1614, 0.0
    %vm1619 = vcmp.ge.f32.partialorder %v1615, 0.0
    %v1620 = vmul.f32 %v1612, 0.1
    %v1621 = vmul.f32 %v1613, 0.1
    %v1622 = vmul.f32 %v1614, 0.1
    %v1623 = vmul.f32 %v1615, 0.1
    %v1624 = vsel %vm1616, %v1612, %v1620
    %v1625 = vsel %vm1617, %v1613, %v1621
    %v1626 = vsel %vm1618, %v1614, %v1622
    %v1627 = vsel %vm1619, %v1615, %v1623
    %s1628 = sld [smem:[#allocation2 + $0x4]]
    %v1629 = vstv %s1628
    %v1630 = vmul.f32 %v1624, %v1629
    %v1631 = vmul.f32 %v1625, %v1629
    %v1632 = vmul.f32 %v1626, %v1629
    %v1633 = vmul.f32 %v1627, %v1629
    %v1634 = vadd.f32 %v1574, %v1630
    %v1635 = vadd.f32 %v1575, %v1631
    %v1636 = vadd.f32 %v1576, %v1632
    %v1637 = vadd.f32 %v1577, %v1633
    %s1638 = sld [smem:[#allocation2 + $0x84]]
    %v1639 = vstv %s1638
    %v1640 = vmul.f32 %v1624, %v1639
    %v1641 = vmul.f32 %v1625, %v1639
    %v1642 = vmul.f32 %v1626, %v1639
    %v1643 = vmul.f32 %v1627, %v1639
    %v1644 = vadd.f32 %v1584, %v1640
    %v1645 = vadd.f32 %v1585, %v1641
    %v1646 = vadd.f32 %v1586, %v1642
    %v1647 = vadd.f32 %v1587, %v1643
    %s1648 = sld [smem:[#allocation2 + $0x104]]
    %v1649 = vstv %s1648
    %v1650 = vmul.f32 %v1624, %v1649
    %v1651 = vmul.f32 %v1625, %v1649
    %v1652 = vmul.f32 %v1626, %v1649
    %v1653 = vmul.f32 %v1627, %v1649
    %v1654 = vadd.f32 %v1594, %v1650
    %v1655 = vadd.f32 %v1595, %v1651
    %v1656 = vadd.f32 %v1596, %v1652
    %v1657 = vadd.f32 %v1597, %v1653
    %s1658 = sld [smem:[#allocation2 + $0x184]]
    %v1659 = vstv %s1658
    %v1660 = vmul.f32 %v1624, %v1659
    %v1661 = vmul.f32 %v1625, %v1659
    %v1662 = vmul.f32 %v1626, %v1659
    %v1663 = vmul.f32 %v1627, %v1659
    %v1664 = vadd.f32 %v1604, %v1660
    %v1665 = vadd.f32 %v1605, %v1661
    %v1666 = vadd.f32 %v1606, %v1662
    %v1667 = vadd.f32 %v1607, %v1663
    %v1668 = vmul.f32 %v960, %v1377
    %v1669 = vmul.f32 %v962, %v1377
    %v1670 = vmul.f32 %v1001, %v1377
    %v1671 = vmul.f32 %v1003, %v1377
    %v1672 = vadd.f32 %v1668, %v1382
    %v1673 = vadd.f32 %v1669, %v1382
    %v1674 = vadd.f32 %v1670, %v1382
    %v1675 = vadd.f32 %v1671, %v1382
    %vm1676 = vcmp.ge.f32.partialorder %v1672, 0.0
    %vm1677 = vcmp.ge.f32.partialorder %v1673, 0.0
    %vm1678 = vcmp.ge.f32.partialorder %v1674, 0.0
    %vm1679 = vcmp.ge.f32.partialorder %v1675, 0.0
    %v1680 = vmul.f32 %v1672, 0.1
    %v1681 = vmul.f32 %v1673, 0.1
    %v1682 = vmul.f32 %v1674, 0.1
    %v1683 = vmul.f32 %v1675, 0.1
    %v1684 = vsel %vm1676, %v1672, %v1680
    %v1685 = vsel %vm1677, %v1673, %v1681
    %v1686 = vsel %vm1678, %v1674, %v1682
    %v1687 = vsel %vm1679, %v1675, %v1683
    %s1688 = sld [smem:[#allocation2 + $0x5]]
    %v1689 = vstv %s1688
    %v1690 = vmul.f32 %v1684, %v1689
    %v1691 = vmul.f32 %v1685, %v1689
    %v1692 = vmul.f32 %v1686, %v1689
    %v1693 = vmul.f32 %v1687, %v1689
    %v1694 = vadd.f32 %v1634, %v1690
    %v1695 = vadd.f32 %v1635, %v1691
    %v1696 = vadd.f32 %v1636, %v1692
    %v1697 = vadd.f32 %v1637, %v1693
    %s1698 = sld [smem:[#allocation2 + $0x85]]
    %v1699 = vstv %s1698
    %v1700 = vmul.f32 %v1684, %v1699
    %v1701 = vmul.f32 %v1685, %v1699
    %v1702 = vmul.f32 %v1686, %v1699
    %v1703 = vmul.f32 %v1687, %v1699
    %v1704 = vadd.f32 %v1644, %v1700
    %v1705 = vadd.f32 %v1645, %v1701
    %v1706 = vadd.f32 %v1646, %v1702
    %v1707 = vadd.f32 %v1647, %v1703
    %s1708 = sld [smem:[#allocation2 + $0x105]]
    %v1709 = vstv %s1708
    %v1710 = vmul.f32 %v1684, %v1709
    %v1711 = vmul.f32 %v1685, %v1709
    %v1712 = vmul.f32 %v1686, %v1709
    %v1713 = vmul.f32 %v1687, %v1709
    %v1714 = vadd.f32 %v1654, %v1710
    %v1715 = vadd.f32 %v1655, %v1711
    %v1716 = vadd.f32 %v1656, %v1712
    %v1717 = vadd.f32 %v1657, %v1713
    %s1718 = sld [smem:[#allocation2 + $0x185]]
    %v1719 = vstv %s1718
    %v1720 = vmul.f32 %v1684, %v1719
    %v1721 = vmul.f32 %v1685, %v1719
    %v1722 = vmul.f32 %v1686, %v1719
    %v1723 = vmul.f32 %v1687, %v1719
    %v1724 = vadd.f32 %v1664, %v1720
    %v1725 = vadd.f32 %v1665, %v1721
    %v1726 = vadd.f32 %v1666, %v1722
    %v1727 = vadd.f32 %v1667, %v1723
    %v1728 = vmul.f32 %v1042, %v1377
    %v1729 = vmul.f32 %v1044, %v1377
    %v1730 = vmul.f32 %v1083, %v1377
    %v1731 = vmul.f32 %v1085, %v1377
    %v1732 = vadd.f32 %v1728, %v1382
    %v1733 = vadd.f32 %v1729, %v1382
    %v1734 = vadd.f32 %v1730, %v1382
    %v1735 = vadd.f32 %v1731, %v1382
    %vm1736 = vcmp.ge.f32.partialorder %v1732, 0.0
    %vm1737 = vcmp.ge.f32.partialorder %v1733, 0.0
    %vm1738 = vcmp.ge.f32.partialorder %v1734, 0.0
    %vm1739 = vcmp.ge.f32.partialorder %v1735, 0.0
    %v1740 = vmul.f32 %v1732, 0.1
    %v1741 = vmul.f32 %v1733, 0.1
    %v1742 = vmul.f32 %v1734, 0.1
    %v1743 = vmul.f32 %v1735, 0.1
    %v1744 = vsel %vm1736, %v1732, %v1740
    %v1745 = vsel %vm1737, %v1733, %v1741
    %v1746 = vsel %vm1738, %v1734, %v1742
    %v1747 = vsel %vm1739, %v1735, %v1743
    %s1748 = sld [smem:[#allocation2 + $0x6]]
    %v1749 = vstv %s1748
    %v1750 = vmul.f32 %v1744, %v1749
    %v1751 = vmul.f32 %v1745, %v1749
    %v1752 = vmul.f32 %v1746, %v1749
    %v1753 = vmul.f32 %v1747, %v1749
    %v1754 = vadd.f32 %v1694, %v1750
    %v1755 = vadd.f32 %v1695, %v1751
    %v1756 = vadd.f32 %v1696, %v1752
    %v1757 = vadd.f32 %v1697, %v1753
    %s1758 = sld [smem:[#allocation2 + $0x86]]
    %v1759 = vstv %s1758
    %v1760 = vmul.f32 %v1744, %v1759
    %v1761 = vmul.f32 %v1745, %v1759
    %v1762 = vmul.f32 %v1746, %v1759
    %v1763 = vmul.f32 %v1747, %v1759
    %v1764 = vadd.f32 %v1704, %v1760
    %v1765 = vadd.f32 %v1705, %v1761
    %v1766 = vadd.f32 %v1706, %v1762
    %v1767 = vadd.f32 %v1707, %v1763
    %s1768 = sld [smem:[#allocation2 + $0x106]]
    %v1769 = vstv %s1768
    %v1770 = vmul.f32 %v1744, %v1769
    %v1771 = vmul.f32 %v1745, %v1769
    %v1772 = vmul.f32 %v1746, %v1769
    %v1773 = vmul.f32 %v1747, %v1769
    %v1774 = vadd.f32 %v1714, %v1770
    %v1775 = vadd.f32 %v1715, %v1771
    %v1776 = vadd.f32 %v1716, %v1772
    %v1777 = vadd.f32 %v1717, %v1773
    %s1778 = sld [smem:[#allocation2 + $0x186]]
    %v1779 = vstv %s1778
    %v1780 = vmul.f32 %v1744, %v1779
    %v1781 = vmul.f32 %v1745, %v1779
    %v1782 = vmul.f32 %v1746, %v1779
    %v1783 = vmul.f32 %v1747, %v1779
    %v1784 = vadd.f32 %v1724, %v1780
    %v1785 = vadd.f32 %v1725, %v1781
    %v1786 = vadd.f32 %v1726, %v1782
    %v1787 = vadd.f32 %v1727, %v1783
    %v1788 = vmul.f32 %v1124, %v1377
    %v1789 = vmul.f32 %v1126, %v1377
    %v1790 = vmul.f32 %v1165, %v1377
    %v1791 = vmul.f32 %v1167, %v1377
    %v1792 = vadd.f32 %v1788, %v1382
    %v1793 = vadd.f32 %v1789, %v1382
    %v1794 = vadd.f32 %v1790, %v1382
    %v1795 = vadd.f32 %v1791, %v1382
    %vm1796 = vcmp.ge.f32.partialorder %v1792, 0.0
    %vm1797 = vcmp.ge.f32.partialorder %v1793, 0.0
    %vm1798 = vcmp.ge.f32.partialorder %v1794, 0.0
    %vm1799 = vcmp.ge.f32.partialorder %v1795, 0.0
    %v1800 = vmul.f32 %v1792, 0.1
    %v1801 = vmul.f32 %v1793, 0.1
    %v1802 = vmul.f32 %v1794, 0.1
    %v1803 = vmul.f32 %v1795, 0.1
    %v1804 = vsel %vm1796, %v1792, %v1800
    %v1805 = vsel %vm1797, %v1793, %v1801
    %v1806 = vsel %vm1798, %v1794, %v1802
    %v1807 = vsel %vm1799, %v1795, %v1803
    %s1808 = sld [smem:[#allocation2 + $0x7]]
    %v1809 = vstv %s1808
    %v1810 = vmul.f32 %v1804, %v1809
    %v1811 = vmul.f32 %v1805, %v1809
    %v1812 = vmul.f32 %v1806, %v1809
    %v1813 = vmul.f32 %v1807, %v1809
    %v1814 = vadd.f32 %v1754, %v1810
    %v1815 = vadd.f32 %v1755, %v1811
    %v1816 = vadd.f32 %v1756, %v1812
    %v1817 = vadd.f32 %v1757, %v1813
    %s1818 = sld [smem:[#allocation2 + $0x87]]
    %v1819 = vstv %s1818
    %v1820 = vmul.f32 %v1804, %v1819
    %v1821 = vmul.f32 %v1805, %v1819
    %v1822 = vmul.f32 %v1806, %v1819
    %v1823 = vmul.f32 %v1807, %v1819
    %v1824 = vadd.f32 %v1764, %v1820
    %v1825 = vadd.f32 %v1765, %v1821
    %v1826 = vadd.f32 %v1766, %v1822
    %v1827 = vadd.f32 %v1767, %v1823
    %s1828 = sld [smem:[#allocation2 + $0x107]]
    %v1829 = vstv %s1828
    %v1830 = vmul.f32 %v1804, %v1829
    %v1831 = vmul.f32 %v1805, %v1829
    %v1832 = vmul.f32 %v1806, %v1829
    %v1833 = vmul.f32 %v1807, %v1829
    %v1834 = vadd.f32 %v1774, %v1830
    %v1835 = vadd.f32 %v1775, %v1831
    %v1836 = vadd.f32 %v1776, %v1832
    %v1837 = vadd.f32 %v1777, %v1833
    %s1838 = sld [smem:[#allocation2 + $0x187]]
    %v1839 = vstv %s1838
    %v1840 = vmul.f32 %v1804, %v1839
    %v1841 = vmul.f32 %v1805, %v1839
    %v1842 = vmul.f32 %v1806, %v1839
    %v1843 = vmul.f32 %v1807, %v1839
    %v1844 = vadd.f32 %v1784, %v1840
    %v1845 = vadd.f32 %v1785, %v1841
    %v1846 = vadd.f32 %v1786, %v1842
    %v1847 = vadd.f32 %v1787, %v1843
    %s1848 = sld [smem:[#allocation4]]
    %v1849 = vstv %s1848
    %v1850 = vadd.f32 %v1814, %v1849
    %v1851 = vadd.f32 %v1815, %v1849
    %v1852 = vadd.f32 %v1816, %v1849
    %v1853 = vadd.f32 %v1817, %v1849
    %vm1854 = vcmp.ge.f32.partialorder %v1850, 0.0
    %vm1855 = vcmp.ge.f32.partialorder %v1851, 0.0
    %vm1856 = vcmp.ge.f32.partialorder %v1852, 0.0
    %vm1857 = vcmp.ge.f32.partialorder %v1853, 0.0
    %v1858 = vmul.f32 %v1850, 0.1
    %v1859 = vmul.f32 %v1851, 0.1
    %v1860 = vmul.f32 %v1852, 0.1
    %v1861 = vmul.f32 %v1853, 0.1
    %v1862 = vsel %vm1854, %v1850, %v1858
    %v1863 = vsel %vm1855, %v1851, %v1859
    %v1864 = vsel %vm1856, %v1852, %v1860
    %v1865 = vsel %vm1857, %v1853, %v1861
    %v1866 = vpack.c.bf16 %v1862, %v1862
    %v1867 = vpack.c.bf16 %v1863, %v1863
    %v1868 = vpack.c.bf16 %v1864, %v1864
    %v1869 = vpack.c.bf16 %v1865, %v1865
    %v1874 = vcombine.low %v1866, %v1867
    %v1875 = vcombine.low %v1868, %v1869
    %v1877 = vunpack.c.l.s4 1983009808
    %v1878 = vunpack.c.0.s8 %v1877
    %v1879 = vlaneseq
    %v1880 = vshrl.u32 %v1879, 7
    %v1881 = vsub.s32 %v1878, %v1880
    %v1882 = vrot.slane %v1874, %v1881
    %v1884 = vunpack.c.l.s4 1983009808
    %v1885 = vunpack.c.0.s8 %v1884
    %v1886 = vlaneseq
    %v1887 = vshrl.u32 %v1886, 7
    %v1888 = vsub.s32 %v1885, %v1887
    %v1889 = vrot.slane %v1875, %v1888
    %v1890 = vcombine.low %v1882, %v1889
    %1892 = vst [vmem:[%s7] sm:$0xff] %v1890
    %s1893 = sld [smem:[#allocation4 + $0x1]]
    %v1894 = vstv %s1893
    %v1895 = vadd.f32 %v1824, %v1894
    %v1896 = vadd.f32 %v1825, %v1894
    %v1897 = vadd.f32 %v1826, %v1894
    %v1898 = vadd.f32 %v1827, %v1894
    %vm1899 = vcmp.ge.f32.partialorder %v1895, 0.0
    %vm1900 = vcmp.ge.f32.partialorder %v1896, 0.0
    %vm1901 = vcmp.ge.f32.partialorder %v1897, 0.0
    %vm1902 = vcmp.ge.f32.partialorder %v1898, 0.0
    %v1903 = vmul.f32 %v1895, 0.1
    %v1904 = vmul.f32 %v1896, 0.1
    %v1905 = vmul.f32 %v1897, 0.1
    %v1906 = vmul.f32 %v1898, 0.1
    %v1907 = vsel %vm1899, %v1895, %v1903
    %v1908 = vsel %vm1900, %v1896, %v1904
    %v1909 = vsel %vm1901, %v1897, %v1905
    %v1910 = vsel %vm1902, %v1898, %v1906
    %v1911 = vpack.c.bf16 %v1907, %v1907
    %v1912 = vpack.c.bf16 %v1908, %v1908
    %v1913 = vpack.c.bf16 %v1909, %v1909
    %v1914 = vpack.c.bf16 %v1910, %v1910
    %v1919 = vcombine.low %v1911, %v1912
    %v1920 = vcombine.low %v1913, %v1914
    %v1922 = vunpack.c.l.s4 1983009808
    %v1923 = vunpack.c.0.s8 %v1922
    %v1924 = vlaneseq
    %v1925 = vshrl.u32 %v1924, 7
    %v1926 = vsub.s32 %v1923, %v1925
    %v1927 = vrot.slane %v1919, %v1926
    %v1929 = vunpack.c.l.s4 1983009808
    %v1930 = vunpack.c.0.s8 %v1929
    %v1931 = vlaneseq
    %v1932 = vshrl.u32 %v1931, 7
    %v1933 = vsub.s32 %v1930, %v1932
    %v1934 = vrot.slane %v1920, %v1933
    %v1935 = vcombine.low %v1927, %v1934
    %1937 = vst [vmem:[%s7 + $0x8] sm:$0xff] %v1935
    %s1938 = sld [smem:[#allocation4 + $0x2]]
    %v1939 = vstv %s1938
    %v1940 = vadd.f32 %v1834, %v1939
    %v1941 = vadd.f32 %v1835, %v1939
    %v1942 = vadd.f32 %v1836, %v1939
    %v1943 = vadd.f32 %v1837, %v1939
    %vm1944 = vcmp.ge.f32.partialorder %v1940, 0.0
    %vm1945 = vcmp.ge.f32.partialorder %v1941, 0.0
    %vm1946 = vcmp.ge.f32.partialorder %v1942, 0.0
    %vm1947 = vcmp.ge.f32.partialorder %v1943, 0.0
    %v1948 = vmul.f32 %v1940, 0.1
    %v1949 = vmul.f32 %v1941, 0.1
    %v1950 = vmul.f32 %v1942, 0.1
    %v1951 = vmul.f32 %v1943, 0.1
    %v1952 = vsel %vm1944, %v1940, %v1948
    %v1953 = vsel %vm1945, %v1941, %v1949
    %v1954 = vsel %vm1946, %v1942, %v1950
    %v1955 = vsel %vm1947, %v1943, %v1951
    %v1956 = vpack.c.bf16 %v1952, %v1952
    %v1957 = vpack.c.bf16 %v1953, %v1953
    %v1958 = vpack.c.bf16 %v1954, %v1954
    %v1959 = vpack.c.bf16 %v1955, %v1955
    %v1964 = vcombine.low %v1956, %v1957
    %v1965 = vcombine.low %v1958, %v1959
    %v1967 = vunpack.c.l.s4 1983009808
    %v1968 = vunpack.c.0.s8 %v1967
    %v1969 = vlaneseq
    %v1970 = vshrl.u32 %v1969, 7
    %v1971 = vsub.s32 %v1968, %v1970
    %v1972 = vrot.slane %v1964, %v1971
    %v1974 = vunpack.c.l.s4 1983009808
    %v1975 = vunpack.c.0.s8 %v1974
    %v1976 = vlaneseq
    %v1977 = vshrl.u32 %v1976, 7
    %v1978 = vsub.s32 %v1975, %v1977
    %v1979 = vrot.slane %v1965, %v1978
    %v1980 = vcombine.low %v1972, %v1979
    %1982 = vst [vmem:[%s7 + $0x10] sm:$0xff] %v1980
    %s1983 = sld [smem:[#allocation4 + $0x3]]
    %v1984 = vstv %s1983
    %v1985 = vadd.f32 %v1844, %v1984
    %v1986 = vadd.f32 %v1845, %v1984
    %v1987 = vadd.f32 %v1846, %v1984
    %v1988 = vadd.f32 %v1847, %v1984
    %vm1989 = vcmp.ge.f32.partialorder %v1985, 0.0
    %vm1990 = vcmp.ge.f32.partialorder %v1986, 0.0
    %vm1991 = vcmp.ge.f32.partialorder %v1987, 0.0
    %vm1992 = vcmp.ge.f32.partialorder %v1988, 0.0
    %v1993 = vmul.f32 %v1985, 0.1
    %v1994 = vmul.f32 %v1986, 0.1
    %v1995 = vmul.f32 %v1987, 0.1
    %v1996 = vmul.f32 %v1988, 0.1
    %v1997 = vsel %vm1989, %v1985, %v1993
    %v1998 = vsel %vm1990, %v1986, %v1994
    %v1999 = vsel %vm1991, %v1987, %v1995
    %v2000 = vsel %vm1992, %v1988, %v1996
    %v2001 = vpack.c.bf16 %v1997, %v1997
    %v2002 = vpack.c.bf16 %v1998, %v1998
    %v2003 = vpack.c.bf16 %v1999, %v1999
    %v2004 = vpack.c.bf16 %v2000, %v2000
    %v2009 = vcombine.low %v2001, %v2002
    %v2010 = vcombine.low %v2003, %v2004
    %v2012 = vunpack.c.l.s4 1983009808
    %v2013 = vunpack.c.0.s8 %v2012
    %v2014 = vlaneseq
    %v2015 = vshrl.u32 %v2014, 7
    %v2016 = vsub.s32 %v2013, %v2015
    %v2017 = vrot.slane %v2009, %v2016
    %v2019 = vunpack.c.l.s4 1983009808
    %v2020 = vunpack.c.0.s8 %v2019
    %v2021 = vlaneseq
    %v2022 = vshrl.u32 %v2021, 7
    %v2023 = vsub.s32 %v2020, %v2022
    %v2024 = vrot.slane %v2010, %v2023
    %v2025 = vcombine.low %v2017, %v2024
    %2027 = vst [vmem:[%s7 + $0x18] sm:$0xff] %v2025
    // Predicated region
    $region38: #{forward.4} parent=1 // pred_check
      _
    $region39: #{forward.4} parent=1 // pred_check_branch
      %2029 = sbr.rel (0) target = $region41
    $region40: #{forward.4} parent=1 // pred_region
      _
    $region41: #{forward.4} parent=1 // pred_fallthru
      _
    // Predicated region
    $region42: #{forward.4} parent=1 // pred_check
      _
    $region43: #{forward.4} parent=1 // pred_check_branch
      %2031 = sbr.rel (0) target = $region45
    $region44: #{forward.4} parent=1 // pred_region
      _
    $region45: #{forward.4} parent=1 // pred_fallthru
      _
    %2032 = vsyncpa [#allocation3], 1
    %2033 = vsyncpa [#allocation5], 1

// kernel: forward.5
$region0: #{forward.5}
  #allocation0 [shape = 'u32[]', space=smem, size = 0x4, offset = 0x4, fixed_abs, tag = 'smem constant byte address 0x4 - core index']
  #allocation1 [shape = 'u32[144,128]{1,0:T(1,128)}', space=vmem, size = 0x12000, scoped, tag = 'internal scratch']
  %s0 = inlined_call_operand.vmem [shape: bf16[100,512], index: 0, kind: input, shape index: {}]
  %s1 = inlined_call_operand.vmem [shape: bf16[8,100], index: 1, kind: input, shape index: {}]
  %s2 = inlined_call_operand.vmem [shape: f32[8,1], index: 2, kind: input, shape index: {}]
  %s3 = inlined_call_operand.vmem [shape: f32[8,1], index: 3, kind: input, shape index: {}]
  %s4 = inlined_call_operand.vmem [shape: f32[8,1], index: 4, kind: input, shape index: {}]
  %s5 = inlined_call_operand.vmem [shape: f32[2,4], index: 5, kind: input, shape index: {}]
  %s6 = inlined_call_operand.vmem [shape: f32[2], index: 6, kind: input, shape index: {}]
  %s7 = inlined_call_operand.vmem [shape: bf16[8,256], index: 7, kind: output, shape index: {}]
  %s8 = sld [smem:[#allocation0]]
  $region46: #{forward.5} parent=0
    _
  %s10 = ssub.s32 1, %s8
  %s11 = scalar_select 0, %s10, %s8
  $region1: #{forward.5} parent=0
    #allocation2 [shape = 'u8[1024]{0}', space=smem, size = 0x400, scoped, tag = 'input window, operand 5, single buffered']
    #allocation3 [shape = 's32[1]{0}', space=sflag, size = 0x4, scoped, tag = 'scoped memory for forward.5']
    #allocation4 [shape = 'u8[512]{0}', space=smem, size = 0x200, scoped, tag = 'input window, operand 6, single buffered']
    #allocation5 [shape = 's32[1]{0}', space=sflag, size = 0x4, scoped, tag = 'scoped memory for forward.5']
    %12 = vsyncpa [#allocation3], 0
    %13 = vsyncpa [#allocation5], 0
    // Predicated region
    $region2: #{forward.5} parent=1 // pred_check
      _
    $region3: #{forward.5} parent=1 // pred_check_branch
      %15 = sbr.rel (0) target = $region5
    $region4: #{forward.5} parent=1 // pred_region
      _
    $region5: #{forward.5} parent=1 // pred_fallthru
      _
    // Predicated region
    $region6: #{forward.5} parent=1 // pred_check
      _
    $region7: #{forward.5} parent=1 // pred_check_branch
      %17 = sbr.rel (0) target = $region9
    $region8: #{forward.5} parent=1 // pred_region
      _
    $region9: #{forward.5} parent=1 // pred_fallthru
      _
    // Predicated region
    $region10: #{forward.5} parent=1 // pred_check
      _
    $region11: #{forward.5} parent=1 // pred_check_branch
      %19 = sbr.rel (0) target = $region13
    $region12: #{forward.5} parent=1 // pred_region
      _
    $region13: #{forward.5} parent=1 // pred_fallthru
      _
    // Predicated region
    $region14: #{forward.5} parent=1 // pred_check
      _
    $region15: #{forward.5} parent=1 // pred_check_branch
      %21 = sbr.rel (0) target = $region17
    $region16: #{forward.5} parent=1 // pred_region
      _
    $region17: #{forward.5} parent=1 // pred_fallthru
      _
    // Predicated region
    $region18: #{forward.5} parent=1 // pred_check
      _
    $region19: #{forward.5} parent=1 // pred_check_branch
      %23 = sbr.rel (0) target = $region21
    $region20: #{forward.5} parent=1 // pred_region
      _
    $region21: #{forward.5} parent=1 // pred_fallthru
      _
    // Predicated region
    $region22: #{forward.5} parent=1 // pred_check
      _
    $region23: #{forward.5} parent=1 // pred_check_branch
      %25 = sbr.rel (0) target = $region25
    $region24: #{forward.5} parent=1 // pred_region
      %s27 = ssub.s32 32, 32
      %28 = vsyncadd [#allocation3], %s27
      %s30 = sshll.u32 %s5, 4
      %s31 = int_to_ptr.vmem [resolvable:$true] %s30
      %33 = dma.vmem_to_smem %s31, 32, [#allocation2], [#allocation3]
    $region25: #{forward.5} parent=1 // pred_fallthru
      _
    // Predicated region
    $region26: #{forward.5} parent=1 // pred_check
      _
    $region27: #{forward.5} parent=1 // pred_check_branch
      %35 = sbr.rel (0) target = $region29
    $region28: #{forward.5} parent=1 // pred_region
      %s37 = ssub.s32 16, 16
      %38 = vsyncadd [#allocation5], %s37
      %s40 = sshll.u32 %s6, 4
      %s41 = int_to_ptr.vmem [resolvable:$true] %s40
      %43 = dma.vmem_to_smem %s41, 16, [#allocation4], [#allocation5]
    $region29: #{forward.5} parent=1 // pred_fallthru
      _
    // Predicated region
    $region30: #{forward.5} parent=1 // pred_check
      _
    $region31: #{forward.5} parent=1 // pred_check_branch
      %45 = sbr.rel (0) target = $region33
    $region32: #{forward.5} parent=1 // pred_region
      %46 = dma.done [#allocation3], 32
    $region33: #{forward.5} parent=1 // pred_fallthru
      _
    // Predicated region
    $region34: #{forward.5} parent=1 // pred_check
      _
    $region35: #{forward.5} parent=1 // pred_check_branch
      %48 = sbr.rel (0) target = $region37
    $region36: #{forward.5} parent=1 // pred_region
      %49 = dma.done [#allocation5], 16
    $region37: #{forward.5} parent=1 // pred_fallthru
      _
    %50 = sfence
    %v52 = vld [vmem:[%s1] sm:$0xf]
    %v53 = vld [vmem:[%s0] sm:$0xff]
    %v54 = vld [vmem:[%s0 + $0x8] sm:$0xff]
    %v55 = vld [vmem:[%s0 + $0x10] sm:$0xff]
    %v56 = vld [vmem:[%s0 + $0x18] sm:$0xff]
    %v57 = vld [vmem:[%s0 + $0x20] sm:$0xff]
    %v58 = vld [vmem:[%s0 + $0x28] sm:$0xff]
    %v59 = vld [vmem:[%s0 + $0x30] sm:$0xff]
    %v60 = vld [vmem:[%s0 + $0x38] sm:$0xff]
    %v61 = vld [vmem:[%s0 + $0x40] sm:$0xff]
    %v62 = vld [vmem:[%s0 + $0x48] sm:$0xff]
    %v63 = vld [vmem:[%s0 + $0x50] sm:$0xff]
    %v64 = vld [vmem:[%s0 + $0x58] sm:$0xff]
    %v65 = vld [vmem:[%s0 + $0x60] sm:$0xff]
    %v66 = vld [vmem:[%s0 + $0x68] sm:$0xff]
    %v67 = vld [vmem:[%s0 + $0x70] sm:$0xff]
    %v68 = vld [vmem:[%s0 + $0x78] sm:$0xff]
    %v69 = vld [vmem:[%s0 + $0x80] sm:$0xff]
    %v70 = vld [vmem:[%s0 + $0x88] sm:$0xff]
    %v71 = vld [vmem:[%s0 + $0x90] sm:$0xff]
    %v72 = vld [vmem:[%s0 + $0x98] sm:$0xff]
    %v73 = vld [vmem:[%s0 + $0xa0] sm:$0xff]
    %v74 = vld [vmem:[%s0 + $0xa8] sm:$0xff]
    %v75 = vld [vmem:[%s0 + $0xb0] sm:$0xff]
    %v76 = vld [vmem:[%s0 + $0xb8] sm:$0xff]
    %v77 = vld [vmem:[%s0 + $0xc0] sm:$0x33]
    %v78 = vld [vmem:[%s0 + $0xc8] sm:$0x33]
    %v79 = vld [vmem:[%s2] sm:$0xff]
    %81 = vset.pattern.permute.xlu0 0
    %82 = vperm.xlu0 %81, %v79
    %v83 = vpop.permute.xlu0 %82
    %v111 = vunpack.c.l.b16 %v53
    %v112 = vunpack.c.h.b16 %v53
    %v113 = vunpack.c.l.b16 %v54
    %v114 = vunpack.c.h.b16 %v54
    %v115 = vunpack.c.l.b16 %v55
    %v116 = vunpack.c.h.b16 %v55
    %v117 = vunpack.c.l.b16 %v56
    %v118 = vunpack.c.h.b16 %v56
    %v119 = vunpack.c.l.b16 %v57
    %v120 = vunpack.c.h.b16 %v57
    %v121 = vunpack.c.l.b16 %v58
    %v122 = vunpack.c.h.b16 %v58
    %v123 = vunpack.c.l.b16 %v59
    %v124 = vunpack.c.h.b16 %v59
    %v125 = vunpack.c.l.b16 %v60
    %v126 = vunpack.c.h.b16 %v60
    %v127 = vunpack.c.l.b16 %v61
    %v128 = vunpack.c.h.b16 %v61
    %v129 = vunpack.c.l.b16 %v62
    %v130 = vunpack.c.h.b16 %v62
    %v131 = vunpack.c.l.b16 %v63
    %v132 = vunpack.c.h.b16 %v63
    %v133 = vunpack.c.l.b16 %v64
    %v134 = vunpack.c.h.b16 %v64
    %v135 = vunpack.c.l.b16 %v65
    %v136 = vunpack.c.h.b16 %v65
    %v137 = vunpack.c.l.b16 %v66
    %v138 = vunpack.c.h.b16 %v66
    %v139 = vunpack.c.l.b16 %v67
    %v140 = vunpack.c.h.b16 %v67
    %v141 = vunpack.c.l.b16 %v68
    %v142 = vunpack.c.h.b16 %v68
    %v143 = vunpack.c.l.b16 %v69
    %v144 = vunpack.c.h.b16 %v69
    %v145 = vunpack.c.l.b16 %v70
    %v146 = vunpack.c.h.b16 %v70
    %v147 = vunpack.c.l.b16 %v71
    %v148 = vunpack.c.h.b16 %v71
    %v149 = vunpack.c.l.b16 %v72
    %v150 = vunpack.c.h.b16 %v72
    %v151 = vunpack.c.l.b16 %v73
    %v152 = vunpack.c.h.b16 %v73
    %v153 = vunpack.c.l.b16 %v74
    %v154 = vunpack.c.h.b16 %v74
    %v155 = vunpack.c.l.b16 %v75
    %v156 = vunpack.c.h.b16 %v75
    %v157 = vunpack.c.l.b16 %v76
    %v158 = vunpack.c.h.b16 %v76
    %v159 = vunpack.c.l.b16 %v77
    %v160 = vunpack.c.h.b16 %v77
    %v161 = vunpack.c.l.b16 %v78
    %v162 = vunpack.c.h.b16 %v78
    %v163 = vpack.c.b16 %v115, %v111
    %v164 = vpack.c.b16 %v116, %v112
    %v165 = vpack.c.b16 %v117, %v113
    %v166 = vpack.c.b16 %v118, %v114
    %v167 = vpack.c.b16 %v123, %v119
    %v168 = vpack.c.b16 %v124, %v120
    %v169 = vpack.c.b16 %v125, %v121
    %v170 = vpack.c.b16 %v126, %v122
    %v171 = vpack.c.b16 %v131, %v127
    %v172 = vpack.c.b16 %v132, %v128
    %v173 = vpack.c.b16 %v133, %v129
    %v174 = vpack.c.b16 %v134, %v130
    %v175 = vpack.c.b16 %v139, %v135
    %v176 = vpack.c.b16 %v140, %v136
    %v177 = vpack.c.b16 %v141, %v137
    %v178 = vpack.c.b16 %v142, %v138
    %v179 = vpack.c.b16 %v147, %v143
    %v180 = vpack.c.b16 %v148, %v144
    %v181 = vpack.c.b16 %v149, %v145
    %v182 = vpack.c.b16 %v150, %v146
    %v183 = vpack.c.b16 %v155, %v151
    %v184 = vpack.c.b16 %v156, %v152
    %v185 = vpack.c.b16 %v157, %v153
    %v186 = vpack.c.b16 %v158, %v154
    %v187 = vpack.c.b16 %v159, %v159
    %v188 = vpack.c.b16 %v160, %v160
    %v189 = vpack.c.b16 %v161, %v161
    %v190 = vpack.c.b16 %v162, %v162
    %vm215 = vcmask 818176
    %v217 = vsel %vm215, %v52, 0
    %vm219 = vcmask 1041408
    %v221 = vsel %vm219, %v187, 0
    %v224 = vsel %vm219, %v188, 0
    %v227 = vsel %vm219, %v189, 0
    %v230 = vsel %vm219, %v190, 0
    %232 = vmatprep.subr.bf16.mxu0 %v164
    %233 = vmatpush1.bf16.msra.mxu0 %v163
    %234 = vmatprep.subr.bf16.mxu0 %v168
    %235 = vmatpush1.bf16.msra.mxu0 %v167
    %236 = vmatprep.subr.bf16.mxu0 %v172
    %237 = vmatpush1.bf16.msra.mxu0 %v171
    %238 = vmatprep.subr.bf16.mxu0 %v176
    %239 = vmatpush1.bf16.msra.mxu0 %v175
    %240 = vmatprep.subr.bf16.mxu0 %v180
    %241 = vmatpush1.bf16.msra.mxu0 %v179
    %242 = vmatprep.subr.bf16.mxu0 %v184
    %243 = vmatpush1.bf16.msra.mxu0 %v183
    %244 = vmatprep.subr.bf16.mxu0 %v224
    %245 = vmatpush1.bf16.msra.mxu0 %v221
    %246 = vmatprep.subr.bf16.mxu0 0
    %247 = vmatpush1.bf16.msra.mxu0 0
    %248 = vmatprep.subr.bf16.mxu0 0
    %249 = vmatpush1.bf16.msra.mxu0 0
    %250 = vmatprep.subr.bf16.mxu0 0
    %251 = vmatpush1.bf16.msra.mxu0 0
    %252 = vmatprep.subr.bf16.mxu0 0
    %253 = vmatpush1.bf16.msra.mxu0 0
    %254 = vmatprep.subr.bf16.mxu0 0
    %255 = vmatpush1.bf16.msra.mxu0 0
    %256 = vmatprep.subr.bf16.mxu0 0
    %257 = vmatpush1.bf16.msra.mxu0 0
    %258 = vmatprep.subr.bf16.mxu0 0
    %259 = vmatpush1.bf16.msra.mxu0 0
    %260 = vmatprep.subr.bf16.mxu0 0
    %261 = vmatpush1.bf16.msra.mxu0 0
    %262 = vmatprep.subr.bf16.mxu0 0
    %263 = vmatpush1.bf16.msra.mxu0 0
    %264 = vmatprep.mubr.bf16.mxu0 0
    %265 = vmatmul.mubr.bf16.gmra.mrb[0].mxu0 %v217
    %v266 = vpop.f32.mrb[0].mxu0
    %v267 = vadd.f32 %v83, %v266
    %v268 = vpop.f32.mrb[0].mxu0
    %v269 = vadd.f32 %v83, %v268
    %v270 = vpop.f32.mrb[0].mxu0
    %v271 = vpop.f32.mrb[0].mxu0
    %272 = vdwg.mxu0
    %273 = vmatprep.subr.bf16.mxu0 %v166
    %274 = vmatpush1.bf16.msra.mxu0 %v165
    %275 = vmatprep.subr.bf16.mxu0 %v170
    %276 = vmatpush1.bf16.msra.mxu0 %v169
    %277 = vmatprep.subr.bf16.mxu0 %v174
    %278 = vmatpush1.bf16.msra.mxu0 %v173
    %279 = vmatprep.subr.bf16.mxu0 %v178
    %280 = vmatpush1.bf16.msra.mxu0 %v177
    %281 = vmatprep.subr.bf16.mxu0 %v182
    %282 = vmatpush1.bf16.msra.mxu0 %v181
    %283 = vmatprep.subr.bf16.mxu0 %v186
    %284 = vmatpush1.bf16.msra.mxu0 %v185
    %285 = vmatprep.subr.bf16.mxu0 %v230
    %286 = vmatpush1.bf16.msra.mxu0 %v227
    %287 = vmatprep.subr.bf16.mxu0 0
    %288 = vmatpush1.bf16.msra.mxu0 0
    %289 = vmatprep.subr.bf16.mxu0 0
    %290 = vmatpush1.bf16.msra.mxu0 0
    %291 = vmatprep.subr.bf16.mxu0 0
    %292 = vmatpush1.bf16.msra.mxu0 0
    %293 = vmatprep.subr.bf16.mxu0 0
    %294 = vmatpush1.bf16.msra.mxu0 0
    %295 = vmatprep.subr.bf16.mxu0 0
    %296 = vmatpush1.bf16.msra.mxu0 0
    %297 = vmatprep.subr.bf16.mxu0 0
    %298 = vmatpush1.bf16.msra.mxu0 0
    %299 = vmatprep.subr.bf16.mxu0 0
    %300 = vmatpush1.bf16.msra.mxu0 0
    %301 = vmatprep.subr.bf16.mxu0 0
    %302 = vmatpush1.bf16.msra.mxu0 0
    %303 = vmatprep.subr.bf16.mxu0 0
    %304 = vmatpush1.bf16.msra.mxu0 0
    %305 = vmatprep.mubr.bf16.mxu0 0
    %306 = vmatmul.mubr.bf16.gmra.mrb[0].mxu0 %v217
    %v307 = vpop.f32.mrb[0].mxu0
    %v308 = vadd.f32 %v83, %v307
    %v309 = vpop.f32.mrb[0].mxu0
    %v310 = vadd.f32 %v83, %v309
    %v311 = vpop.f32.mrb[0].mxu0
    %v312 = vpop.f32.mrb[0].mxu0
    %313 = vdwg.mxu0
    %v314 = vadd.f32 %v267, %v269
    %v315 = vadd.f32 %v314, %v308
    %v316 = vadd.f32 %v315, %v310
    %317 = vadd.xlane.f32.xlu0 %v316
    %v318 = vpop.xlane.xlu0 %317
    %v319 = vmul.f32 %v318, 0.001953125
    %v320 = vsub.f32 %v267, %v319
    %v321 = vsub.f32 %v269, %v319
    %v322 = vsub.f32 %v308, %v319
    %v323 = vsub.f32 %v310, %v319
    %v324 = vmul.f32 %v320, %v320
    %v325 = vmul.f32 %v321, %v321
    %v326 = vmul.f32 %v322, %v322
    %v327 = vmul.f32 %v323, %v323
    %v328 = vadd.f32 %v324, %v325
    %v329 = vadd.f32 %v328, %v326
    %v330 = vadd.f32 %v329, %v327
    %331 = vadd.xlane.f32.xlu0 %v330
    %v332 = vpop.xlane.xlu0 %331
    %v333 = vmul.f32 %v332, 0.001953125
    %v334 = vld [vmem:[%s3] sm:$0xff]
    %v335 = vadd.f32 %v333, 1e-05
    %v336 = vrsqrt.pop %v335
    %v337 = vmul.f32 %v334, %v336
    %v338 = vld [vmem:[%s4] sm:$0xff]
    %v339 = vmul.f32 %v319, %v337
    %v340 = vsub.f32 %v338, %v339
    %342 = vset.pattern.permute.xlu0 0
    %343 = vperm.xlu0 %342, %v337
    %v344 = vpop.permute.xlu0 %343
    %347 = vset.pattern.permute.xlu0 0
    %348 = vperm.xlu0 %347, %v340
    %v349 = vpop.permute.xlu0 %348
    %v351 = vmul.f32 %v267, %v344
    %v352 = vadd.f32 %v351, %v349
    %vm353 = vcmp.ge.f32.partialorder %v352, 0.0
    %v354 = vmul.f32 %v352, 0.1
    %v355 = vsel %vm353, %v352, %v354
    %s356 = sld [smem:[#allocation2]]
    %v357 = vstv %s356
    %v358 = vmul.f32 %v355, %v357
    %s359 = sld [smem:[#allocation2 + $0x80]]
    %v360 = vstv %s359
    %v361 = vmul.f32 %v355, %v360
    %v362 = vmul.f32 %v269, %v344
    %v363 = vadd.f32 %v362, %v349
    %vm364 = vcmp.ge.f32.partialorder %v363, 0.0
    %v365 = vmul.f32 %v363, 0.1
    %v366 = vsel %vm364, %v363, %v365
    %s367 = sld [smem:[#allocation2 + $0x1]]
    %v368 = vstv %s367
    %v369 = vmul.f32 %v366, %v368
    %v370 = vadd.f32 %v358, %v369
    %s371 = sld [smem:[#allocation2 + $0x81]]
    %v372 = vstv %s371
    %v373 = vmul.f32 %v366, %v372
    %v374 = vadd.f32 %v361, %v373
    %v375 = vmul.f32 %v308, %v344
    %v376 = vadd.f32 %v375, %v349
    %vm377 = vcmp.ge.f32.partialorder %v376, 0.0
    %v378 = vmul.f32 %v376, 0.1
    %v379 = vsel %vm377, %v376, %v378
    %s380 = sld [smem:[#allocation2 + $0x2]]
    %v381 = vstv %s380
    %v382 = vmul.f32 %v379, %v381
    %v383 = vadd.f32 %v370, %v382
    %s384 = sld [smem:[#allocation2 + $0x82]]
    %v385 = vstv %s384
    %v386 = vmul.f32 %v379, %v385
    %v387 = vadd.f32 %v374, %v386
    %v388 = vmul.f32 %v310, %v344
    %v389 = vadd.f32 %v388, %v349
    %vm390 = vcmp.ge.f32.partialorder %v389, 0.0
    %v391 = vmul.f32 %v389, 0.1
    %v392 = vsel %vm390, %v389, %v391
    %s393 = sld [smem:[#allocation2 + $0x3]]
    %v394 = vstv %s393
    %v395 = vmul.f32 %v392, %v394
    %v396 = vadd.f32 %v383, %v395
    %s397 = sld [smem:[#allocation2 + $0x83]]
    %v398 = vstv %s397
    %v399 = vmul.f32 %v392, %v398
    %v400 = vadd.f32 %v387, %v399
    %s401 = sld [smem:[#allocation4]]
    %v402 = vstv %s401
    %v403 = vadd.f32 %v396, %v402
    %vm404 = vcmp.ge.f32.partialorder %v403, 0.0
    %v405 = vmul.f32 %v403, 0.1
    %v406 = vsel %vm404, %v403, %v405
    %v407 = vpack.c.bf16 %v406, %v406
    %408 = vst [vmem:[%s7] sm:$0xf] %v407
    %s409 = sld [smem:[#allocation4 + $0x1]]
    %v410 = vstv %s409
    %v411 = vadd.f32 %v400, %v410
    %vm412 = vcmp.ge.f32.partialorder %v411, 0.0
    %v413 = vmul.f32 %v411, 0.1
    %v414 = vsel %vm412, %v411, %v413
    %v415 = vpack.c.bf16 %v414, %v414
    %416 = vst [vmem:[%s7 + $0x4] sm:$0xf] %v415
    // Predicated region
    $region38: #{forward.5} parent=1 // pred_check
      _
    $region39: #{forward.5} parent=1 // pred_check_branch
      %418 = sbr.rel (0) target = $region41
    $region40: #{forward.5} parent=1 // pred_region
      _
    $region41: #{forward.5} parent=1 // pred_fallthru
      _
    // Predicated region
    $region42: #{forward.5} parent=1 // pred_check
      _
    $region43: #{forward.5} parent=1 // pred_check_branch
      %420 = sbr.rel (0) target = $region45
    $region44: #{forward.5} parent=1 // pred_region
      _
    $region45: #{forward.5} parent=1 // pred_fallthru
      _
    %421 = vsyncpa [#allocation3], 1
    %422 = vsyncpa [#allocation5], 1

// kernel: forward.6
$region0: #{forward.6}
  #allocation0 [shape = 'u32[]', space=smem, size = 0x4, offset = 0x4, fixed_abs, tag = 'smem constant byte address 0x4 - core index']
  #allocation1 [shape = 'u32[144,128]{1,0:T(1,128)}', space=vmem, size = 0x12000, scoped, tag = 'internal scratch']
  #allocation2 [shape = 'f32[1]{0:T(128)S(6)}', space=smem, size = 0x200, scoped, tag = 'scoped memory for forward.6']
  %s0 = inlined_call_operand.vmem [shape: bf16[200,64], index: 0, kind: input, shape index: {}]
  %s1 = inlined_call_operand.vmem [shape: bf16[4,200], index: 1, kind: input, shape index: {}]
  %s2 = inlined_call_operand.vmem [shape: f32[4,1], index: 2, kind: input, shape index: {}]
  %s3 = inlined_call_operand.vmem [shape: f32[4,1], index: 3, kind: input, shape index: {}]
  %s4 = inlined_call_operand.vmem [shape: f32[4,1], index: 4, kind: input, shape index: {}]
  %s5 = inlined_call_operand.vmem [shape: f32[1,2], index: 5, kind: input, shape index: {}]
  %s6 = inlined_call_operand.<no memory space> [shape: f32[1], index: 6, kind: input, shape index: {}]
  %s7 = inlined_call_operand.vmem [shape: f32[4,32], index: 7, kind: output, shape index: {}]
  %s8 = sld [smem:[#allocation0]]
  $region42: #{forward.6} parent=0
    _
  %s10 = ssub.s32 1, %s8
  %s11 = scalar_select 0, %s10, %s8
  %12 = sst [smem:[#allocation2]] %s6
  $region1: #{forward.6} parent=0
    #allocation3 [shape = 'u8[512]{0}', space=smem, size = 0x200, scoped, tag = 'input window, operand 5, single buffered']
    #allocation4 [shape = 's32[1]{0}', space=sflag, size = 0x4, scoped, tag = 'scoped memory for forward.6']
    %13 = vsyncpa [#allocation4], 0
    // Predicated region
    $region2: #{forward.6} parent=1 // pred_check
      _
    $region3: #{forward.6} parent=1 // pred_check_branch
      %15 = sbr.rel (0) target = $region5
    $region4: #{forward.6} parent=1 // pred_region
      _
    $region5: #{forward.6} parent=1 // pred_fallthru
      _
    // Predicated region
    $region6: #{forward.6} parent=1 // pred_check
      _
    $region7: #{forward.6} parent=1 // pred_check_branch
      %17 = sbr.rel (0) target = $region9
    $region8: #{forward.6} parent=1 // pred_region
      _
    $region9: #{forward.6} parent=1 // pred_fallthru
      _
    // Predicated region
    $region10: #{forward.6} parent=1 // pred_check
      _
    $region11: #{forward.6} parent=1 // pred_check_branch
      %19 = sbr.rel (0) target = $region13
    $region12: #{forward.6} parent=1 // pred_region
      _
    $region13: #{forward.6} parent=1 // pred_fallthru
      _
    // Predicated region
    $region14: #{forward.6} parent=1 // pred_check
      _
    $region15: #{forward.6} parent=1 // pred_check_branch
      %21 = sbr.rel (0) target = $region17
    $region16: #{forward.6} parent=1 // pred_region
      _
    $region17: #{forward.6} parent=1 // pred_fallthru
      _
    // Predicated region
    $region18: #{forward.6} parent=1 // pred_check
      _
    $region19: #{forward.6} parent=1 // pred_check_branch
      %23 = sbr.rel (0) target = $region21
    $region20: #{forward.6} parent=1 // pred_region
      _
    $region21: #{forward.6} parent=1 // pred_fallthru
      _
    // Predicated region
    $region22: #{forward.6} parent=1 // pred_check
      _
    $region23: #{forward.6} parent=1 // pred_check_branch
      %25 = sbr.rel (0) target = $region25
    $region24: #{forward.6} parent=1 // pred_region
      %s27 = ssub.s32 16, 16
      %28 = vsyncadd [#allocation4], %s27
      %s30 = sshll.u32 %s5, 4
      %s31 = int_to_ptr.vmem [resolvable:$true] %s30
      %33 = dma.vmem_to_smem %s31, 16, [#allocation3], [#allocation4]
    $region25: #{forward.6} parent=1 // pred_fallthru
      _
    // Predicated region
    $region26: #{forward.6} parent=1 // pred_check
      _
    $region27: #{forward.6} parent=1 // pred_check_branch
      %35 = sbr.rel (0) target = $region29
    $region28: #{forward.6} parent=1 // pred_region
      _
    $region29: #{forward.6} parent=1 // pred_fallthru
      _
    // Predicated region
    $region30: #{forward.6} parent=1 // pred_check
      _
    $region31: #{forward.6} parent=1 // pred_check_branch
      %37 = sbr.rel (0) target = $region33
    $region32: #{forward.6} parent=1 // pred_region
      %38 = dma.done [#allocation4], 16
    $region33: #{forward.6} parent=1 // pred_fallthru
      _
    %39 = sfence
    %v41 = vld [vmem:[%s1] sm:$0xf]
    %v42 = vld [vmem:[%s0] sm:$0xf]
    %v43 = vld [vmem:[%s0 + $0x4] sm:$0xf]
    %v44 = vld [vmem:[%s0 + $0x8] sm:$0xf]
    %v45 = vld [vmem:[%s0 + $0xc] sm:$0xf]
    %v46 = vld [vmem:[%s0 + $0x10] sm:$0xf]
    %v47 = vld [vmem:[%s0 + $0x14] sm:$0xf]
    %v48 = vld [vmem:[%s0 + $0x18] sm:$0xf]
    %v49 = vld [vmem:[%s0 + $0x1c] sm:$0xf]
    %v50 = vld [vmem:[%s0 + $0x20] sm:$0xf]
    %v51 = vld [vmem:[%s0 + $0x24] sm:$0xf]
    %v52 = vld [vmem:[%s0 + $0x28] sm:$0xf]
    %v53 = vld [vmem:[%s0 + $0x2c] sm:$0xf]
    %v54 = vld [vmem:[%s0 + $0x30] sm:$0xf]
    %v55 = vld [vmem:[%s0 + $0x34] sm:$0xf]
    %v56 = vld [vmem:[%s0 + $0x38] sm:$0xf]
    %v57 = vld [vmem:[%s0 + $0x3c] sm:$0xf]
    %v58 = vld [vmem:[%s0 + $0x40] sm:$0xf]
    %v59 = vld [vmem:[%s0 + $0x44] sm:$0xf]
    %v60 = vld [vmem:[%s0 + $0x48] sm:$0xf]
    %v61 = vld [vmem:[%s0 + $0x4c] sm:$0xf]
    %v62 = vld [vmem:[%s0 + $0x50] sm:$0xf]
    %v63 = vld [vmem:[%s0 + $0x54] sm:$0xf]
    %v64 = vld [vmem:[%s0 + $0x58] sm:$0xf]
    %v65 = vld [vmem:[%s0 + $0x5c] sm:$0xf]
    %v66 = vld [vmem:[%s0 + $0x60] sm:$0xf]
    %v67 = vld [vmem:[%s2] sm:$0xf]
    %69 = vset.pattern.permute.xlu0 0
    %70 = vperm.xlu0 %69, %v67
    %v71 = vpop.permute.xlu0 %70
    %v75 = vunpack.c.l.s4 1983009808
    %v76 = vunpack.c.0.s8 %v75
    %v77 = vlaneseq
    %v78 = vshrl.u32 %v77, 7
    %v79 = vsub.s32 %v76, %v78
    %v80 = vrot.slane %v41, %v79
    %v81 = vcombine.high %v80, %v80
    %v108 = vunpack.c.l.b16 %v42
    %v109 = vunpack.c.l.b16 %v43
    %v110 = vunpack.c.l.b16 %v44
    %v111 = vunpack.c.l.b16 %v45
    %v112 = vunpack.c.l.b16 %v46
    %v113 = vunpack.c.l.b16 %v47
    %v114 = vunpack.c.l.b16 %v48
    %v115 = vunpack.c.l.b16 %v49
    %v116 = vunpack.c.l.b16 %v50
    %v117 = vunpack.c.l.b16 %v51
    %v118 = vunpack.c.l.b16 %v52
    %v119 = vunpack.c.l.b16 %v53
    %v120 = vunpack.c.l.b16 %v54
    %v121 = vunpack.c.l.b16 %v55
    %v122 = vunpack.c.l.b16 %v56
    %v123 = vunpack.c.l.b16 %v57
    %v124 = vunpack.c.l.b16 %v58
    %v125 = vunpack.c.l.b16 %v59
    %v126 = vunpack.c.l.b16 %v60
    %v127 = vunpack.c.l.b16 %v61
    %v128 = vunpack.c.l.b16 %v62
    %v129 = vunpack.c.l.b16 %v63
    %v130 = vunpack.c.l.b16 %v64
    %v131 = vunpack.c.l.b16 %v65
    %v132 = vunpack.c.l.b16 %v66
    %v133 = vpack.c.b16 %v109, %v108
    %v134 = vpack.c.b16 %v111, %v110
    %v135 = vpack.c.b16 %v113, %v112
    %v136 = vpack.c.b16 %v115, %v114
    %v137 = vpack.c.b16 %v117, %v116
    %v138 = vpack.c.b16 %v119, %v118
    %v139 = vpack.c.b16 %v121, %v120
    %v140 = vpack.c.b16 %v123, %v122
    %v141 = vpack.c.b16 %v125, %v124
    %v142 = vpack.c.b16 %v127, %v126
    %v143 = vpack.c.b16 %v129, %v128
    %v144 = vpack.c.b16 %v131, %v130
    %v145 = vpack.c.b16 %v132, %v132
    %vm158 = vcmask 588800
    %v160 = vsel %vm158, %v81, 0
    %vm162 = vcmask 1043456
    %v164 = vsel %vm162, %v145, 0
    %166 = vmatprep.subr.bf16.mxu0 0
    %167 = vmatpush1.bf16.msra.mxu0 %v133
    %168 = vmatprep.subr.bf16.mxu0 0
    %169 = vmatpush1.bf16.msra.mxu0 %v134
    %170 = vmatprep.subr.bf16.mxu0 0
    %171 = vmatpush1.bf16.msra.mxu0 %v135
    %172 = vmatprep.subr.bf16.mxu0 0
    %173 = vmatpush1.bf16.msra.mxu0 %v136
    %174 = vmatprep.subr.bf16.mxu0 0
    %175 = vmatpush1.bf16.msra.mxu0 %v137
    %176 = vmatprep.subr.bf16.mxu0 0
    %177 = vmatpush1.bf16.msra.mxu0 %v138
    %178 = vmatprep.subr.bf16.mxu0 0
    %179 = vmatpush1.bf16.msra.mxu0 %v139
    %180 = vmatprep.subr.bf16.mxu0 0
    %181 = vmatpush1.bf16.msra.mxu0 %v140
    %182 = vmatprep.subr.bf16.mxu0 0
    %183 = vmatpush1.bf16.msra.mxu0 %v141
    %184 = vmatprep.subr.bf16.mxu0 0
    %185 = vmatpush1.bf16.msra.mxu0 %v142
    %186 = vmatprep.subr.bf16.mxu0 0
    %187 = vmatpush1.bf16.msra.mxu0 %v143
    %188 = vmatprep.subr.bf16.mxu0 0
    %189 = vmatpush1.bf16.msra.mxu0 %v144
    %190 = vmatprep.subr.bf16.mxu0 0
    %191 = vmatpush1.bf16.msra.mxu0 %v164
    %192 = vmatprep.subr.bf16.mxu0 0
    %193 = vmatpush1.bf16.msra.mxu0 0
    %194 = vmatprep.subr.bf16.mxu0 0
    %195 = vmatpush1.bf16.msra.mxu0 0
    %196 = vmatprep.subr.bf16.mxu0 0
    %197 = vmatpush1.bf16.msra.mxu0 0
    %198 = vmatprep.mubr.bf16.mxu0 %v160
    %199 = vmatmul.mubr.bf16.gmra.mrb[0].mxu0 %v80
    %v200 = vpop.f32.mrb[0].mxu0
    %v201 = vadd.f32 %v71, %v200
    %v202 = vpop.f32.mrb[0].mxu0
    %v203 = vpop.f32.mrb[0].mxu0
    %v204 = vpop.f32.mrb[0].mxu0
    %205 = vdwg.mxu0
    %vm206 = vcmask 519168
    %v207 = vsel %vm206, %v201, 0.0
    %208 = vadd.xlane.f32.xlu0 %v207
    %v209 = vpop.xlane.xlu0 %208
    %v210 = vmul.f32 %v209, 0.015625
    %v211 = vsub.f32 %v201, %v210
    %v212 = vmul.f32 %v211, %v211
    %v213 = vsel %vm206, %v212, 0.0
    %214 = vadd.xlane.f32.xlu0 %v213
    %v215 = vpop.xlane.xlu0 %214
    %v216 = vmul.f32 %v215, 0.015625
    %v217 = vld [vmem:[%s3] sm:$0xf]
    %v218 = vadd.f32 %v216, 1e-05
    %v219 = vrsqrt.pop %v218
    %v220 = vmul.f32 %v217, %v219
    %v221 = vld [vmem:[%s4] sm:$0xf]
    %v222 = vmul.f32 %v210, %v220
    %v223 = vsub.f32 %v221, %v222
    %225 = vset.pattern.permute.xlu0 0
    %226 = vperm.xlu0 %225, %v220
    %v227 = vpop.permute.xlu0 %226
    %230 = vset.pattern.permute.xlu0 0
    %231 = vperm.xlu0 %230, %v223
    %v232 = vpop.permute.xlu0 %231
    %v234 = vmul.f32 %v201, %v227
    %v235 = vadd.f32 %v234, %v232
    %vm236 = vcmp.ge.f32.partialorder %v235, 0.0
    %v237 = vmul.f32 %v235, 0.1
    %v238 = vsel %vm236, %v235, %v237
    %s239 = sld [smem:[#allocation3]]
    %v240 = vstv %s239
    %v241 = vmul.f32 %v238, %v240
    %s242 = sld [smem:[#allocation3 + $0x1]]
    %v243 = vstv %s242
    %v244 = vmul.f32 %v238, %v243
    %246 = vrot.lane.b32.xlu0 %v244, 96
    %v247 = vpop.permute.xlu0 %246
    %v249 = vadd.f32 %v241, %v247
    %s250 = sld [smem:[#allocation2]]
    %v251 = vstv %s250
    %v252 = vadd.f32 %v249, %v251
    %v253 = vtanh.pop %v252
    %vm254 = vcmask 257024
    %255 = vst.msk [vmem:[%s7] sm:$0xf] %vm254, %v253
    // Predicated region
    $region34: #{forward.6} parent=1 // pred_check
      _
    $region35: #{forward.6} parent=1 // pred_check_branch
      %257 = sbr.rel (0) target = $region37
    $region36: #{forward.6} parent=1 // pred_region
      _
    $region37: #{forward.6} parent=1 // pred_fallthru
      _
    // Predicated region
    $region38: #{forward.6} parent=1 // pred_check
      _
    $region39: #{forward.6} parent=1 // pred_check_branch
      %259 = sbr.rel (0) target = $region41
    $region40: #{forward.6} parent=1 // pred_region
      _
    $region41: #{forward.6} parent=1 // pred_fallthru
      _
    %260 = vsyncpa [#allocation4], 1

// kernel: forward.7
$region0: #{forward.7}
  #allocation0 [shape = 'u32[]', space=smem, size = 0x4, offset = 0x4, fixed_abs, tag = 'smem constant byte address 0x4 - core index']
  #allocation1 [shape = 'u32[144,128]{1,0:T(1,128)}', space=vmem, size = 0x12000, scoped, tag = 'internal scratch']
  %s0 = inlined_call_operand.vmem [shape: f32[2,64], index: 0, kind: input, shape index: {}]
  %s1 = inlined_call_operand.vmem [shape: f32[64,64], index: 1, kind: input, shape index: {}]
  %s2 = inlined_call_operand.vmem [shape: f32[1,64], index: 2, kind: input, shape index: {}]
  %s3 = inlined_call_operand.vmem [shape: f32[64,32], index: 3, kind: input, shape index: {}]
  %s4 = inlined_call_operand.vmem [shape: f32[1,32], index: 4, kind: input, shape index: {}]
  %s5 = inlined_call_operand.vmem [shape: f32[2,16], index: 5, kind: input, shape index: {}]
  %s6 = inlined_call_operand.hbm [shape: f32[2,16], index: 6, kind: output, shape index: {0}]
  %s7 = inlined_call_operand.hbm [shape: f32[2,16], index: 7, kind: output, shape index: {1}]
  %s8 = inlined_call_operand.hbm [shape: f32[2,16], index: 8, kind: output, shape index: {2}]
  %9 = xla_tuple %s6, %s7, %s8
  %s10 = sld [smem:[#allocation0]]
  $region50: #{forward.7} parent=0
    _
  %s12 = ssub.s32 1, %s10
  %s13 = scalar_select 0, %s12, %s10
  $region1: #{forward.7} parent=0
    #allocation2 [shape = 'u8[1024]{0}', space=vmem, size = 0x400, scoped, tag = 'output window, operand 0, single buffered']
    #allocation3 [shape = 's32[1]{0}', space=sflag, size = 0x4, scoped, tag = 'scoped memory for forward.7']
    #allocation4 [shape = 'u8[1024]{0}', space=vmem, size = 0x400, scoped, tag = 'output window, operand 1, single buffered']
    #allocation5 [shape = 's32[1]{0}', space=sflag, size = 0x4, scoped, tag = 'scoped memory for forward.7']
    #allocation6 [shape = 'u8[1024]{0}', space=vmem, size = 0x400, scoped, tag = 'output window, operand 2, single buffered']
    %14 = vsyncpa [#allocation3], 0
    %15 = vsyncpa [#allocation5], 0
    // Predicated region
    $region2: #{forward.7} parent=1 // pred_check
      _
    $region3: #{forward.7} parent=1 // pred_check_branch
      %17 = sbr.rel (0) target = $region5
    $region4: #{forward.7} parent=1 // pred_region
      _
    $region5: #{forward.7} parent=1 // pred_fallthru
      _
    // Predicated region
    $region6: #{forward.7} parent=1 // pred_check
      _
    $region7: #{forward.7} parent=1 // pred_check_branch
      %19 = sbr.rel (0) target = $region9
    $region8: #{forward.7} parent=1 // pred_region
      _
    $region9: #{forward.7} parent=1 // pred_fallthru
      _
    // Predicated region
    $region10: #{forward.7} parent=1 // pred_check
      _
    $region11: #{forward.7} parent=1 // pred_check_branch
      %21 = sbr.rel (0) target = $region13
    $region12: #{forward.7} parent=1 // pred_region
      _
    $region13: #{forward.7} parent=1 // pred_fallthru
      _
    // Predicated region
    $region14: #{forward.7} parent=1 // pred_check
      _
    $region15: #{forward.7} parent=1 // pred_check_branch
      %23 = sbr.rel (0) target = $region17
    $region16: #{forward.7} parent=1 // pred_region
      _
    $region17: #{forward.7} parent=1 // pred_fallthru
      _
    // Predicated region
    $region18: #{forward.7} parent=1 // pred_check
      _
    $region19: #{forward.7} parent=1 // pred_check_branch
      %25 = sbr.rel (0) target = $region21
    $region20: #{forward.7} parent=1 // pred_region
      _
    $region21: #{forward.7} parent=1 // pred_fallthru
      _
    // Predicated region
    $region22: #{forward.7} parent=1 // pred_check
      _
    $region23: #{forward.7} parent=1 // pred_check_branch
      %27 = sbr.rel (0) target = $region25
    $region24: #{forward.7} parent=1 // pred_region
      _
    $region25: #{forward.7} parent=1 // pred_fallthru
      _
    %v28 = vld [vmem:[%s0] sm:$0x3]
    %v29 = vld [vmem:[%s1] sm:$0xff]
    %v30 = vld [vmem:[%s1 + $0x8] sm:$0xff]
    %v31 = vld [vmem:[%s1 + $0x10] sm:$0xff]
    %v32 = vld [vmem:[%s1 + $0x18] sm:$0xff]
    %v33 = vld [vmem:[%s1 + $0x20] sm:$0xff]
    %v34 = vld [vmem:[%s1 + $0x28] sm:$0xff]
    %v35 = vld [vmem:[%s1 + $0x30] sm:$0xff]
    %v36 = vld [vmem:[%s1 + $0x38] sm:$0xff]
    %v37 = vld [vmem:[%s2] sm:$0x1]
    %v39 = vlaneseq
    %v40 = vshrl.u32 %v39, 7
    %v41 = vsub.s32 0, %v40
    %v42 = vrot.slane %v37, %v41
    %vm44 = vcmask 523264
    %v46 = vsel %vm44, %v28, 0
    %48 = vmatprep.subr.mxu0 0.0
    %49 = vmatpush1.msra.mxu0 %v29
    %50 = vmatprep.subr.mxu0 0.0
    %51 = vmatpush1.msra.mxu0 %v30
    %52 = vmatprep.subr.mxu0 0.0
    %53 = vmatpush1.msra.mxu0 %v31
    %54 = vmatprep.subr.mxu0 0.0
    %55 = vmatpush1.msra.mxu0 %v32
    %56 = vmatprep.subr.mxu0 0.0
    %57 = vmatpush1.msra.mxu0 %v33
    %58 = vmatprep.subr.mxu0 0.0
    %59 = vmatpush1.msra.mxu0 %v34
    %60 = vmatprep.subr.mxu0 0.0
    %61 = vmatpush1.msra.mxu0 %v35
    %62 = vmatprep.subr.mxu0 0.0
    %63 = vmatpush1.msra.mxu0 %v36
    %64 = vmatprep.subr.mxu0 0.0
    %65 = vmatpush1.msra.mxu0 0.0
    %66 = vmatprep.subr.mxu0 0.0
    %67 = vmatpush1.msra.mxu0 0.0
    %68 = vmatprep.subr.mxu0 0.0
    %69 = vmatpush1.msra.mxu0 0.0
    %70 = vmatprep.subr.mxu0 0.0
    %71 = vmatpush1.msra.mxu0 0.0
    %72 = vmatprep.subr.mxu0 0.0
    %73 = vmatpush1.msra.mxu0 0.0
    %74 = vmatprep.subr.mxu0 0.0
    %75 = vmatpush1.msra.mxu0 0.0
    %76 = vmatprep.subr.mxu0 0.0
    %77 = vmatpush1.msra.mxu0 0.0
    %78 = vmatprep.subr.mxu0 0.0
    %79 = vmatpush1.msra.mxu0 0.0
    %80 = vmatprep.subr.mxu0 0.0
    %81 = vmatpush1.msra.mxu0 0.0
    %82 = vmatprep.subr.mxu0 0.0
    %83 = vmatpush1.msra.mxu0 0.0
    %84 = vmatprep.subr.mxu0 0.0
    %85 = vmatpush1.msra.mxu0 0.0
    %86 = vmatprep.subr.mxu0 0.0
    %87 = vmatpush1.msra.mxu0 0.0
    %88 = vmatprep.subr.mxu0 0.0
    %89 = vmatpush1.msra.mxu0 0.0
    %90 = vmatprep.subr.mxu0 0.0
    %91 = vmatpush1.msra.mxu0 0.0
    %92 = vmatprep.subr.mxu0 0.0
    %93 = vmatpush1.msra.mxu0 0.0
    %94 = vmatprep.subr.mxu0 0.0
    %95 = vmatpush1.msra.mxu0 0.0
    %96 = vmatprep.subr.mxu0 0.0
    %97 = vmatpush1.msra.mxu0 0.0
    %98 = vmatprep.subr.mxu0 0.0
    %99 = vmatpush1.msra.mxu0 0.0
    %100 = vmatprep.subr.mxu0 0.0
    %101 = vmatpush1.msra.mxu0 0.0
    %102 = vmatprep.subr.mxu0 0.0
    %103 = vmatpush1.msra.mxu0 0.0
    %104 = vmatprep.subr.mxu0 0.0
    %105 = vmatpush1.msra.mxu0 0.0
    %106 = vmatprep.subr.mxu0 0.0
    %107 = vmatpush1.msra.mxu0 0.0
    %108 = vmatprep.subr.mxu0 0.0
    %109 = vmatpush1.msra.mxu0 0.0
    %110 = vmatprep.subr.mxu0 0.0
    %111 = vmatpush1.msra.mxu0 0.0
    %112 = vmatprep.mubr.f32.mxu0 0.0
    %113 = vmatmul.mubr.f32.gmra.mrb[0].mxu0 %v46
    %v114 = vpop.f32.mrb[0].mxu0
    %v115 = vadd.f32 %v42, %v114
    %v116 = vpop.f32.mrb[0].mxu0
    %117 = vdwg.mxu0
    %vm118 = vcmp.ge.f32.partialorder %v115, 0.0
    %v119 = vmul.f32 %v115, 0.1
    %v120 = vsel %vm118, %v115, %v119
    %v121 = vld [vmem:[%s3] sm:$0xff]
    %v122 = vld [vmem:[%s3 + $0x8] sm:$0xff]
    %v123 = vld [vmem:[%s3 + $0x10] sm:$0xff]
    %v124 = vld [vmem:[%s3 + $0x18] sm:$0xff]
    %v125 = vld [vmem:[%s3 + $0x20] sm:$0xff]
    %v126 = vld [vmem:[%s3 + $0x28] sm:$0xff]
    %v127 = vld [vmem:[%s3 + $0x30] sm:$0xff]
    %v128 = vld [vmem:[%s3 + $0x38] sm:$0xff]
    %v129 = vld [vmem:[%s4] sm:$0x1]
    %v131 = vlaneseq
    %v132 = vshrl.u32 %v131, 7
    %v133 = vsub.s32 0, %v132
    %v134 = vrot.slane %v129, %v133
    %v137 = vsel %vm44, %v120, 0
    %139 = vmatprep.subr.mxu0 0.0
    %140 = vmatpush1.msra.mxu0 %v121
    %141 = vmatprep.subr.mxu0 0.0
    %142 = vmatpush1.msra.mxu0 %v122
    %143 = vmatprep.subr.mxu0 0.0
    %144 = vmatpush1.msra.mxu0 %v123
    %145 = vmatprep.subr.mxu0 0.0
    %146 = vmatpush1.msra.mxu0 %v124
    %147 = vmatprep.subr.mxu0 0.0
    %148 = vmatpush1.msra.mxu0 %v125
    %149 = vmatprep.subr.mxu0 0.0
    %150 = vmatpush1.msra.mxu0 %v126
    %151 = vmatprep.subr.mxu0 0.0
    %152 = vmatpush1.msra.mxu0 %v127
    %153 = vmatprep.subr.mxu0 0.0
    %154 = vmatpush1.msra.mxu0 %v128
    %155 = vmatprep.subr.mxu0 0.0
    %156 = vmatpush1.msra.mxu0 0.0
    %157 = vmatprep.subr.mxu0 0.0
    %158 = vmatpush1.msra.mxu0 0.0
    %159 = vmatprep.subr.mxu0 0.0
    %160 = vmatpush1.msra.mxu0 0.0
    %161 = vmatprep.subr.mxu0 0.0
    %162 = vmatpush1.msra.mxu0 0.0
    %163 = vmatprep.subr.mxu0 0.0
    %164 = vmatpush1.msra.mxu0 0.0
    %165 = vmatprep.subr.mxu0 0.0
    %166 = vmatpush1.msra.mxu0 0.0
    %167 = vmatprep.subr.mxu0 0.0
    %168 = vmatpush1.msra.mxu0 0.0
    %169 = vmatprep.subr.mxu0 0.0
    %170 = vmatpush1.msra.mxu0 0.0
    %171 = vmatprep.subr.mxu0 0.0
    %172 = vmatpush1.msra.mxu0 0.0
    %173 = vmatprep.subr.mxu0 0.0
    %174 = vmatpush1.msra.mxu0 0.0
    %175 = vmatprep.subr.mxu0 0.0
    %176 = vmatpush1.msra.mxu0 0.0
    %177 = vmatprep.subr.mxu0 0.0
    %178 = vmatpush1.msra.mxu0 0.0
    %179 = vmatprep.subr.mxu0 0.0
    %180 = vmatpush1.msra.mxu0 0.0
    %181 = vmatprep.subr.mxu0 0.0
    %182 = vmatpush1.msra.mxu0 0.0
    %183 = vmatprep.subr.mxu0 0.0
    %184 = vmatpush1.msra.mxu0 0.0
    %185 = vmatprep.subr.mxu0 0.0
    %186 = vmatpush1.msra.mxu0 0.0
    %187 = vmatprep.subr.mxu0 0.0
    %188 = vmatpush1.msra.mxu0 0.0
    %189 = vmatprep.subr.mxu0 0.0
    %190 = vmatpush1.msra.mxu0 0.0
    %191 = vmatprep.subr.mxu0 0.0
    %192 = vmatpush1.msra.mxu0 0.0
    %193 = vmatprep.subr.mxu0 0.0
    %194 = vmatpush1.msra.mxu0 0.0
    %195 = vmatprep.subr.mxu0 0.0
    %196 = vmatpush1.msra.mxu0 0.0
    %197 = vmatprep.subr.mxu0 0.0
    %198 = vmatpush1.msra.mxu0 0.0
    %199 = vmatprep.subr.mxu0 0.0
    %200 = vmatpush1.msra.mxu0 0.0
    %201 = vmatprep.subr.mxu0 0.0
    %202 = vmatpush1.msra.mxu0 0.0
    %203 = vmatprep.mubr.f32.mxu0 0.0
    %204 = vmatmul.mubr.f32.gmra.mrb[0].mxu0 %v137
    %v205 = vpop.f32.mrb[0].mxu0
    %v206 = vadd.f32 %v134, %v205
    %v207 = vpop.f32.mrb[0].mxu0
    %208 = vdwg.mxu0
    %v209 = vmax.f32 %v206, -100.0
    %v210 = vmin.f32 %v209, 85.0
    %v211 = vtanh.pop %v210
    %vm212 = vcmask 123904
    %213 = vst.msk [vmem:[#allocation2] sm:$0x3] %vm212, %v210
    %215 = vrot.lane.b32.xlu0 %v211, 112
    %v216 = vpop.permute.xlu0 %215
    %218 = vst.msk [vmem:[#allocation4] sm:$0x3] %vm212, %v216
    %v219 = vld [vmem:[%s5] sm:$0x3]
    %v220 = vmul.f32 %v211, 0.5
    %v221 = vmul.f32 %v220, 1.442695
    %v222 = vpow.pop %v221
    %224 = vrot.lane.b32.xlu0 %v222, 112
    %v225 = vpop.permute.xlu0 %224
    %v227 = vmul.f32 %v219, %v225
    %v228 = vadd.f32 %v210, %v227
    %229 = vst.msk [vmem:[#allocation6] sm:$0x3] %vm212, %v228
    // Predicated region
    $region26: #{forward.7} parent=1 // pred_check
      _
    $region27: #{forward.7} parent=1 // pred_check_branch
      %231 = sbr.rel (0) target = $region29
    $region28: #{forward.7} parent=1 // pred_region
      %s233 = ssub.s32 32, 32
      %234 = vsyncadd [#allocation3], %s233
      %s236 = sshll.u32 [#allocation2], 4
      %s237 = int_to_ptr.vmem [resolvable:$true] %s236
      %239 = dma.vmem_to_hbm [thread:$0]  %s237, 32, %s6, [#allocation3]
    $region29: #{forward.7} parent=1 // pred_fallthru
      _
    // Predicated region
    $region30: #{forward.7} parent=1 // pred_check
      _
    $region31: #{forward.7} parent=1 // pred_check_branch
      %241 = sbr.rel (0) target = $region33
    $region32: #{forward.7} parent=1 // pred_region
      %s243 = ssub.s32 32, 32
      %244 = vsyncadd [#allocation5], %s243
      %s246 = sshll.u32 [#allocation4], 4
      %s247 = int_to_ptr.vmem [resolvable:$true] %s246
      %249 = dma.vmem_to_hbm [thread:$0]  %s247, 32, %s7, [#allocation5]
    $region33: #{forward.7} parent=1 // pred_fallthru
      _
    // Predicated region
    $region34: #{forward.7} parent=1 // pred_check
      _
    $region35: #{forward.7} parent=1 // pred_check_branch
      %251 = sbr.rel (0) target = $region37
    $region36: #{forward.7} parent=1 // pred_region
      %s253 = ssub.s32 32, 32
      %254 = vsyncadd [#allocation5], %s253
      %s256 = sshll.u32 [#allocation6], 4
      %s257 = int_to_ptr.vmem [resolvable:$true] %s256
      %259 = dma.vmem_to_hbm [thread:$0]  %s257, 32, %s8, [#allocation5]
    $region37: #{forward.7} parent=1 // pred_fallthru
      _
    // Predicated region
    $region38: #{forward.7} parent=1 // pred_check
      _
    $region39: #{forward.7} parent=1 // pred_check_branch
      %261 = sbr.rel (0) target = $region41
    $region40: #{forward.7} parent=1 // pred_region
      %262 = dma.done [#allocation3], 32
    $region41: #{forward.7} parent=1 // pred_fallthru
      _
    // Predicated region
    $region42: #{forward.7} parent=1 // pred_check
      _
    $region43: #{forward.7} parent=1 // pred_check_branch
      %264 = sbr.rel (0) target = $region45
    $region44: #{forward.7} parent=1 // pred_region
      %265 = dma.done [#allocation5], 32
    $region45: #{forward.7} parent=1 // pred_fallthru
      _
    // Predicated region
    $region46: #{forward.7} parent=1 // pred_check
      _
    $region47: #{forward.7} parent=1 // pred_check_branch
      %267 = sbr.rel (0) target = $region49
    $region48: #{forward.7} parent=1 // pred_region
      %268 = dma.done [#allocation5], 32
    $region49: #{forward.7} parent=1 // pred_fallthru
      _
    %269 = vsyncpa [#allocation3], 1
    %270 = vsyncpa [#allocation5], 1

</llo_original>
